<compile_context>
chip_gen: v7x
topology: tpu7x:2x2x1
jax: 0.10.0
libtpu: 0.0.40
codegen_flags: <defaults>
</compile_context>

<pallas_src>
import numpy as np
import jax
import jax.numpy as jnp
from jax.experimental import pallas as pl
from jax.experimental.pallas import tpu as pltpu


def _round_up(x, m):
    return ((x + m - 1) // m) * m


def _tpu_defaults():
    """(block_m, vmem_limit_bytes, want_multi_step) tuned per TPU generation."""
    kind = ""
    try:
        kind = jax.devices()[0].device_kind.lower()
    except Exception:
        pass
    if "v5" in kind or "v6" in kind:          # 128 MiB physical VMEM, 1 TC/chip
        return 1024, 96 * 1024 * 1024, False
    if "v7" in kind or "7x" in kind:          # 64 MiB physical VMEM, 2 TC/chip
        return 512, 48 * 1024 * 1024, True
    return 256, None, False                   # conservative fallback (v4 etc.)


# --------------------------------------------------------------------------- #
# Kernel
# --------------------------------------------------------------------------- #
def critic_kernel(x_ref, tau_ref, npi_ref, w1_ref, b1_ref, w2_ref, b2_ref,
                  we_ref, pb_ref, w3_ref, b3_ref, out_ref):
    cdt = w1_ref.dtype                        # MXU input dtype (bf16)
    emb_dim = w2_ref.shape[1]
    q_num = pb_ref.shape[1] // emb_dim

    # State trunk: fc1 -> relu -> fc2 -> relu (bf16 MXU inputs, f32 accumulation).
    h1 = jnp.maximum(
        jnp.dot(x_ref[...].astype(cdt), w1_ref[...],
                preferred_element_type=jnp.float32) + b1_ref[...], 0.0)      # (tm, 512)
    h2 = jnp.maximum(
        jnp.dot(h1.astype(cdt), w2_ref[...],
                preferred_element_type=jnp.float32) + b2_ref[...], 0.0)      # (tm, 256)

    # Lane-dense cosine features: lane q*N + n holds cos(tau[b,q] * n * pi).
    # tau_ref already has tau repeated N times per quantile; npi holds n*pi.
    cosf = jnp.cos(tau_ref[...] * npi_ref[...])                              # (tm, q*N)

    # Quantile embedding via block-diagonal expanded weight -> (tm, q*emb).
    emb = jnp.dot(cosf.astype(cdt), we_ref[...],
                  preferred_element_type=jnp.float32)
    phi = jnp.maximum(emb + pb_ref[...], 0.0)                                # (tm, q*emb)

    # u[b, q*emb + h] = h2[b, h] * phi[b, q*emb + h].  h2 is repeated along the
    # lane axis by concatenation (emb_dim is a multiple of 128 -> tile-aligned,
    # no relayout).  Both factors are >= 0, so the module's second ReLU is a
    # no-op and is dropped.
    u = jnp.concatenate([h2] * q_num, axis=-1) * phi                         # (tm, q*emb)

    # fc3 via block-diagonal expanded weight -> (tm, q*act_pad): full-lane stores.
    o = jnp.dot(u.astype(cdt), w3_ref[...],
                preferred_element_type=jnp.float32) + b3_ref[...]
    out_ref[...] = o.astype(out_ref.dtype)


# --------------------------------------------------------------------------- #
# One-time parameter preprocessing (hoisted out of the forward path)
# --------------------------------------------------------------------------- #
def prepare_params(params, compute_dtype=jnp.bfloat16):
    """Cast / pad / block-diagonally expand the Critic weights once."""
    w1t, b1, w2t, b2, w3t, b3, wet, pb = params
    obs_dim, hidden = w1t.shape
    emb_dim = w2t.shape[1]
    N = wet.shape[0]
    act_dim = w3t.shape[1]
    q_num = int(np.asarray(pb).reshape(-1).shape[0])

    # Pad act_dim so q_num * act_pad is a multiple of 128 (full-lane output).
    act_pad = _round_up(act_dim, 8)
    while (q_num * act_pad) % 128 != 0:
        act_pad += 8
    qN, qE, qA = q_num * N, q_num * emb_dim, q_num * act_pad

    eye_q = jnp.eye(q_num, dtype=jnp.float32)

    # Block-diagonal expanded tau-embedding weight: we_exp[q*N+n, q*E+h] = wet[n,h].
    we_exp = (eye_q[:, None, :, None]
              * wet.astype(jnp.float32)[None, :, None, :]).reshape(qN, qE)

    # Block-diagonal expanded fc3 weight (act padded): w3_exp[q*E+h, q*A+a] = w3t[h,a].
    w3pad = jnp.zeros((emb_dim, act_pad), jnp.float32).at[:, :act_dim].set(
        w3t.astype(jnp.float32))
    w3_exp = (eye_q[:, None, :, None] * w3pad[None, :, None, :]).reshape(qE, qA)

    # Pre-broadcast biases (pure VPU adds inside the kernel).
    pb_vec = jnp.asarray(pb, jnp.float32).reshape(q_num)
    pb_flat = jnp.repeat(pb_vec, emb_dim).reshape(1, qE)
    b3pad = jnp.zeros((act_pad,), jnp.float32).at[:act_dim].set(
        jnp.asarray(b3, jnp.float32).reshape(-1))
    b3_flat = jnp.tile(b3pad, (q_num,)).reshape(1, qA)

    # n * pi per lane (q-major: lane q*N + n -> n*pi).
    npi = (jnp.tile(jnp.arange(N, dtype=jnp.float32), (q_num,)) * np.pi).reshape(1, qN)

    return dict(
        w1=w1t.astype(compute_dtype),
        b1=jnp.asarray(b1, jnp.float32).reshape(1, hidden),
        w2=w2t.astype(compute_dtype),
        b2=jnp.asarray(b2, jnp.float32).reshape(1, emb_dim),
        we=we_exp.astype(compute_dtype),
        pb=pb_flat,
        w3=w3_exp.astype(compute_dtype),
        b3=b3_flat,
        npi=npi,
        meta=dict(obs_dim=obs_dim, hidden=hidden, emb_dim=emb_dim, N=N,
                  act_dim=act_dim, act_pad=act_pad, q_num=q_num),
    )


# --------------------------------------------------------------------------- #
# Forward wrapper
# --------------------------------------------------------------------------- #
def critic_forward(prep, x, tau=None, *, key=None, block_m=None,
                   vmem_limit_bytes=None):
    """Pallas version of Critic.forward. Returns (q_values, tau)."""
    m = prep["meta"]
    obs_dim, hidden, emb_dim = m["obs_dim"], m["hidden"], m["emb_dim"]
    N, act_dim, act_pad, q_num = m["N"], m["act_dim"], m["act_pad"], m["q_num"]
    qN, qE, qA = q_num * N, q_num * emb_dim, q_num * act_pad

    x2 = x.reshape(-1, obs_dim).astype(jnp.float32)
    mb = x2.shape[0]
    if tau is None:
        if key is None:
            raise ValueError("critic_forward: `key` is required when `tau` is None.")
        tau = jax.random.uniform(key, (mb, q_num, 1), dtype=jnp.float32)
    tau2 = tau.reshape(mb, q_num).astype(jnp.float32)
    # Lane-dense cos operand: tau repeated N times per quantile (q-major layout).
    tau_rep = jnp.broadcast_to(tau2[:, :, None], (mb, q_num, N)).reshape(mb, qN)

    default_bm, default_vmem, want_multi = _tpu_defaults()
    if block_m is None:
        block_m = default_bm
    if vmem_limit_bytes is None:
        vmem_limit_bytes = default_vmem

    # Batch tiling; on v7x try to have >= 2 grid steps so both cores work.
    tm = min(block_m, _round_up(mb, 8))
    if want_multi and mb > 8 and pl.cdiv(mb, tm) < 2:
        tm = min(tm, _round_up(pl.cdiv(mb, 2), 8))
    grid_m = pl.cdiv(mb, tm)
    mb_pad = grid_m * tm
    if mb_pad != mb:
        x2 = jnp.pad(x2, ((0, mb_pad - mb), (0, 0)))
        tau_rep = jnp.pad(tau_rep, ((0, mb_pad - mb), (0, 0)))

    wbytes = prep["w1"].dtype.itemsize
    cost = pl.CostEstimate(
        flops=int(2 * mb_pad * (obs_dim * hidden + hidden * emb_dim
                                + qN * qE + qE * qA)),
        transcendentals=int(mb_pad * qN),
        bytes_accessed=int(
            mb_pad * (obs_dim + qN + qA) * 4
            + (prep["w1"].size + prep["w2"].size + prep["we"].size
               + prep["w3"].size) * wbytes
            + (prep["b1"].size + prep["b2"].size + prep["pb"].size
               + prep["b3"].size + prep["npi"].size) * 4),
    )

    cp_kwargs = dict(dimension_semantics=("parallel",))
    if vmem_limit_bytes is not None:
        cp_kwargs["vmem_limit_bytes"] = int(vmem_limit_bytes)

    out_flat = pl.pallas_call(
        critic_kernel,
        out_shape=jax.ShapeDtypeStruct((mb_pad, qA), jnp.float32),
        grid=(grid_m,),
        in_specs=[
            pl.BlockSpec((tm, obs_dim), lambda i: (i, 0)),     # x tile
            pl.BlockSpec((tm, qN), lambda i: (i, 0)),          # tau (lane-dense)
            pl.BlockSpec((1, qN), lambda i: (0, 0)),           # n*pi per lane
            pl.BlockSpec((obs_dim, hidden), lambda i: (0, 0)), # fc1.W^T  (resident)
            pl.BlockSpec((1, hidden), lambda i: (0, 0)),       # fc1.b
            pl.BlockSpec((hidden, emb_dim), lambda i: (0, 0)), # fc2.W^T  (resident)
            pl.BlockSpec((1, emb_dim), lambda i: (0, 0)),      # fc2.b
            pl.BlockSpec((qN, qE), lambda i: (0, 0)),          # tau_emb (block-diag)
            pl.BlockSpec((1, qE), lambda i: (0, 0)),           # phi bias (pre-bcast)
            pl.BlockSpec((qE, qA), lambda i: (0, 0)),          # fc3.W^T (block-diag)
            pl.BlockSpec((1, qA), lambda i: (0, 0)),           # fc3.b   (pre-bcast)
        ],
        out_specs=pl.BlockSpec((tm, qA), lambda i: (i, 0)),
        compiler_params=pltpu.CompilerParams(**cp_kwargs),
        cost_estimate=cost,
    )(x2, tau_rep, prep["npi"], prep["w1"], prep["b1"], prep["w2"], prep["b2"],
      prep["we"], prep["pb"], prep["w3"], prep["b3"])

    out = out_flat.reshape(mb_pad, q_num, act_pad)[:mb, :, :act_dim]
    return out, tau


# --------------------------------------------------------------------------- #
# Pure-JAX reference (mirrors the PyTorch forward; f32 activations)
# --------------------------------------------------------------------------- #
def critic_ref(params, x, tau, compute_dtype=jnp.float32):
    """`compute_dtype` quantizes the weights exactly as the kernel does, so the
    comparison isolates activation-precision / accumulation differences."""
    w1t, b1, w2t, b2, w3t, b3, wet, pb = params
    q = lambda w: w.astype(compute_dtype).astype(jnp.float32)
    obs_dim = w1t.shape[0]
    N = wet.shape[0]
    x2 = x.reshape(-1, obs_dim).astype(jnp.float32)
    h1 = jax.nn.relu(x2 @ q(w1t) + b1)
    h2 = jax.nn.relu(h1 @ q(w2t) + b2)
    quants = jnp.arange(0, N, 1.0, dtype=jnp.float32)
    cos_trans = jnp.cos(tau * quants * np.pi)                  # (mb, q_num, N)
    phi = jax.nn.relu(jnp.einsum("bqn,nh->bqh", cos_trans, q(wet))
                      + pb.reshape(-1)[None, :, None])
    u = jax.nn.relu(h2[:, None, :] * phi)
    out = jnp.einsum("bqh,ha->bqa", u, q(w3t)) + b3
    return out, tau


def init_params(key, obs_dim, act_dim, q_num, N):
    """Deterministic synthetic parameters with nn.Linear shapes (pre-transposed)."""
    ks = jax.random.split(key, 8)
    w1t = jax.random.normal(ks[0], (obs_dim, 512), jnp.float32) * 0.05   # fc1.weight.T
    b1 = jax.random.normal(ks[1], (1, 512), jnp.float32) * 0.05
    w2t = jax.random.normal(ks[2], (512, 256), jnp.float32) * 0.05       # fc2.weight.T
    b2 = jax.random.normal(ks[3], (1, 256), jnp.float32) * 0.05
    w3t = jax.random.normal(ks[4], (256, act_dim), jnp.float32) * 0.05   # fc3.weight.T
    b3 = jax.random.normal(ks[5], (1, act_dim), jnp.float32) * 0.05
    wet = jax.random.normal(ks[6], (N, 256), jnp.float32) * 0.05         # tau_embedding.weight.T
    # PyTorch inits phi_bias to zeros; use small nonzero values to exercise the path.
    pb = jax.random.normal(ks[7], (q_num,), jnp.float32) * 0.05          # phi_bias
    return (w1t, b1, w2t, b2, w3t, b3, wet, pb)


if __name__ == "__main__":
    obs_dim, act_dim, q_num, N = 32, 8, 8, 16
    mb = 8

    root = jax.random.PRNGKey(0)
    k_param, k_x, k_tau = jax.random.split(root, 3)

    params = init_params(k_param, obs_dim, act_dim, q_num, N)
    x = jax.random.normal(k_x, (mb, obs_dim), jnp.float32)
    tau = jax.random.uniform(k_tau, (mb, q_num, 1), dtype=jnp.float32)

    compute_dtype = jnp.bfloat16   # MXU fast path; element-wise math stays f32
    prep = prepare_params(params, compute_dtype=compute_dtype)   # hoisted, done once

    out, tau_out = critic_forward(prep, x, tau)
    out = jax.block_until_ready(out)

    ref, _ = critic_ref(params, x, tau, compute_dtype=compute_dtype)
    np.testing.assert_allclose(np.asarray(out), np.asarray(ref), atol=2e-2, rtol=2e-2)
    assert out.shape == (mb, q_num, act_dim) and tau_out.shape == (mb, q_num, 1)

    print("KERNEL_OK")
</pallas_src>

<mosaic_0001>
module attributes {stable_mosaic.version = 11 : i64} {
  func.func @critic_kernel(%arg0: i32, %arg1: memref<8x32xf32, #tpu.memory_space<vmem>>, %arg2: memref<8x128xf32, #tpu.memory_space<vmem>>, %arg3: memref<1x128xf32, #tpu.memory_space<vmem>>, %arg4: memref<32x512xbf16, #tpu.memory_space<vmem>>, %arg5: memref<1x512xf32, #tpu.memory_space<vmem>>, %arg6: memref<512x256xbf16, #tpu.memory_space<vmem>>, %arg7: memref<1x256xf32, #tpu.memory_space<vmem>>, %arg8: memref<128x2048xbf16, #tpu.memory_space<vmem>>, %arg9: memref<1x2048xf32, #tpu.memory_space<vmem>>, %arg10: memref<2048x128xbf16, #tpu.memory_space<vmem>>, %arg11: memref<1x128xf32, #tpu.memory_space<vmem>>, %arg12: memref<8x128xf32, #tpu.memory_space<vmem>>) attributes {dimension_semantics = [#tpu.dimension_semantics<parallel>], iteration_bounds = array<i64: 1>, scalar_prefetch = 0 : i64, scratch_operands = 0 : i64, tpu.core_type = #tpu.core_type<tc>, window_params = [{transform_indices = @transform_0, window_bounds = array<i64: 8, 32>}, {transform_indices = @transform_1, window_bounds = array<i64: 8, 128>}, {pipeline_mode = #tpu.pipeline_mode<synchronous>, transform_indices = @transform_2, window_bounds = array<i64: 1, 128>}, {pipeline_mode = #tpu.pipeline_mode<synchronous>, transform_indices = @transform_3, window_bounds = array<i64: 32, 512>}, {pipeline_mode = #tpu.pipeline_mode<synchronous>, transform_indices = @transform_4, window_bounds = array<i64: 1, 512>}, {pipeline_mode = #tpu.pipeline_mode<synchronous>, transform_indices = @transform_5, window_bounds = array<i64: 512, 256>}, {pipeline_mode = #tpu.pipeline_mode<synchronous>, transform_indices = @transform_6, window_bounds = array<i64: 1, 256>}, {pipeline_mode = #tpu.pipeline_mode<synchronous>, transform_indices = @transform_7, window_bounds = array<i64: 128, 2048>}, {pipeline_mode = #tpu.pipeline_mode<synchronous>, transform_indices = @transform_8, window_bounds = array<i64: 1, 2048>}, {pipeline_mode = #tpu.pipeline_mode<synchronous>, transform_indices = @transform_9, window_bounds = array<i64: 2048, 128>}, {pipeline_mode = #tpu.pipeline_mode<synchronous>, transform_indices = @transform_10, window_bounds = array<i64: 1, 128>}, {transform_indices = @transform_11, window_bounds = array<i64: 8, 128>}]} {
    %c0 = arith.constant 0 : index
    %c0_0 = arith.constant 0 : index
    %0 = vector.load %arg1[%c0, %c0_0] : memref<8x32xf32, #tpu.memory_space<vmem>>, vector<8x32xf32>
    %1 = arith.truncf %0 : vector<8x32xf32> to vector<8x32xbf16>
    %c0_1 = arith.constant 0 : index
    %c0_2 = arith.constant 0 : index
    %2 = vector.load %arg4[%c0_1, %c0_2] : memref<32x512xbf16, #tpu.memory_space<vmem>>, vector<32x512xbf16>
    %cst = arith.constant dense<0.000000e+00> : vector<8x512xf32>
    %3 = tpu.matmul %1, %2, %cst {dimension_numbers = #tpu.dot_dimension_numbers<[1], [0], [0], [1], [0, 0, 1, 1], [], []>} : vector<8x32xbf16>, vector<32x512xbf16>, vector<8x512xf32> -> vector<8x512xf32>
    %c0_3 = arith.constant 0 : index
    %c0_4 = arith.constant 0 : index
    %4 = vector.load %arg5[%c0_3, %c0_4] : memref<1x512xf32, #tpu.memory_space<vmem>>, vector<1x512xf32>
    %5 = vector.broadcast %4 : vector<1x512xf32> to vector<8x512xf32>
    %6 = arith.addf %3, %5 : vector<8x512xf32>
    %cst_5 = arith.constant 0.000000e+00 : f32
    %7 = vector.broadcast %cst_5 : f32 to vector<8x512xf32>
    %8 = arith.maximumf %6, %7 : vector<8x512xf32>
    %9 = arith.truncf %8 : vector<8x512xf32> to vector<8x512xbf16>
    %c0_6 = arith.constant 0 : index
    %c0_7 = arith.constant 0 : index
    %10 = vector.load %arg6[%c0_6, %c0_7] : memref<512x256xbf16, #tpu.memory_space<vmem>>, vector<512x256xbf16>
    %cst_8 = arith.constant dense<0.000000e+00> : vector<8x256xf32>
    %11 = tpu.matmul %9, %10, %cst_8 {dimension_numbers = #tpu.dot_dimension_numbers<[1], [0], [0], [1], [0, 0, 1, 1], [], []>} : vector<8x512xbf16>, vector<512x256xbf16>, vector<8x256xf32> -> vector<8x256xf32>
    %c0_9 = arith.constant 0 : index
    %c0_10 = arith.constant 0 : index
    %12 = vector.load %arg7[%c0_9, %c0_10] : memref<1x256xf32, #tpu.memory_space<vmem>>, vector<1x256xf32>
    %13 = vector.broadcast %12 : vector<1x256xf32> to vector<8x256xf32>
    %14 = arith.addf %11, %13 : vector<8x256xf32>
    %cst_11 = arith.constant 0.000000e+00 : f32
    %15 = vector.broadcast %cst_11 : f32 to vector<8x256xf32>
    %16 = arith.maximumf %14, %15 : vector<8x256xf32>
    %c0_12 = arith.constant 0 : index
    %c0_13 = arith.constant 0 : index
    %17 = vector.load %arg2[%c0_12, %c0_13] : memref<8x128xf32, #tpu.memory_space<vmem>>, vector<8x128xf32>
    %c0_14 = arith.constant 0 : index
    %c0_15 = arith.constant 0 : index
    %18 = vector.load %arg3[%c0_14, %c0_15] : memref<1x128xf32, #tpu.memory_space<vmem>>, vector<1x128xf32>
    %19 = vector.broadcast %18 : vector<1x128xf32> to vector<8x128xf32>
    %20 = arith.mulf %17, %19 : vector<8x128xf32>
    %21 = math.cos %20 : vector<8x128xf32>
    %22 = arith.truncf %21 : vector<8x128xf32> to vector<8x128xbf16>
    %c0_16 = arith.constant 0 : index
    %c0_17 = arith.constant 0 : index
    %23 = vector.load %arg8[%c0_16, %c0_17] : memref<128x2048xbf16, #tpu.memory_space<vmem>>, vector<128x2048xbf16>
    %cst_18 = arith.constant dense<0.000000e+00> : vector<8x2048xf32>
    %24 = tpu.matmul %22, %23, %cst_18 {dimension_numbers = #tpu.dot_dimension_numbers<[1], [0], [0], [1], [0, 0, 1, 1], [], []>} : vector<8x128xbf16>, vector<128x2048xbf16>, vector<8x2048xf32> -> vector<8x2048xf32>
    %c0_19 = arith.constant 0 : index
    %c0_20 = arith.constant 0 : index
    %25 = vector.load %arg9[%c0_19, %c0_20] : memref<1x2048xf32, #tpu.memory_space<vmem>>, vector<1x2048xf32>
    %26 = vector.broadcast %25 : vector<1x2048xf32> to vector<8x2048xf32>
    %27 = arith.addf %24, %26 : vector<8x2048xf32>
    %cst_21 = arith.constant 0.000000e+00 : f32
    %28 = vector.broadcast %cst_21 : f32 to vector<8x2048xf32>
    %29 = arith.maximumf %27, %28 : vector<8x2048xf32>
    %30 = tpu.concatenate %16, %16, %16, %16, %16, %16, %16, %16 in 1 : vector<8x256xf32>, vector<8x256xf32>, vector<8x256xf32>, vector<8x256xf32>, vector<8x256xf32>, vector<8x256xf32>, vector<8x256xf32>, vector<8x256xf32> -> vector<8x2048xf32>
    %31 = arith.mulf %30, %29 : vector<8x2048xf32>
    %32 = arith.truncf %31 : vector<8x2048xf32> to vector<8x2048xbf16>
    %c0_22 = arith.constant 0 : index
    %c0_23 = arith.constant 0 : index
    %33 = vector.load %arg10[%c0_22, %c0_23] : memref<2048x128xbf16, #tpu.memory_space<vmem>>, vector<2048x128xbf16>
    %cst_24 = arith.constant dense<0.000000e+00> : vector<8x128xf32>
    %34 = tpu.matmul %32, %33, %cst_24 {dimension_numbers = #tpu.dot_dimension_numbers<[1], [0], [0], [1], [0, 0, 1, 1], [], []>} : vector<8x2048xbf16>, vector<2048x128xbf16>, vector<8x128xf32> -> vector<8x128xf32>
    %c0_25 = arith.constant 0 : index
    %c0_26 = arith.constant 0 : index
    %35 = vector.load %arg11[%c0_25, %c0_26] : memref<1x128xf32, #tpu.memory_space<vmem>>, vector<1x128xf32>
    %36 = vector.broadcast %35 : vector<1x128xf32> to vector<8x128xf32>
    %37 = arith.addf %34, %36 : vector<8x128xf32>
    %c0_27 = arith.constant 0 : index
    %c0_28 = arith.constant 0 : index
    %38 = vector.load %arg12[%c0_27, %c0_28] : memref<8x128xf32, #tpu.memory_space<vmem>>, vector<8x128xf32>
    tpu.vector_store %arg12[%c0_27, %c0_28], %37 {strides = array<i32>} : memref<8x128xf32, #tpu.memory_space<vmem>>, vector<8x128xf32>,
    return
  }
  func.func @transform_0(%arg0: i32) -> (i32, i32) {
    %c0_i32 = arith.constant 0 : i32
    %c0_i32_0 = arith.constant 0 : i32
    return %arg0, %c0_i32 : i32, i32
  }
  func.func @transform_1(%arg0: i32) -> (i32, i32) {
    %c0_i32 = arith.constant 0 : i32
    %c0_i32_0 = arith.constant 0 : i32
    return %arg0, %c0_i32 : i32, i32
  }
  func.func @transform_2(%arg0: i32) -> (i32, i32) {
    %c0_i32 = arith.constant 0 : i32
    %c0_i32_0 = arith.constant 0 : i32
    %c0_i32_1 = arith.constant 0 : i32
    return %c0_i32, %c0_i32_0 : i32, i32
  }
  func.func @transform_3(%arg0: i32) -> (i32, i32) {
    %c0_i32 = arith.constant 0 : i32
    %c0_i32_0 = arith.constant 0 : i32
    %c0_i32_1 = arith.constant 0 : i32
    return %c0_i32, %c0_i32_0 : i32, i32
  }
  func.func @transform_4(%arg0: i32) -> (i32, i32) {
    %c0_i32 = arith.constant 0 : i32
    %c0_i32_0 = arith.constant 0 : i32
    %c0_i32_1 = arith.constant 0 : i32
    return %c0_i32, %c0_i32_0 : i32, i32
  }
  func.func @transform_5(%arg0: i32) -> (i32, i32) {
    %c0_i32 = arith.constant 0 : i32
    %c0_i32_0 = arith.constant 0 : i32
    %c0_i32_1 = arith.constant 0 : i32
    return %c0_i32, %c0_i32_0 : i32, i32
  }
  func.func @transform_6(%arg0: i32) -> (i32, i32) {
    %c0_i32 = arith.constant 0 : i32
    %c0_i32_0 = arith.constant 0 : i32
    %c0_i32_1 = arith.constant 0 : i32
    return %c0_i32, %c0_i32_0 : i32, i32
  }
  func.func @transform_7(%arg0: i32) -> (i32, i32) {
    %c0_i32 = arith.constant 0 : i32
    %c0_i32_0 = arith.constant 0 : i32
    %c0_i32_1 = arith.constant 0 : i32
    return %c0_i32, %c0_i32_0 : i32, i32
  }
  func.func @transform_8(%arg0: i32) -> (i32, i32) {
    %c0_i32 = arith.constant 0 : i32
    %c0_i32_0 = arith.constant 0 : i32
    %c0_i32_1 = arith.constant 0 : i32
    return %c0_i32, %c0_i32_0 : i32, i32
  }
  func.func @transform_9(%arg0: i32) -> (i32, i32) {
    %c0_i32 = arith.constant 0 : i32
    %c0_i32_0 = arith.constant 0 : i32
    %c0_i32_1 = arith.constant 0 : i32
    return %c0_i32, %c0_i32_0 : i32, i32
  }
  func.func @transform_10(%arg0: i32) -> (i32, i32) {
    %c0_i32 = arith.constant 0 : i32
    %c0_i32_0 = arith.constant 0 : i32
    %c0_i32_1 = arith.constant 0 : i32
    return %c0_i32, %c0_i32_0 : i32, i32
  }
  func.func @transform_11(%arg0: i32) -> (i32, i32) {
    %c0_i32 = arith.constant 0 : i32
    %c0_i32_0 = arith.constant 0 : i32
    return %arg0, %c0_i32 : i32, i32
  }
}

</mosaic_0001>

<llo_original>
// kernel: tpu_custom_call.1
$region0: #{tpu_custom_call.1}
  #allocation0 [shape = 'u32[]', space=smem, size = 0x4, offset = 0x4, fixed_abs, tag = 'smem constant byte address 0x4 - core index']
  #allocation1 [shape = 'u32[144,128]{1,0:T(1,128)}', space=vmem, size = 0x12000, scoped, tag = 'internal scratch']
  %s0 = inlined_call_operand.hbm [shape: f32[8,32], index: 0, kind: input, shape index: {}]
  %s1 = inlined_call_operand.hbm [shape: f32[8,128], index: 1, kind: input, shape index: {}]
  %s2 = inlined_call_operand.vmem [shape: f32[1,128], index: 2, kind: input, shape index: {}]
  %s3 = inlined_call_operand.hbm [shape: bf16[32,512], index: 3, kind: input, shape index: {}]
  %s4 = inlined_call_operand.vmem [shape: f32[1,512], index: 4, kind: input, shape index: {}]
  %s5 = inlined_call_operand.hbm [shape: bf16[512,256], index: 5, kind: input, shape index: {}]
  %s6 = inlined_call_operand.vmem [shape: f32[1,256], index: 6, kind: input, shape index: {}]
  %s7 = inlined_call_operand.hbm [shape: bf16[128,2048], index: 7, kind: input, shape index: {}]
  %s8 = inlined_call_operand.vmem [shape: f32[1,2048], index: 8, kind: input, shape index: {}]
  %s9 = inlined_call_operand.hbm [shape: bf16[2048,128], index: 9, kind: input, shape index: {}]
  %s10 = inlined_call_operand.vmem [shape: f32[1,128], index: 10, kind: input, shape index: {}]
  %s11 = inlined_call_operand.hbm [shape: f32[8,128], index: 11, kind: output, shape index: {}]
  %s12 = sld [smem:[#allocation0]]
  $region78: #{tpu_custom_call.1} parent=0
    _
  %s14 = ssub.s32 1, %s12
  %s15 = scalar_select 0, %s14, %s12
  $region1: #{tpu_custom_call.1} parent=0
    #allocation2 [shape = 'u8[4096]{0}', space=vmem, size = 0x1000, scoped, tag = 'input window, operand 0, single buffered']
    #allocation3 [shape = 's32[1]{0}', space=sflag, size = 0x4, scoped, tag = 'scoped memory for tpu_custom_call.1']
    #allocation4 [shape = 's32[1]{0}', space=sflag, size = 0x4, scoped, tag = 'scoped memory for tpu_custom_call.1']
    #allocation5 [shape = 'u8[4096]{0}', space=vmem, size = 0x1000, scoped, tag = 'input window, operand 1, single buffered']
    #allocation6 [shape = 's32[1]{0}', space=sflag, size = 0x4, scoped, tag = 'scoped memory for tpu_custom_call.1']
    #allocation7 [shape = 'u8[32768]{0}', space=vmem, size = 0x8000, scoped, tag = 'input window, operand 3, single buffered']
    #allocation8 [shape = 'u8[262144]{0}', space=vmem, size = 0x40000, scoped, tag = 'input window, operand 5, single buffered']
    #allocation9 [shape = 's32[1]{0}', space=sflag, size = 0x4, scoped, tag = 'scoped memory for tpu_custom_call.1']
    #allocation10 [shape = 'u8[524288]{0}', space=vmem, size = 0x80000, scoped, tag = 'input window, operand 7, single buffered']
    #allocation11 [shape = 'u8[524288]{0}', space=vmem, size = 0x80000, scoped, tag = 'input window, operand 9, single buffered']
    #allocation12 [shape = 's32[1]{0}', space=sflag, size = 0x4, scoped, tag = 'scoped memory for tpu_custom_call.1']
    #allocation13 [shape = 'u8[4096]{0}', space=vmem, size = 0x1000, scoped, tag = 'output window, operand 0, single buffered']
    %16 = vsyncpa [#allocation3], 0
    %17 = vsyncpa [#allocation6], 0
    %18 = vsyncpa [#allocation9], 0
    %19 = vsyncpa [#allocation12], 0
    %20 = vsyncpa [#allocation4], 0
    // Predicated region
    $region2: #{tpu_custom_call.1} parent=1 // pred_check
      _
    $region3: #{tpu_custom_call.1} parent=1 // pred_check_branch
      %22 = sbr.rel (0) target = $region5
    $region4: #{tpu_custom_call.1} parent=1 // pred_region
      %s24 = ssub.s32 128, 128
      %25 = vsyncadd [#allocation3], %s24
      %s27 = sshll.u32 [#allocation2], 4
      %s28 = int_to_ptr.vmem [resolvable:$true] %s27
      %30 = dma.hbm_to_vmem [thread:$0]  %s0, 128, %s28, [#allocation3]
    $region5: #{tpu_custom_call.1} parent=1 // pred_fallthru
      _
    // Predicated region
    $region6: #{tpu_custom_call.1} parent=1 // pred_check
      _
    $region7: #{tpu_custom_call.1} parent=1 // pred_check_branch
      %32 = sbr.rel (0) target = $region9
    $region8: #{tpu_custom_call.1} parent=1 // pred_region
      %s34 = ssub.s32 128, 128
      %35 = vsyncadd [#allocation6], %s34
      %s37 = sshll.u32 [#allocation5], 4
      %s38 = int_to_ptr.vmem [resolvable:$true] %s37
      %40 = dma.hbm_to_vmem [thread:$0]  %s1, 128, %s38, [#allocation6]
    $region9: #{tpu_custom_call.1} parent=1 // pred_fallthru
      _
    // Predicated region
    $region10: #{tpu_custom_call.1} parent=1 // pred_check
      _
    $region11: #{tpu_custom_call.1} parent=1 // pred_check_branch
      %42 = sbr.rel (0) target = $region13
    $region12: #{tpu_custom_call.1} parent=1 // pred_region
      _
    $region13: #{tpu_custom_call.1} parent=1 // pred_fallthru
      _
    // Predicated region
    $region14: #{tpu_custom_call.1} parent=1 // pred_check
      _
    $region15: #{tpu_custom_call.1} parent=1 // pred_check_branch
      %44 = sbr.rel (0) target = $region17
    $region16: #{tpu_custom_call.1} parent=1 // pred_region
      %s46 = ssub.s32 1024, 1024
      %47 = vsyncadd [#allocation6], %s46
      %s48 = sshll.u32 [#allocation7], 4
      %s49 = int_to_ptr.vmem [resolvable:$true] %s48
      %54 = dma.hbm_to_vmem [thread:$0]  %s3, 1024, %s49, [#allocation6], 256, 256, 16
    $region17: #{tpu_custom_call.1} parent=1 // pred_fallthru
      _
    // Predicated region
    $region18: #{tpu_custom_call.1} parent=1 // pred_check
      _
    $region19: #{tpu_custom_call.1} parent=1 // pred_check_branch
      %56 = sbr.rel (0) target = $region21
    $region20: #{tpu_custom_call.1} parent=1 // pred_region
      _
    $region21: #{tpu_custom_call.1} parent=1 // pred_fallthru
      _
    // Predicated region
    $region22: #{tpu_custom_call.1} parent=1 // pred_check
      _
    $region23: #{tpu_custom_call.1} parent=1 // pred_check_branch
      %58 = sbr.rel (0) target = $region25
    $region24: #{tpu_custom_call.1} parent=1 // pred_region
      %s60 = ssub.s32 8192, 8192
      %61 = vsyncadd [#allocation9], %s60
      %s62 = sshll.u32 [#allocation8], 4
      %s63 = int_to_ptr.vmem [resolvable:$true] %s62
      %68 = dma.hbm_to_vmem [thread:$0]  %s5, 8192, %s63, [#allocation9], 128, 128, 8
    $region25: #{tpu_custom_call.1} parent=1 // pred_fallthru
      _
    // Predicated region
    $region26: #{tpu_custom_call.1} parent=1 // pred_check
      _
    $region27: #{tpu_custom_call.1} parent=1 // pred_check_branch
      %70 = sbr.rel (0) target = $region29
    $region28: #{tpu_custom_call.1} parent=1 // pred_region
      _
    $region29: #{tpu_custom_call.1} parent=1 // pred_fallthru
      _
    // Predicated region
    $region30: #{tpu_custom_call.1} parent=1 // pred_check
      _
    $region31: #{tpu_custom_call.1} parent=1 // pred_check_branch
      %72 = sbr.rel (0) target = $region33
    $region32: #{tpu_custom_call.1} parent=1 // pred_region
      %s74 = ssub.s32 16384, 16384
      %75 = vsyncadd [#allocation9], %s74
      %s76 = sshll.u32 [#allocation10], 4
      %s77 = int_to_ptr.vmem [resolvable:$true] %s76
      %82 = dma.hbm_to_vmem [thread:$0]  %s7, 16384, %s77, [#allocation9], 1024, 1024, 64
    $region33: #{tpu_custom_call.1} parent=1 // pred_fallthru
      _
    // Predicated region
    $region34: #{tpu_custom_call.1} parent=1 // pred_check
      _
    $region35: #{tpu_custom_call.1} parent=1 // pred_check_branch
      %84 = sbr.rel (0) target = $region37
    $region36: #{tpu_custom_call.1} parent=1 // pred_region
      _
    $region37: #{tpu_custom_call.1} parent=1 // pred_fallthru
      _
    // Predicated region
    $region38: #{tpu_custom_call.1} parent=1 // pred_check
      _
    $region39: #{tpu_custom_call.1} parent=1 // pred_check_branch
      %86 = sbr.rel (0) target = $region41
    $region40: #{tpu_custom_call.1} parent=1 // pred_region
      %s88 = ssub.s32 16384, 16384
      %89 = vsyncadd [#allocation12], %s88
      %s90 = sshll.u32 [#allocation11], 4
      %s91 = int_to_ptr.vmem [resolvable:$true] %s90
      %96 = dma.hbm_to_vmem [thread:$0]  %s9, 16384, %s91, [#allocation12], 64, 64, 4
    $region41: #{tpu_custom_call.1} parent=1 // pred_fallthru
      _
    // Predicated region
    $region42: #{tpu_custom_call.1} parent=1 // pred_check
      _
    $region43: #{tpu_custom_call.1} parent=1 // pred_check_branch
      %98 = sbr.rel (0) target = $region45
    $region44: #{tpu_custom_call.1} parent=1 // pred_region
      _
    $region45: #{tpu_custom_call.1} parent=1 // pred_fallthru
      _
    // Predicated region
    $region46: #{tpu_custom_call.1} parent=1 // pred_check
      _
    $region47: #{tpu_custom_call.1} parent=1 // pred_check_branch
      %100 = sbr.rel (0) target = $region49
    $region48: #{tpu_custom_call.1} parent=1 // pred_region
      %101 = dma.done [#allocation3], 128
    $region49: #{tpu_custom_call.1} parent=1 // pred_fallthru
      _
    // Predicated region
    $region50: #{tpu_custom_call.1} parent=1 // pred_check
      _
    $region51: #{tpu_custom_call.1} parent=1 // pred_check_branch
      %103 = sbr.rel (0) target = $region53
    $region52: #{tpu_custom_call.1} parent=1 // pred_region
      %104 = dma.done [#allocation6], 128
    $region53: #{tpu_custom_call.1} parent=1 // pred_fallthru
      _
    // Predicated region
    $region54: #{tpu_custom_call.1} parent=1 // pred_check
      _
    $region55: #{tpu_custom_call.1} parent=1 // pred_check_branch
      %106 = sbr.rel (0) target = $region57
    $region56: #{tpu_custom_call.1} parent=1 // pred_region
      %107 = dma.done [#allocation6], 1024
    $region57: #{tpu_custom_call.1} parent=1 // pred_fallthru
      _
    // Predicated region
    $region58: #{tpu_custom_call.1} parent=1 // pred_check
      _
    $region59: #{tpu_custom_call.1} parent=1 // pred_check_branch
      %109 = sbr.rel (0) target = $region61
    $region60: #{tpu_custom_call.1} parent=1 // pred_region
      %110 = dma.done [#allocation9], 8192
    $region61: #{tpu_custom_call.1} parent=1 // pred_fallthru
      _
    // Predicated region
    $region62: #{tpu_custom_call.1} parent=1 // pred_check
      _
    $region63: #{tpu_custom_call.1} parent=1 // pred_check_branch
      %112 = sbr.rel (0) target = $region65
    $region64: #{tpu_custom_call.1} parent=1 // pred_region
      %113 = dma.done [#allocation9], 16384
    $region65: #{tpu_custom_call.1} parent=1 // pred_fallthru
      _
    // Predicated region
    $region66: #{tpu_custom_call.1} parent=1 // pred_check
      _
    $region67: #{tpu_custom_call.1} parent=1 // pred_check_branch
      %115 = sbr.rel (0) target = $region69
    $region68: #{tpu_custom_call.1} parent=1 // pred_region
      %116 = dma.done [#allocation12], 16384
    $region69: #{tpu_custom_call.1} parent=1 // pred_fallthru
      _
    %v118 = vld [vmem:[#allocation2] sm:$0xff]
    %v119 = vpack.c.bf16 %v118, %v118
    %v120 = vld [vmem:[#allocation7] sm:$0xff]
    %v121 = vld [vmem:[#allocation7 + $0x8] sm:$0xff]
    %v122 = vld [vmem:[#allocation7 + $0x10] sm:$0xff]
    %v123 = vld [vmem:[#allocation7 + $0x18] sm:$0xff]
    %v124 = vld [vmem:[#allocation7 + $0x20] sm:$0xff]
    %v125 = vld [vmem:[#allocation7 + $0x28] sm:$0xff]
    %v126 = vld [vmem:[#allocation7 + $0x30] sm:$0xff]
    %v127 = vld [vmem:[#allocation7 + $0x38] sm:$0xff]
    %v128 = vld [vmem:[%s4] sm:$0xf]
    %v130 = vlaneseq
    %v131 = vshrl.u32 %v130, 7
    %v132 = vsub.s32 0, %v131
    %v133 = vrot.slane %v128, %v132
    %v134 = vlaneseq
    %v135 = vshrl.u32 %v134, 7
    %v136 = vsub.s32 1, %v135
    %v137 = vrot.slane %v128, %v136
    %v138 = vlaneseq
    %v139 = vshrl.u32 %v138, 7
    %v140 = vsub.s32 2, %v139
    %v141 = vrot.slane %v128, %v140
    %v142 = vlaneseq
    %v143 = vshrl.u32 %v142, 7
    %v144 = vsub.s32 3, %v143
    %v145 = vrot.slane %v128, %v144
    %v158 = vunpack.c.l.b16 %v120
    %v159 = vunpack.c.h.b16 %v120
    %v160 = vunpack.c.l.b16 %v121
    %v161 = vunpack.c.h.b16 %v121
    %v162 = vunpack.c.l.b16 %v122
    %v163 = vunpack.c.h.b16 %v122
    %v164 = vunpack.c.l.b16 %v123
    %v165 = vunpack.c.h.b16 %v123
    %v166 = vunpack.c.l.b16 %v124
    %v167 = vunpack.c.h.b16 %v124
    %v168 = vunpack.c.l.b16 %v125
    %v169 = vunpack.c.h.b16 %v125
    %v170 = vunpack.c.l.b16 %v126
    %v171 = vunpack.c.h.b16 %v126
    %v172 = vunpack.c.l.b16 %v127
    %v173 = vunpack.c.h.b16 %v127
    %v174 = vpack.c.b16 %v162, %v158
    %v175 = vpack.c.b16 %v163, %v159
    %v176 = vpack.c.b16 %v164, %v160
    %v177 = vpack.c.b16 %v165, %v161
    %v178 = vpack.c.b16 %v170, %v166
    %v179 = vpack.c.b16 %v171, %v167
    %v180 = vpack.c.b16 %v172, %v168
    %v181 = vpack.c.b16 %v173, %v169
    %vm190 = vcmask 261120
    %v192 = vsel %vm190, %v119, 0
    %194 = vmatprep.subr.bf16.mxu0 %v175
    %195 = vmatpush1.bf16.msra.mxu0 %v174
    %196 = vmatprep.subr.bf16.mxu0 %v179
    %197 = vmatpush1.bf16.msra.mxu0 %v178
    %198 = vmatprep.subr.bf16.mxu0 0
    %199 = vmatpush1.bf16.msra.mxu0 0
    %200 = vmatprep.subr.bf16.mxu0 0
    %201 = vmatpush1.bf16.msra.mxu0 0
    %202 = vmatprep.subr.bf16.mxu0 0
    %203 = vmatpush1.bf16.msra.mxu0 0
    %204 = vmatprep.subr.bf16.mxu0 0
    %205 = vmatpush1.bf16.msra.mxu0 0
    %206 = vmatprep.subr.bf16.mxu0 0
    %207 = vmatpush1.bf16.msra.mxu0 0
    %208 = vmatprep.subr.bf16.mxu0 0
    %209 = vmatpush1.bf16.msra.mxu0 0
    %210 = vmatprep.subr.bf16.mxu0 0
    %211 = vmatpush1.bf16.msra.mxu0 0
    %212 = vmatprep.subr.bf16.mxu0 0
    %213 = vmatpush1.bf16.msra.mxu0 0
    %214 = vmatprep.subr.bf16.mxu0 0
    %215 = vmatpush1.bf16.msra.mxu0 0
    %216 = vmatprep.subr.bf16.mxu0 0
    %217 = vmatpush1.bf16.msra.mxu0 0
    %218 = vmatprep.subr.bf16.mxu0 0
    %219 = vmatpush1.bf16.msra.mxu0 0
    %220 = vmatprep.subr.bf16.mxu0 0
    %221 = vmatpush1.bf16.msra.mxu0 0
    %222 = vmatprep.subr.bf16.mxu0 0
    %223 = vmatpush1.bf16.msra.mxu0 0
    %224 = vmatprep.subr.bf16.mxu0 0
    %225 = vmatpush1.bf16.msra.mxu0 0
    %226 = vmatprep.mubr.bf16.mxu0 0
    %227 = vmatmul.mubr.bf16.gmra.mrb[0].mxu0 %v192
    %v228 = vpop.f32.mrb[0].mxu0
    %v229 = vadd.f32 %v133, %v228
    %v230 = vpop.f32.mrb[0].mxu0
    %v231 = vadd.f32 %v137, %v230
    %v232 = vpop.f32.mrb[0].mxu0
    %v233 = vpop.f32.mrb[0].mxu0
    %234 = vdwg.mxu0
    %235 = vmatprep.subr.bf16.mxu0 %v177
    %236 = vmatpush1.bf16.msra.mxu0 %v176
    %237 = vmatprep.subr.bf16.mxu0 %v181
    %238 = vmatpush1.bf16.msra.mxu0 %v180
    %239 = vmatprep.subr.bf16.mxu0 0
    %240 = vmatpush1.bf16.msra.mxu0 0
    %241 = vmatprep.subr.bf16.mxu0 0
    %242 = vmatpush1.bf16.msra.mxu0 0
    %243 = vmatprep.subr.bf16.mxu0 0
    %244 = vmatpush1.bf16.msra.mxu0 0
    %245 = vmatprep.subr.bf16.mxu0 0
    %246 = vmatpush1.bf16.msra.mxu0 0
    %247 = vmatprep.subr.bf16.mxu0 0
    %248 = vmatpush1.bf16.msra.mxu0 0
    %249 = vmatprep.subr.bf16.mxu0 0
    %250 = vmatpush1.bf16.msra.mxu0 0
    %251 = vmatprep.subr.bf16.mxu0 0
    %252 = vmatpush1.bf16.msra.mxu0 0
    %253 = vmatprep.subr.bf16.mxu0 0
    %254 = vmatpush1.bf16.msra.mxu0 0
    %255 = vmatprep.subr.bf16.mxu0 0
    %256 = vmatpush1.bf16.msra.mxu0 0
    %257 = vmatprep.subr.bf16.mxu0 0
    %258 = vmatpush1.bf16.msra.mxu0 0
    %259 = vmatprep.subr.bf16.mxu0 0
    %260 = vmatpush1.bf16.msra.mxu0 0
    %261 = vmatprep.subr.bf16.mxu0 0
    %262 = vmatpush1.bf16.msra.mxu0 0
    %263 = vmatprep.subr.bf16.mxu0 0
    %264 = vmatpush1.bf16.msra.mxu0 0
    %265 = vmatprep.subr.bf16.mxu0 0
    %266 = vmatpush1.bf16.msra.mxu0 0
    %267 = vmatprep.mubr.bf16.mxu0 0
    %268 = vmatmul.mubr.bf16.gmra.mrb[0].mxu0 %v192
    %v269 = vpop.f32.mrb[0].mxu0
    %v270 = vadd.f32 %v141, %v269
    %v271 = vpop.f32.mrb[0].mxu0
    %v272 = vadd.f32 %v145, %v271
    %v273 = vpop.f32.mrb[0].mxu0
    %v274 = vpop.f32.mrb[0].mxu0
    %275 = vdwg.mxu0
    %v276 = vmax.f32 %v229, 0.0
    %v277 = vmax.f32 %v231, 0.0
    %v278 = vmax.f32 %v270, 0.0
    %v279 = vmax.f32 %v272, 0.0
    %v280 = vpack.c.bf16 %v276, %v276
    %v281 = vpack.c.bf16 %v277, %v277
    %v282 = vpack.c.bf16 %v278, %v278
    %v283 = vpack.c.bf16 %v279, %v279
    %v284 = vld [vmem:[#allocation8] sm:$0xff]
    %v285 = vld [vmem:[#allocation8 + $0x8] sm:$0xff]
    %v286 = vld [vmem:[#allocation8 + $0x10] sm:$0xff]
    %v287 = vld [vmem:[#allocation8 + $0x18] sm:$0xff]
    %v288 = vld [vmem:[#allocation8 + $0x20] sm:$0xff]
    %v289 = vld [vmem:[#allocation8 + $0x28] sm:$0xff]
    %v290 = vld [vmem:[#allocation8 + $0x30] sm:$0xff]
    %v291 = vld [vmem:[#allocation8 + $0x38] sm:$0xff]
    %v292 = vld [vmem:[#allocation8 + $0x40] sm:$0xff]
    %v293 = vld [vmem:[#allocation8 + $0x48] sm:$0xff]
    %v294 = vld [vmem:[#allocation8 + $0x50] sm:$0xff]
    %v295 = vld [vmem:[#allocation8 + $0x58] sm:$0xff]
    %v296 = vld [vmem:[#allocation8 + $0x60] sm:$0xff]
    %v297 = vld [vmem:[#allocation8 + $0x68] sm:$0xff]
    %v298 = vld [vmem:[#allocation8 + $0x70] sm:$0xff]
    %v299 = vld [vmem:[#allocation8 + $0x78] sm:$0xff]
    %v300 = vld [vmem:[#allocation8 + $0x80] sm:$0xff]
    %v301 = vld [vmem:[#allocation8 + $0x88] sm:$0xff]
    %v302 = vld [vmem:[#allocation8 + $0x90] sm:$0xff]
    %v303 = vld [vmem:[#allocation8 + $0x98] sm:$0xff]
    %v304 = vld [vmem:[#allocation8 + $0xa0] sm:$0xff]
    %v305 = vld [vmem:[#allocation8 + $0xa8] sm:$0xff]
    %v306 = vld [vmem:[#allocation8 + $0xb0] sm:$0xff]
    %v307 = vld [vmem:[#allocation8 + $0xb8] sm:$0xff]
    %v308 = vld [vmem:[#allocation8 + $0xc0] sm:$0xff]
    %v309 = vld [vmem:[#allocation8 + $0xc8] sm:$0xff]
    %v310 = vld [vmem:[#allocation8 + $0xd0] sm:$0xff]
    %v311 = vld [vmem:[#allocation8 + $0xd8] sm:$0xff]
    %v312 = vld [vmem:[#allocation8 + $0xe0] sm:$0xff]
    %v313 = vld [vmem:[#allocation8 + $0xe8] sm:$0xff]
    %v314 = vld [vmem:[#allocation8 + $0xf0] sm:$0xff]
    %v315 = vld [vmem:[#allocation8 + $0xf8] sm:$0xff]
    %v316 = vld [vmem:[#allocation8 + $0x100] sm:$0xff]
    %v317 = vld [vmem:[#allocation8 + $0x108] sm:$0xff]
    %v318 = vld [vmem:[#allocation8 + $0x110] sm:$0xff]
    %v319 = vld [vmem:[#allocation8 + $0x118] sm:$0xff]
    %v320 = vld [vmem:[#allocation8 + $0x120] sm:$0xff]
    %v321 = vld [vmem:[#allocation8 + $0x128] sm:$0xff]
    %v322 = vld [vmem:[#allocation8 + $0x130] sm:$0xff]
    %v323 = vld [vmem:[#allocation8 + $0x138] sm:$0xff]
    %v324 = vld [vmem:[#allocation8 + $0x140] sm:$0xff]
    %v325 = vld [vmem:[#allocation8 + $0x148] sm:$0xff]
    %v326 = vld [vmem:[#allocation8 + $0x150] sm:$0xff]
    %v327 = vld [vmem:[#allocation8 + $0x158] sm:$0xff]
    %v328 = vld [vmem:[#allocation8 + $0x160] sm:$0xff]
    %v329 = vld [vmem:[#allocation8 + $0x168] sm:$0xff]
    %v330 = vld [vmem:[#allocation8 + $0x170] sm:$0xff]
    %v331 = vld [vmem:[#allocation8 + $0x178] sm:$0xff]
    %v332 = vld [vmem:[#allocation8 + $0x180] sm:$0xff]
    %v333 = vld [vmem:[#allocation8 + $0x188] sm:$0xff]
    %v334 = vld [vmem:[#allocation8 + $0x190] sm:$0xff]
    %v335 = vld [vmem:[#allocation8 + $0x198] sm:$0xff]
    %v336 = vld [vmem:[#allocation8 + $0x1a0] sm:$0xff]
    %v337 = vld [vmem:[#allocation8 + $0x1a8] sm:$0xff]
    %v338 = vld [vmem:[#allocation8 + $0x1b0] sm:$0xff]
    %v339 = vld [vmem:[#allocation8 + $0x1b8] sm:$0xff]
    %v340 = vld [vmem:[#allocation8 + $0x1c0] sm:$0xff]
    %v341 = vld [vmem:[#allocation8 + $0x1c8] sm:$0xff]
    %v342 = vld [vmem:[#allocation8 + $0x1d0] sm:$0xff]
    %v343 = vld [vmem:[#allocation8 + $0x1d8] sm:$0xff]
    %v344 = vld [vmem:[#allocation8 + $0x1e0] sm:$0xff]
    %v345 = vld [vmem:[#allocation8 + $0x1e8] sm:$0xff]
    %v346 = vld [vmem:[#allocation8 + $0x1f0] sm:$0xff]
    %v347 = vld [vmem:[#allocation8 + $0x1f8] sm:$0xff]
    %v348 = vld [vmem:[%s6] sm:$0x3]
    %v350 = vlaneseq
    %v351 = vshrl.u32 %v350, 7
    %v352 = vsub.s32 0, %v351
    %v353 = vrot.slane %v348, %v352
    %v354 = vlaneseq
    %v355 = vshrl.u32 %v354, 7
    %v356 = vsub.s32 1, %v355
    %v357 = vrot.slane %v348, %v356
    %v424 = vunpack.c.l.b16 %v284
    %v425 = vunpack.c.h.b16 %v284
    %v426 = vunpack.c.l.b16 %v285
    %v427 = vunpack.c.h.b16 %v285
    %v428 = vunpack.c.l.b16 %v286
    %v429 = vunpack.c.h.b16 %v286
    %v430 = vunpack.c.l.b16 %v287
    %v431 = vunpack.c.h.b16 %v287
    %v432 = vunpack.c.l.b16 %v288
    %v433 = vunpack.c.h.b16 %v288
    %v434 = vunpack.c.l.b16 %v289
    %v435 = vunpack.c.h.b16 %v289
    %v436 = vunpack.c.l.b16 %v290
    %v437 = vunpack.c.h.b16 %v290
    %v438 = vunpack.c.l.b16 %v291
    %v439 = vunpack.c.h.b16 %v291
    %v440 = vunpack.c.l.b16 %v292
    %v441 = vunpack.c.h.b16 %v292
    %v442 = vunpack.c.l.b16 %v293
    %v443 = vunpack.c.h.b16 %v293
    %v444 = vunpack.c.l.b16 %v294
    %v445 = vunpack.c.h.b16 %v294
    %v446 = vunpack.c.l.b16 %v295
    %v447 = vunpack.c.h.b16 %v295
    %v448 = vunpack.c.l.b16 %v296
    %v449 = vunpack.c.h.b16 %v296
    %v450 = vunpack.c.l.b16 %v297
    %v451 = vunpack.c.h.b16 %v297
    %v452 = vunpack.c.l.b16 %v298
    %v453 = vunpack.c.h.b16 %v298
    %v454 = vunpack.c.l.b16 %v299
    %v455 = vunpack.c.h.b16 %v299
    %v456 = vunpack.c.l.b16 %v300
    %v457 = vunpack.c.h.b16 %v300
    %v458 = vunpack.c.l.b16 %v301
    %v459 = vunpack.c.h.b16 %v301
    %v460 = vunpack.c.l.b16 %v302
    %v461 = vunpack.c.h.b16 %v302
    %v462 = vunpack.c.l.b16 %v303
    %v463 = vunpack.c.h.b16 %v303
    %v464 = vunpack.c.l.b16 %v304
    %v465 = vunpack.c.h.b16 %v304
    %v466 = vunpack.c.l.b16 %v305
    %v467 = vunpack.c.h.b16 %v305
    %v468 = vunpack.c.l.b16 %v306
    %v469 = vunpack.c.h.b16 %v306
    %v470 = vunpack.c.l.b16 %v307
    %v471 = vunpack.c.h.b16 %v307
    %v472 = vunpack.c.l.b16 %v308
    %v473 = vunpack.c.h.b16 %v308
    %v474 = vunpack.c.l.b16 %v309
    %v475 = vunpack.c.h.b16 %v309
    %v476 = vunpack.c.l.b16 %v310
    %v477 = vunpack.c.h.b16 %v310
    %v478 = vunpack.c.l.b16 %v311
    %v479 = vunpack.c.h.b16 %v311
    %v480 = vunpack.c.l.b16 %v312
    %v481 = vunpack.c.h.b16 %v312
    %v482 = vunpack.c.l.b16 %v313
    %v483 = vunpack.c.h.b16 %v313
    %v484 = vunpack.c.l.b16 %v314
    %v485 = vunpack.c.h.b16 %v314
    %v486 = vunpack.c.l.b16 %v315
    %v487 = vunpack.c.h.b16 %v315
    %v488 = vunpack.c.l.b16 %v316
    %v489 = vunpack.c.h.b16 %v316
    %v490 = vunpack.c.l.b16 %v317
    %v491 = vunpack.c.h.b16 %v317
    %v492 = vunpack.c.l.b16 %v318
    %v493 = vunpack.c.h.b16 %v318
    %v494 = vunpack.c.l.b16 %v319
    %v495 = vunpack.c.h.b16 %v319
    %v496 = vunpack.c.l.b16 %v320
    %v497 = vunpack.c.h.b16 %v320
    %v498 = vunpack.c.l.b16 %v321
    %v499 = vunpack.c.h.b16 %v321
    %v500 = vunpack.c.l.b16 %v322
    %v501 = vunpack.c.h.b16 %v322
    %v502 = vunpack.c.l.b16 %v323
    %v503 = vunpack.c.h.b16 %v323
    %v504 = vunpack.c.l.b16 %v324
    %v505 = vunpack.c.h.b16 %v324
    %v506 = vunpack.c.l.b16 %v325
    %v507 = vunpack.c.h.b16 %v325
    %v508 = vunpack.c.l.b16 %v326
    %v509 = vunpack.c.h.b16 %v326
    %v510 = vunpack.c.l.b16 %v327
    %v511 = vunpack.c.h.b16 %v327
    %v512 = vunpack.c.l.b16 %v328
    %v513 = vunpack.c.h.b16 %v328
    %v514 = vunpack.c.l.b16 %v329
    %v515 = vunpack.c.h.b16 %v329
    %v516 = vunpack.c.l.b16 %v330
    %v517 = vunpack.c.h.b16 %v330
    %v518 = vunpack.c.l.b16 %v331
    %v519 = vunpack.c.h.b16 %v331
    %v520 = vunpack.c.l.b16 %v332
    %v521 = vunpack.c.h.b16 %v332
    %v522 = vunpack.c.l.b16 %v333
    %v523 = vunpack.c.h.b16 %v333
    %v524 = vunpack.c.l.b16 %v334
    %v525 = vunpack.c.h.b16 %v334
    %v526 = vunpack.c.l.b16 %v335
    %v527 = vunpack.c.h.b16 %v335
    %v528 = vunpack.c.l.b16 %v336
    %v529 = vunpack.c.h.b16 %v336
    %v530 = vunpack.c.l.b16 %v337
    %v531 = vunpack.c.h.b16 %v337
    %v532 = vunpack.c.l.b16 %v338
    %v533 = vunpack.c.h.b16 %v338
    %v534 = vunpack.c.l.b16 %v339
    %v535 = vunpack.c.h.b16 %v339
    %v536 = vunpack.c.l.b16 %v340
    %v537 = vunpack.c.h.b16 %v340
    %v538 = vunpack.c.l.b16 %v341
    %v539 = vunpack.c.h.b16 %v341
    %v540 = vunpack.c.l.b16 %v342
    %v541 = vunpack.c.h.b16 %v342
    %v542 = vunpack.c.l.b16 %v343
    %v543 = vunpack.c.h.b16 %v343
    %v544 = vunpack.c.l.b16 %v344
    %v545 = vunpack.c.h.b16 %v344
    %v546 = vunpack.c.l.b16 %v345
    %v547 = vunpack.c.h.b16 %v345
    %v548 = vunpack.c.l.b16 %v346
    %v549 = vunpack.c.h.b16 %v346
    %v550 = vunpack.c.l.b16 %v347
    %v551 = vunpack.c.h.b16 %v347
    %v552 = vpack.c.b16 %v426, %v424
    %v553 = vpack.c.b16 %v427, %v425
    %v554 = vpack.c.b16 %v430, %v428
    %v555 = vpack.c.b16 %v431, %v429
    %v556 = vpack.c.b16 %v434, %v432
    %v557 = vpack.c.b16 %v435, %v433
    %v558 = vpack.c.b16 %v438, %v436
    %v559 = vpack.c.b16 %v439, %v437
    %v560 = vpack.c.b16 %v442, %v440
    %v561 = vpack.c.b16 %v443, %v441
    %v562 = vpack.c.b16 %v446, %v444
    %v563 = vpack.c.b16 %v447, %v445
    %v564 = vpack.c.b16 %v450, %v448
    %v565 = vpack.c.b16 %v451, %v449
    %v566 = vpack.c.b16 %v454, %v452
    %v567 = vpack.c.b16 %v455, %v453
    %v568 = vpack.c.b16 %v458, %v456
    %v569 = vpack.c.b16 %v459, %v457
    %v570 = vpack.c.b16 %v462, %v460
    %v571 = vpack.c.b16 %v463, %v461
    %v572 = vpack.c.b16 %v466, %v464
    %v573 = vpack.c.b16 %v467, %v465
    %v574 = vpack.c.b16 %v470, %v468
    %v575 = vpack.c.b16 %v471, %v469
    %v576 = vpack.c.b16 %v474, %v472
    %v577 = vpack.c.b16 %v475, %v473
    %v578 = vpack.c.b16 %v478, %v476
    %v579 = vpack.c.b16 %v479, %v477
    %v580 = vpack.c.b16 %v482, %v480
    %v581 = vpack.c.b16 %v483, %v481
    %v582 = vpack.c.b16 %v486, %v484
    %v583 = vpack.c.b16 %v487, %v485
    %v584 = vpack.c.b16 %v490, %v488
    %v585 = vpack.c.b16 %v491, %v489
    %v586 = vpack.c.b16 %v494, %v492
    %v587 = vpack.c.b16 %v495, %v493
    %v588 = vpack.c.b16 %v498, %v496
    %v589 = vpack.c.b16 %v499, %v497
    %v590 = vpack.c.b16 %v502, %v500
    %v591 = vpack.c.b16 %v503, %v501
    %v592 = vpack.c.b16 %v506, %v504
    %v593 = vpack.c.b16 %v507, %v505
    %v594 = vpack.c.b16 %v510, %v508
    %v595 = vpack.c.b16 %v511, %v509
    %v596 = vpack.c.b16 %v514, %v512
    %v597 = vpack.c.b16 %v515, %v513
    %v598 = vpack.c.b16 %v518, %v516
    %v599 = vpack.c.b16 %v519, %v517
    %v600 = vpack.c.b16 %v522, %v520
    %v601 = vpack.c.b16 %v523, %v521
    %v602 = vpack.c.b16 %v526, %v524
    %v603 = vpack.c.b16 %v527, %v525
    %v604 = vpack.c.b16 %v530, %v528
    %v605 = vpack.c.b16 %v531, %v529
    %v606 = vpack.c.b16 %v534, %v532
    %v607 = vpack.c.b16 %v535, %v533
    %v608 = vpack.c.b16 %v538, %v536
    %v609 = vpack.c.b16 %v539, %v537
    %v610 = vpack.c.b16 %v542, %v540
    %v611 = vpack.c.b16 %v543, %v541
    %v612 = vpack.c.b16 %v546, %v544
    %v613 = vpack.c.b16 %v547, %v545
    %v614 = vpack.c.b16 %v550, %v548
    %v615 = vpack.c.b16 %v551, %v549
    %680 = vmatprep.subr.bf16.mxu0 %v553
    %681 = vmatpush1.bf16.msra.mxu0 %v552
    %682 = vmatprep.subr.bf16.mxu0 %v555
    %683 = vmatpush1.bf16.msra.mxu0 %v554
    %684 = vmatprep.subr.bf16.mxu0 %v557
    %685 = vmatpush1.bf16.msra.mxu0 %v556
    %686 = vmatprep.subr.bf16.mxu0 %v559
    %687 = vmatpush1.bf16.msra.mxu0 %v558
    %688 = vmatprep.subr.bf16.mxu0 %v561
    %689 = vmatpush1.bf16.msra.mxu0 %v560
    %690 = vmatprep.subr.bf16.mxu0 %v563
    %691 = vmatpush1.bf16.msra.mxu0 %v562
    %692 = vmatprep.subr.bf16.mxu0 %v565
    %693 = vmatpush1.bf16.msra.mxu0 %v564
    %694 = vmatprep.subr.bf16.mxu0 %v567
    %695 = vmatpush1.bf16.msra.mxu0 %v566
    %696 = vmatprep.subr.bf16.mxu0 %v569
    %697 = vmatpush1.bf16.msra.mxu0 %v568
    %698 = vmatprep.subr.bf16.mxu0 %v571
    %699 = vmatpush1.bf16.msra.mxu0 %v570
    %700 = vmatprep.subr.bf16.mxu0 %v573
    %701 = vmatpush1.bf16.msra.mxu0 %v572
    %702 = vmatprep.subr.bf16.mxu0 %v575
    %703 = vmatpush1.bf16.msra.mxu0 %v574
    %704 = vmatprep.subr.bf16.mxu0 %v577
    %705 = vmatpush1.bf16.msra.mxu0 %v576
    %706 = vmatprep.subr.bf16.mxu0 %v579
    %707 = vmatpush1.bf16.msra.mxu0 %v578
    %708 = vmatprep.subr.bf16.mxu0 %v581
    %709 = vmatpush1.bf16.msra.mxu0 %v580
    %710 = vmatprep.subr.bf16.mxu0 %v583
    %711 = vmatpush1.bf16.msra.mxu0 %v582
    %712 = vmatprep.mubr.bf16.mxu0 %v281
    %713 = vmatmul.mubr.bf16.gmra.mrb[0].mxu0 %v280
    %v714 = vpop.f32.mrb[0].mxu0
    %v715 = vadd.f32 %v353, %v714
    %v716 = vpop.f32.mrb[0].mxu0
    %v717 = vadd.f32 %v357, %v716
    %v718 = vpop.f32.mrb[0].mxu0
    %v719 = vpop.f32.mrb[0].mxu0
    %720 = vdwg.mxu0
    %721 = vmatprep.subr.bf16.mxu0 %v585
    %722 = vmatpush1.bf16.msra.mxu0 %v584
    %723 = vmatprep.subr.bf16.mxu0 %v587
    %724 = vmatpush1.bf16.msra.mxu0 %v586
    %725 = vmatprep.subr.bf16.mxu0 %v589
    %726 = vmatpush1.bf16.msra.mxu0 %v588
    %727 = vmatprep.subr.bf16.mxu0 %v591
    %728 = vmatpush1.bf16.msra.mxu0 %v590
    %729 = vmatprep.subr.bf16.mxu0 %v593
    %730 = vmatpush1.bf16.msra.mxu0 %v592
    %731 = vmatprep.subr.bf16.mxu0 %v595
    %732 = vmatpush1.bf16.msra.mxu0 %v594
    %733 = vmatprep.subr.bf16.mxu0 %v597
    %734 = vmatpush1.bf16.msra.mxu0 %v596
    %735 = vmatprep.subr.bf16.mxu0 %v599
    %736 = vmatpush1.bf16.msra.mxu0 %v598
    %737 = vmatprep.subr.bf16.mxu0 %v601
    %738 = vmatpush1.bf16.msra.mxu0 %v600
    %739 = vmatprep.subr.bf16.mxu0 %v603
    %740 = vmatpush1.bf16.msra.mxu0 %v602
    %741 = vmatprep.subr.bf16.mxu0 %v605
    %742 = vmatpush1.bf16.msra.mxu0 %v604
    %743 = vmatprep.subr.bf16.mxu0 %v607
    %744 = vmatpush1.bf16.msra.mxu0 %v606
    %745 = vmatprep.subr.bf16.mxu0 %v609
    %746 = vmatpush1.bf16.msra.mxu0 %v608
    %747 = vmatprep.subr.bf16.mxu0 %v611
    %748 = vmatpush1.bf16.msra.mxu0 %v610
    %749 = vmatprep.subr.bf16.mxu0 %v613
    %750 = vmatpush1.bf16.msra.mxu0 %v612
    %751 = vmatprep.subr.bf16.mxu0 %v615
    %752 = vmatpush1.bf16.msra.mxu0 %v614
    %753 = vmatprep.mubr.bf16.mxu0 %v283
    %754 = vmatmul.mubr.bf16.gmra.mrb[0].mxu0 %v282
    %v755 = vpop.f32.mrb[0].mxu0
    %v756 = vadd.f32 %v715, %v755
    %v757 = vpop.f32.mrb[0].mxu0
    %v758 = vadd.f32 %v717, %v757
    %v759 = vpop.f32.mrb[0].mxu0
    %v760 = vpop.f32.mrb[0].mxu0
    %761 = vdwg.mxu0
    %v762 = vmax.f32 %v756, 0.0
    %v763 = vmax.f32 %v758, 0.0
    %v764 = vld [vmem:[#allocation5] sm:$0xff]
    %v765 = vld [vmem:[%s2] sm:$0x1]
    %v767 = vlaneseq
    %v768 = vshrl.u32 %v767, 7
    %v769 = vsub.s32 0, %v768
    %v770 = vrot.slane %v765, %v769
    %v772 = vmul.f32 %v764, %v770
    %v773 = vand.u32 2147483647, %v772
    %vm774 = vcmp.le.f32.partialorder %v773, 0.7853982
    %vm775 = vcmp.lt.s32.totalorder %v772, 0
    %v776 = vand.u32 %v772, 2139095040
    %v777 = vshrl.u32 %v776, 23
    %v778 = vsub.s32 %v777, 127
    %v779 = vand.u32 2147483647, %v772
    %v780 = vand.u32 %v779, 8388607
    %v781 = vor.u32 %v780, 8388608
    %v782 = vsub.s32 0, %v781
    %v783 = vadd.s32 %v778, 1
    %vm784 = vcmp.gt.s32.totalorder %v783, 0
    %v785 = vsel %vm784, %v783, 0
    %v786 = vshrl.u32 %v785, 5
    %v787 = vand.u32 %v785, 31
    %v788 = vsub.s32 32, %v787
    %v789 = vshrl.u32 683565275, %v788
    %v790 = vshll.u32 683565275, %v787
    %v791 = vshrl.u32 2475754826, %v788
    %v792 = vor.u32 %v790, %v791
    %v793 = vshll.u32 2475754826, %v787
    %v794 = vshrl.u32 2131351028, %v788
    %v795 = vor.u32 %v793, %v794
    %v796 = vshll.u32 2131351028, %v787
    %v797 = vshrl.u32 2102212464, %v788
    %v798 = vor.u32 %v796, %v797
    %v799 = vshll.u32 2102212464, %v787
    %v800 = vshrl.u32 920167782, %v788
    %v801 = vor.u32 %v799, %v800
    %v802 = vshll.u32 920167782, %v787
    %v803 = vshrl.u32 1326507024, %v788
    %v804 = vor.u32 %v802, %v803
    %vm805 = vcmp.lt.s32.totalorder %v786, 1
    %vm806 = vcmp.lt.s32.totalorder %v786, 2
    %vm807 = vcmp.lt.s32.totalorder %v786, 3
    %vm808 = vcmp.lt.s32.totalorder %v786, 4
    %v809 = vsel %vm805, %v789, %v792
    %v810 = vsel %vm808, %v798, 2102212464
    %v811 = vsel %vm807, %v795, %v810
    %v812 = vsel %vm806, %v809, %v811
    %v813 = vsel %vm805, %v792, %v795
    %v814 = vsel %vm808, %v801, 920167782
    %v815 = vsel %vm807, %v798, %v814
    %v816 = vsel %vm806, %v813, %v815
    %v817 = vsel %vm805, %v795, %v798
    %v818 = vsel %vm808, %v804, 1326507024
    %v819 = vsel %vm807, %v801, %v818
    %v820 = vsel %vm806, %v817, %v819
    %v821 = vshll.u32 %v781, 8
    %v822 = vmul.u32.u64.compose %v821, %v820
    %v823 = vextract.low.u32 %v822
    %v824 = vextract.high.u32 %v822
    %v825 = vmul.u32.u64.compose %v821, %v816
    %v826 = vextract.low.u32 %v825
    %v827 = vextract.high.u32 %v825
    %v828 = vmul.u32 %v821, %v812
    %v829 = vadd.s32 %v824, %v826
    %vm830 = vc.u32 %v824, %v826
    %v831 = vadd.s32 %v827, 1
    %v832 = vsel %vm830, %v831, %v827
    %v833 = vadd.s32 %v828, %v832
    %v834 = vadd.s32 %v833, 536870912
    %v835 = vshrl.u32 %v834, 30
    %v836 = vshll.u32 %v835, 30
    %v837 = vsub.s32 %v833, %v836
    %vm838 = vcmp.lt.s32.totalorder %v837, 0
    %v839 = vsub.s32 0, %v837
    %v840 = vsel %vm838, %v839, %v837
    %v841 = vclz %v840
    %v842 = vsub.s32 %v841, 2
    %vm843 = vcmp.gt.s32.totalorder 0, %v842
    %v844 = vsel %vm843, 0, %v842
    %v845 = vsub.s32 32, %v844
    %v846 = vshll.u32 %v837, %v844
    %v847 = vshrl.u32 %v829, %v845
    %v848 = vor.u32 %v846, %v847
    %v849 = vsub.s32 4294967266, %v844
    %v850 = vadd.s32 %v849, 127
    %v851 = vshll.u32 %v850, 23
    %v852 = vor.u32 4788187, %v851
    %v853 = vand.u32 2147483647, %v852
    %v855 = vcvt.s32.f32 %v848
    %v856 = vmul.f32 %v855, %v853
    %v857 = vxor.u32 %v856, 2147483648
    %v858 = vsel %vm775, %v857, %v856
    %v859 = vsub.s32 4, %v835
    %v860 = vsel %vm775, %v859, %v835
    %v861 = vsel %vm774, %v772, %v858
    %v862 = vsel %vm774, 0, %v860
    %v863 = vcosq.f32.pop %v861
    %v864 = vsinq.f32.pop %v861
    %vm865 = vweird.f32 %v772
    %v866 = vand.u32 %v862, 3
    %vm867 = vcmp.lt.s32.totalorder %v866, 2
    %vm868 = vcmp.eq.s32.totalorder %v866, 0
    %v869 = vxor.u32 %v864, 2147483648
    %v870 = vsel %vm868, %v863, %v869
    %vm871 = vcmp.eq.s32.totalorder %v866, 2
    %v872 = vxor.u32 %v863, 2147483648
    %v873 = vsel %vm871, %v872, %v864
    %v874 = vsel %vm867, %v870, %v873
    %v875 = vsel %vm865, nan, %v874
    %v876 = vpack.c.bf16 %v875, %v875
    %v877 = vld [vmem:[#allocation10] sm:$0xff]
    %v878 = vld [vmem:[#allocation10 + $0x8] sm:$0xff]
    %v879 = vld [vmem:[#allocation10 + $0x10] sm:$0xff]
    %v880 = vld [vmem:[#allocation10 + $0x18] sm:$0xff]
    %v881 = vld [vmem:[#allocation10 + $0x20] sm:$0xff]
    %v882 = vld [vmem:[#allocation10 + $0x28] sm:$0xff]
    %v883 = vld [vmem:[#allocation10 + $0x30] sm:$0xff]
    %v884 = vld [vmem:[#allocation10 + $0x38] sm:$0xff]
    %v885 = vld [vmem:[#allocation10 + $0x40] sm:$0xff]
    %v886 = vld [vmem:[#allocation10 + $0x48] sm:$0xff]
    %v887 = vld [vmem:[#allocation10 + $0x50] sm:$0xff]
    %v888 = vld [vmem:[#allocation10 + $0x58] sm:$0xff]
    %v889 = vld [vmem:[#allocation10 + $0x60] sm:$0xff]
    %v890 = vld [vmem:[#allocation10 + $0x68] sm:$0xff]
    %v891 = vld [vmem:[#allocation10 + $0x70] sm:$0xff]
    %v892 = vld [vmem:[#allocation10 + $0x78] sm:$0xff]
    %v893 = vld [vmem:[#allocation10 + $0x80] sm:$0xff]
    %v894 = vld [vmem:[#allocation10 + $0x88] sm:$0xff]
    %v895 = vld [vmem:[#allocation10 + $0x90] sm:$0xff]
    %v896 = vld [vmem:[#allocation10 + $0x98] sm:$0xff]
    %v897 = vld [vmem:[#allocation10 + $0xa0] sm:$0xff]
    %v898 = vld [vmem:[#allocation10 + $0xa8] sm:$0xff]
    %v899 = vld [vmem:[#allocation10 + $0xb0] sm:$0xff]
    %v900 = vld [vmem:[#allocation10 + $0xb8] sm:$0xff]
    %v901 = vld [vmem:[#allocation10 + $0xc0] sm:$0xff]
    %v902 = vld [vmem:[#allocation10 + $0xc8] sm:$0xff]
    %v903 = vld [vmem:[#allocation10 + $0xd0] sm:$0xff]
    %v904 = vld [vmem:[#allocation10 + $0xd8] sm:$0xff]
    %v905 = vld [vmem:[#allocation10 + $0xe0] sm:$0xff]
    %v906 = vld [vmem:[#allocation10 + $0xe8] sm:$0xff]
    %v907 = vld [vmem:[#allocation10 + $0xf0] sm:$0xff]
    %v908 = vld [vmem:[#allocation10 + $0xf8] sm:$0xff]
    %v909 = vld [vmem:[#allocation10 + $0x100] sm:$0xff]
    %v910 = vld [vmem:[#allocation10 + $0x108] sm:$0xff]
    %v911 = vld [vmem:[#allocation10 + $0x110] sm:$0xff]
    %v912 = vld [vmem:[#allocation10 + $0x118] sm:$0xff]
    %v913 = vld [vmem:[#allocation10 + $0x120] sm:$0xff]
    %v914 = vld [vmem:[#allocation10 + $0x128] sm:$0xff]
    %v915 = vld [vmem:[#allocation10 + $0x130] sm:$0xff]
    %v916 = vld [vmem:[#allocation10 + $0x138] sm:$0xff]
    %v917 = vld [vmem:[#allocation10 + $0x140] sm:$0xff]
    %v918 = vld [vmem:[#allocation10 + $0x148] sm:$0xff]
    %v919 = vld [vmem:[#allocation10 + $0x150] sm:$0xff]
    %v920 = vld [vmem:[#allocation10 + $0x158] sm:$0xff]
    %v921 = vld [vmem:[#allocation10 + $0x160] sm:$0xff]
    %v922 = vld [vmem:[#allocation10 + $0x168] sm:$0xff]
    %v923 = vld [vmem:[#allocation10 + $0x170] sm:$0xff]
    %v924 = vld [vmem:[#allocation10 + $0x178] sm:$0xff]
    %v925 = vld [vmem:[#allocation10 + $0x180] sm:$0xff]
    %v926 = vld [vmem:[#allocation10 + $0x188] sm:$0xff]
    %v927 = vld [vmem:[#allocation10 + $0x190] sm:$0xff]
    %v928 = vld [vmem:[#allocation10 + $0x198] sm:$0xff]
    %v929 = vld [vmem:[#allocation10 + $0x1a0] sm:$0xff]
    %v930 = vld [vmem:[#allocation10 + $0x1a8] sm:$0xff]
    %v931 = vld [vmem:[#allocation10 + $0x1b0] sm:$0xff]
    %v932 = vld [vmem:[#allocation10 + $0x1b8] sm:$0xff]
    %v933 = vld [vmem:[#allocation10 + $0x1c0] sm:$0xff]
    %v934 = vld [vmem:[#allocation10 + $0x1c8] sm:$0xff]
    %v935 = vld [vmem:[#allocation10 + $0x1d0] sm:$0xff]
    %v936 = vld [vmem:[#allocation10 + $0x1d8] sm:$0xff]
    %v937 = vld [vmem:[#allocation10 + $0x1e0] sm:$0xff]
    %v938 = vld [vmem:[#allocation10 + $0x1e8] sm:$0xff]
    %v939 = vld [vmem:[#allocation10 + $0x1f0] sm:$0xff]
    %v940 = vld [vmem:[#allocation10 + $0x1f8] sm:$0xff]
    %v941 = vld [vmem:[#allocation10 + $0x200] sm:$0xff]
    %v942 = vld [vmem:[#allocation10 + $0x208] sm:$0xff]
    %v943 = vld [vmem:[#allocation10 + $0x210] sm:$0xff]
    %v944 = vld [vmem:[#allocation10 + $0x218] sm:$0xff]
    %v945 = vld [vmem:[#allocation10 + $0x220] sm:$0xff]
    %v946 = vld [vmem:[#allocation10 + $0x228] sm:$0xff]
    %v947 = vld [vmem:[#allocation10 + $0x230] sm:$0xff]
    %v948 = vld [vmem:[#allocation10 + $0x238] sm:$0xff]
    %v949 = vld [vmem:[#allocation10 + $0x240] sm:$0xff]
    %v950 = vld [vmem:[#allocation10 + $0x248] sm:$0xff]
    %v951 = vld [vmem:[#allocation10 + $0x250] sm:$0xff]
    %v952 = vld [vmem:[#allocation10 + $0x258] sm:$0xff]
    %v953 = vld [vmem:[#allocation10 + $0x260] sm:$0xff]
    %v954 = vld [vmem:[#allocation10 + $0x268] sm:$0xff]
    %v955 = vld [vmem:[#allocation10 + $0x270] sm:$0xff]
    %v956 = vld [vmem:[#allocation10 + $0x278] sm:$0xff]
    %v957 = vld [vmem:[#allocation10 + $0x280] sm:$0xff]
    %v958 = vld [vmem:[#allocation10 + $0x288] sm:$0xff]
    %v959 = vld [vmem:[#allocation10 + $0x290] sm:$0xff]
    %v960 = vld [vmem:[#allocation10 + $0x298] sm:$0xff]
    %v961 = vld [vmem:[#allocation10 + $0x2a0] sm:$0xff]
    %v962 = vld [vmem:[#allocation10 + $0x2a8] sm:$0xff]
    %v963 = vld [vmem:[#allocation10 + $0x2b0] sm:$0xff]
    %v964 = vld [vmem:[#allocation10 + $0x2b8] sm:$0xff]
    %v965 = vld [vmem:[#allocation10 + $0x2c0] sm:$0xff]
    %v966 = vld [vmem:[#allocation10 + $0x2c8] sm:$0xff]
    %v967 = vld [vmem:[#allocation10 + $0x2d0] sm:$0xff]
    %v968 = vld [vmem:[#allocation10 + $0x2d8] sm:$0xff]
    %v969 = vld [vmem:[#allocation10 + $0x2e0] sm:$0xff]
    %v970 = vld [vmem:[#allocation10 + $0x2e8] sm:$0xff]
    %v971 = vld [vmem:[#allocation10 + $0x2f0] sm:$0xff]
    %v972 = vld [vmem:[#allocation10 + $0x2f8] sm:$0xff]
    %v973 = vld [vmem:[#allocation10 + $0x300] sm:$0xff]
    %v974 = vld [vmem:[#allocation10 + $0x308] sm:$0xff]
    %v975 = vld [vmem:[#allocation10 + $0x310] sm:$0xff]
    %v976 = vld [vmem:[#allocation10 + $0x318] sm:$0xff]
    %v977 = vld [vmem:[#allocation10 + $0x320] sm:$0xff]
    %v978 = vld [vmem:[#allocation10 + $0x328] sm:$0xff]
    %v979 = vld [vmem:[#allocation10 + $0x330] sm:$0xff]
    %v980 = vld [vmem:[#allocation10 + $0x338] sm:$0xff]
    %v981 = vld [vmem:[#allocation10 + $0x340] sm:$0xff]
    %v982 = vld [vmem:[#allocation10 + $0x348] sm:$0xff]
    %v983 = vld [vmem:[#allocation10 + $0x350] sm:$0xff]
    %v984 = vld [vmem:[#allocation10 + $0x358] sm:$0xff]
    %v985 = vld [vmem:[#allocation10 + $0x360] sm:$0xff]
    %v986 = vld [vmem:[#allocation10 + $0x368] sm:$0xff]
    %v987 = vld [vmem:[#allocation10 + $0x370] sm:$0xff]
    %v988 = vld [vmem:[#allocation10 + $0x378] sm:$0xff]
    %v989 = vld [vmem:[#allocation10 + $0x380] sm:$0xff]
    %v990 = vld [vmem:[#allocation10 + $0x388] sm:$0xff]
    %v991 = vld [vmem:[#allocation10 + $0x390] sm:$0xff]
    %v992 = vld [vmem:[#allocation10 + $0x398] sm:$0xff]
    %v993 = vld [vmem:[#allocation10 + $0x3a0] sm:$0xff]
    %v994 = vld [vmem:[#allocation10 + $0x3a8] sm:$0xff]
    %v995 = vld [vmem:[#allocation10 + $0x3b0] sm:$0xff]
    %v996 = vld [vmem:[#allocation10 + $0x3b8] sm:$0xff]
    %v997 = vld [vmem:[#allocation10 + $0x3c0] sm:$0xff]
    %v998 = vld [vmem:[#allocation10 + $0x3c8] sm:$0xff]
    %v999 = vld [vmem:[#allocation10 + $0x3d0] sm:$0xff]
    %v1000 = vld [vmem:[#allocation10 + $0x3d8] sm:$0xff]
    %v1001 = vld [vmem:[#allocation10 + $0x3e0] sm:$0xff]
    %v1002 = vld [vmem:[#allocation10 + $0x3e8] sm:$0xff]
    %v1003 = vld [vmem:[#allocation10 + $0x3f0] sm:$0xff]
    %v1004 = vld [vmem:[#allocation10 + $0x3f8] sm:$0xff]
    %v1005 = vld [vmem:[%s8] sm:$0xff]
    %v1006 = vld [vmem:[%s8 + $0x8] sm:$0xff]
    %v1009 = vlaneseq
    %v1010 = vshrl.u32 %v1009, 7
    %v1011 = vsub.s32 0, %v1010
    %v1012 = vrot.slane %v1005, %v1011
    %v1013 = vlaneseq
    %v1014 = vshrl.u32 %v1013, 7
    %v1015 = vsub.s32 1, %v1014
    %v1016 = vrot.slane %v1005, %v1015
    %v1017 = vlaneseq
    %v1018 = vshrl.u32 %v1017, 7
    %v1019 = vsub.s32 2, %v1018
    %v1020 = vrot.slane %v1005, %v1019
    %v1021 = vlaneseq
    %v1022 = vshrl.u32 %v1021, 7
    %v1023 = vsub.s32 3, %v1022
    %v1024 = vrot.slane %v1005, %v1023
    %v1025 = vlaneseq
    %v1026 = vshrl.u32 %v1025, 7
    %v1027 = vsub.s32 4, %v1026
    %v1028 = vrot.slane %v1005, %v1027
    %v1029 = vlaneseq
    %v1030 = vshrl.u32 %v1029, 7
    %v1031 = vsub.s32 5, %v1030
    %v1032 = vrot.slane %v1005, %v1031
    %v1033 = vlaneseq
    %v1034 = vshrl.u32 %v1033, 7
    %v1035 = vsub.s32 6, %v1034
    %v1036 = vrot.slane %v1005, %v1035
    %v1037 = vlaneseq
    %v1038 = vshrl.u32 %v1037, 7
    %v1039 = vsub.s32 7, %v1038
    %v1040 = vrot.slane %v1005, %v1039
    %v1041 = vlaneseq
    %v1042 = vshrl.u32 %v1041, 7
    %v1043 = vsub.s32 0, %v1042
    %v1044 = vrot.slane %v1006, %v1043
    %v1045 = vlaneseq
    %v1046 = vshrl.u32 %v1045, 7
    %v1047 = vsub.s32 1, %v1046
    %v1048 = vrot.slane %v1006, %v1047
    %v1049 = vlaneseq
    %v1050 = vshrl.u32 %v1049, 7
    %v1051 = vsub.s32 2, %v1050
    %v1052 = vrot.slane %v1006, %v1051
    %v1053 = vlaneseq
    %v1054 = vshrl.u32 %v1053, 7
    %v1055 = vsub.s32 3, %v1054
    %v1056 = vrot.slane %v1006, %v1055
    %v1057 = vlaneseq
    %v1058 = vshrl.u32 %v1057, 7
    %v1059 = vsub.s32 4, %v1058
    %v1060 = vrot.slane %v1006, %v1059
    %v1061 = vlaneseq
    %v1062 = vshrl.u32 %v1061, 7
    %v1063 = vsub.s32 5, %v1062
    %v1064 = vrot.slane %v1006, %v1063
    %v1065 = vlaneseq
    %v1066 = vshrl.u32 %v1065, 7
    %v1067 = vsub.s32 6, %v1066
    %v1068 = vrot.slane %v1006, %v1067
    %v1069 = vlaneseq
    %v1070 = vshrl.u32 %v1069, 7
    %v1071 = vsub.s32 7, %v1070
    %v1072 = vrot.slane %v1006, %v1071
    %v1217 = vunpack.c.l.b16 %v877
    %v1218 = vunpack.c.h.b16 %v877
    %v1219 = vunpack.c.l.b16 %v878
    %v1220 = vunpack.c.h.b16 %v878
    %v1221 = vunpack.c.l.b16 %v879
    %v1222 = vunpack.c.h.b16 %v879
    %v1223 = vunpack.c.l.b16 %v880
    %v1224 = vunpack.c.h.b16 %v880
    %v1225 = vunpack.c.l.b16 %v881
    %v1226 = vunpack.c.h.b16 %v881
    %v1227 = vunpack.c.l.b16 %v882
    %v1228 = vunpack.c.h.b16 %v882
    %v1229 = vunpack.c.l.b16 %v883
    %v1230 = vunpack.c.h.b16 %v883
    %v1231 = vunpack.c.l.b16 %v884
    %v1232 = vunpack.c.h.b16 %v884
    %v1233 = vunpack.c.l.b16 %v885
    %v1234 = vunpack.c.h.b16 %v885
    %v1235 = vunpack.c.l.b16 %v886
    %v1236 = vunpack.c.h.b16 %v886
    %v1237 = vunpack.c.l.b16 %v887
    %v1238 = vunpack.c.h.b16 %v887
    %v1239 = vunpack.c.l.b16 %v888
    %v1240 = vunpack.c.h.b16 %v888
    %v1241 = vunpack.c.l.b16 %v889
    %v1242 = vunpack.c.h.b16 %v889
    %v1243 = vunpack.c.l.b16 %v890
    %v1244 = vunpack.c.h.b16 %v890
    %v1245 = vunpack.c.l.b16 %v891
    %v1246 = vunpack.c.h.b16 %v891
    %v1247 = vunpack.c.l.b16 %v892
    %v1248 = vunpack.c.h.b16 %v892
    %v1249 = vunpack.c.l.b16 %v893
    %v1250 = vunpack.c.h.b16 %v893
    %v1251 = vunpack.c.l.b16 %v894
    %v1252 = vunpack.c.h.b16 %v894
    %v1253 = vunpack.c.l.b16 %v895
    %v1254 = vunpack.c.h.b16 %v895
    %v1255 = vunpack.c.l.b16 %v896
    %v1256 = vunpack.c.h.b16 %v896
    %v1257 = vunpack.c.l.b16 %v897
    %v1258 = vunpack.c.h.b16 %v897
    %v1259 = vunpack.c.l.b16 %v898
    %v1260 = vunpack.c.h.b16 %v898
    %v1261 = vunpack.c.l.b16 %v899
    %v1262 = vunpack.c.h.b16 %v899
    %v1263 = vunpack.c.l.b16 %v900
    %v1264 = vunpack.c.h.b16 %v900
    %v1265 = vunpack.c.l.b16 %v901
    %v1266 = vunpack.c.h.b16 %v901
    %v1267 = vunpack.c.l.b16 %v902
    %v1268 = vunpack.c.h.b16 %v902
    %v1269 = vunpack.c.l.b16 %v903
    %v1270 = vunpack.c.h.b16 %v903
    %v1271 = vunpack.c.l.b16 %v904
    %v1272 = vunpack.c.h.b16 %v904
    %v1273 = vunpack.c.l.b16 %v905
    %v1274 = vunpack.c.h.b16 %v905
    %v1275 = vunpack.c.l.b16 %v906
    %v1276 = vunpack.c.h.b16 %v906
    %v1277 = vunpack.c.l.b16 %v907
    %v1278 = vunpack.c.h.b16 %v907
    %v1279 = vunpack.c.l.b16 %v908
    %v1280 = vunpack.c.h.b16 %v908
    %v1281 = vunpack.c.l.b16 %v909
    %v1282 = vunpack.c.h.b16 %v909
    %v1283 = vunpack.c.l.b16 %v910
    %v1284 = vunpack.c.h.b16 %v910
    %v1285 = vunpack.c.l.b16 %v911
    %v1286 = vunpack.c.h.b16 %v911
    %v1287 = vunpack.c.l.b16 %v912
    %v1288 = vunpack.c.h.b16 %v912
    %v1289 = vunpack.c.l.b16 %v913
    %v1290 = vunpack.c.h.b16 %v913
    %v1291 = vunpack.c.l.b16 %v914
    %v1292 = vunpack.c.h.b16 %v914
    %v1293 = vunpack.c.l.b16 %v915
    %v1294 = vunpack.c.h.b16 %v915
    %v1295 = vunpack.c.l.b16 %v916
    %v1296 = vunpack.c.h.b16 %v916
    %v1297 = vunpack.c.l.b16 %v917
    %v1298 = vunpack.c.h.b16 %v917
    %v1299 = vunpack.c.l.b16 %v918
    %v1300 = vunpack.c.h.b16 %v918
    %v1301 = vunpack.c.l.b16 %v919
    %v1302 = vunpack.c.h.b16 %v919
    %v1303 = vunpack.c.l.b16 %v920
    %v1304 = vunpack.c.h.b16 %v920
    %v1305 = vunpack.c.l.b16 %v921
    %v1306 = vunpack.c.h.b16 %v921
    %v1307 = vunpack.c.l.b16 %v922
    %v1308 = vunpack.c.h.b16 %v922
    %v1309 = vunpack.c.l.b16 %v923
    %v1310 = vunpack.c.h.b16 %v923
    %v1311 = vunpack.c.l.b16 %v924
    %v1312 = vunpack.c.h.b16 %v924
    %v1313 = vunpack.c.l.b16 %v925
    %v1314 = vunpack.c.h.b16 %v925
    %v1315 = vunpack.c.l.b16 %v926
    %v1316 = vunpack.c.h.b16 %v926
    %v1317 = vunpack.c.l.b16 %v927
    %v1318 = vunpack.c.h.b16 %v927
    %v1319 = vunpack.c.l.b16 %v928
    %v1320 = vunpack.c.h.b16 %v928
    %v1321 = vunpack.c.l.b16 %v929
    %v1322 = vunpack.c.h.b16 %v929
    %v1323 = vunpack.c.l.b16 %v930
    %v1324 = vunpack.c.h.b16 %v930
    %v1325 = vunpack.c.l.b16 %v931
    %v1326 = vunpack.c.h.b16 %v931
    %v1327 = vunpack.c.l.b16 %v932
    %v1328 = vunpack.c.h.b16 %v932
    %v1329 = vunpack.c.l.b16 %v933
    %v1330 = vunpack.c.h.b16 %v933
    %v1331 = vunpack.c.l.b16 %v934
    %v1332 = vunpack.c.h.b16 %v934
    %v1333 = vunpack.c.l.b16 %v935
    %v1334 = vunpack.c.h.b16 %v935
    %v1335 = vunpack.c.l.b16 %v936
    %v1336 = vunpack.c.h.b16 %v936
    %v1337 = vunpack.c.l.b16 %v937
    %v1338 = vunpack.c.h.b16 %v937
    %v1339 = vunpack.c.l.b16 %v938
    %v1340 = vunpack.c.h.b16 %v938
    %v1341 = vunpack.c.l.b16 %v939
    %v1342 = vunpack.c.h.b16 %v939
    %v1343 = vunpack.c.l.b16 %v940
    %v1344 = vunpack.c.h.b16 %v940
    %v1345 = vunpack.c.l.b16 %v941
    %v1346 = vunpack.c.h.b16 %v941
    %v1347 = vunpack.c.l.b16 %v942
    %v1348 = vunpack.c.h.b16 %v942
    %v1349 = vunpack.c.l.b16 %v943
    %v1350 = vunpack.c.h.b16 %v943
    %v1351 = vunpack.c.l.b16 %v944
    %v1352 = vunpack.c.h.b16 %v944
    %v1353 = vunpack.c.l.b16 %v945
    %v1354 = vunpack.c.h.b16 %v945
    %v1355 = vunpack.c.l.b16 %v946
    %v1356 = vunpack.c.h.b16 %v946
    %v1357 = vunpack.c.l.b16 %v947
    %v1358 = vunpack.c.h.b16 %v947
    %v1359 = vunpack.c.l.b16 %v948
    %v1360 = vunpack.c.h.b16 %v948
    %v1361 = vunpack.c.l.b16 %v949
    %v1362 = vunpack.c.h.b16 %v949
    %v1363 = vunpack.c.l.b16 %v950
    %v1364 = vunpack.c.h.b16 %v950
    %v1365 = vunpack.c.l.b16 %v951
    %v1366 = vunpack.c.h.b16 %v951
    %v1367 = vunpack.c.l.b16 %v952
    %v1368 = vunpack.c.h.b16 %v952
    %v1369 = vunpack.c.l.b16 %v953
    %v1370 = vunpack.c.h.b16 %v953
    %v1371 = vunpack.c.l.b16 %v954
    %v1372 = vunpack.c.h.b16 %v954
    %v1373 = vunpack.c.l.b16 %v955
    %v1374 = vunpack.c.h.b16 %v955
    %v1375 = vunpack.c.l.b16 %v956
    %v1376 = vunpack.c.h.b16 %v956
    %v1377 = vunpack.c.l.b16 %v957
    %v1378 = vunpack.c.h.b16 %v957
    %v1379 = vunpack.c.l.b16 %v958
    %v1380 = vunpack.c.h.b16 %v958
    %v1381 = vunpack.c.l.b16 %v959
    %v1382 = vunpack.c.h.b16 %v959
    %v1383 = vunpack.c.l.b16 %v960
    %v1384 = vunpack.c.h.b16 %v960
    %v1385 = vunpack.c.l.b16 %v961
    %v1386 = vunpack.c.h.b16 %v961
    %v1387 = vunpack.c.l.b16 %v962
    %v1388 = vunpack.c.h.b16 %v962
    %v1389 = vunpack.c.l.b16 %v963
    %v1390 = vunpack.c.h.b16 %v963
    %v1391 = vunpack.c.l.b16 %v964
    %v1392 = vunpack.c.h.b16 %v964
    %v1393 = vunpack.c.l.b16 %v965
    %v1394 = vunpack.c.h.b16 %v965
    %v1395 = vunpack.c.l.b16 %v966
    %v1396 = vunpack.c.h.b16 %v966
    %v1397 = vunpack.c.l.b16 %v967
    %v1398 = vunpack.c.h.b16 %v967
    %v1399 = vunpack.c.l.b16 %v968
    %v1400 = vunpack.c.h.b16 %v968
    %v1401 = vunpack.c.l.b16 %v969
    %v1402 = vunpack.c.h.b16 %v969
    %v1403 = vunpack.c.l.b16 %v970
    %v1404 = vunpack.c.h.b16 %v970
    %v1405 = vunpack.c.l.b16 %v971
    %v1406 = vunpack.c.h.b16 %v971
    %v1407 = vunpack.c.l.b16 %v972
    %v1408 = vunpack.c.h.b16 %v972
    %v1409 = vunpack.c.l.b16 %v973
    %v1410 = vunpack.c.h.b16 %v973
    %v1411 = vunpack.c.l.b16 %v974
    %v1412 = vunpack.c.h.b16 %v974
    %v1413 = vunpack.c.l.b16 %v975
    %v1414 = vunpack.c.h.b16 %v975
    %v1415 = vunpack.c.l.b16 %v976
    %v1416 = vunpack.c.h.b16 %v976
    %v1417 = vunpack.c.l.b16 %v977
    %v1418 = vunpack.c.h.b16 %v977
    %v1419 = vunpack.c.l.b16 %v978
    %v1420 = vunpack.c.h.b16 %v978
    %v1421 = vunpack.c.l.b16 %v979
    %v1422 = vunpack.c.h.b16 %v979
    %v1423 = vunpack.c.l.b16 %v980
    %v1424 = vunpack.c.h.b16 %v980
    %v1425 = vunpack.c.l.b16 %v981
    %v1426 = vunpack.c.h.b16 %v981
    %v1427 = vunpack.c.l.b16 %v982
    %v1428 = vunpack.c.h.b16 %v982
    %v1429 = vunpack.c.l.b16 %v983
    %v1430 = vunpack.c.h.b16 %v983
    %v1431 = vunpack.c.l.b16 %v984
    %v1432 = vunpack.c.h.b16 %v984
    %v1433 = vunpack.c.l.b16 %v985
    %v1434 = vunpack.c.h.b16 %v985
    %v1435 = vunpack.c.l.b16 %v986
    %v1436 = vunpack.c.h.b16 %v986
    %v1437 = vunpack.c.l.b16 %v987
    %v1438 = vunpack.c.h.b16 %v987
    %v1439 = vunpack.c.l.b16 %v988
    %v1440 = vunpack.c.h.b16 %v988
    %v1441 = vunpack.c.l.b16 %v989
    %v1442 = vunpack.c.h.b16 %v989
    %v1443 = vunpack.c.l.b16 %v990
    %v1444 = vunpack.c.h.b16 %v990
    %v1445 = vunpack.c.l.b16 %v991
    %v1446 = vunpack.c.h.b16 %v991
    %v1447 = vunpack.c.l.b16 %v992
    %v1448 = vunpack.c.h.b16 %v992
    %v1449 = vunpack.c.l.b16 %v993
    %v1450 = vunpack.c.h.b16 %v993
    %v1451 = vunpack.c.l.b16 %v994
    %v1452 = vunpack.c.h.b16 %v994
    %v1453 = vunpack.c.l.b16 %v995
    %v1454 = vunpack.c.h.b16 %v995
    %v1455 = vunpack.c.l.b16 %v996
    %v1456 = vunpack.c.h.b16 %v996
    %v1457 = vunpack.c.l.b16 %v997
    %v1458 = vunpack.c.h.b16 %v997
    %v1459 = vunpack.c.l.b16 %v998
    %v1460 = vunpack.c.h.b16 %v998
    %v1461 = vunpack.c.l.b16 %v999
    %v1462 = vunpack.c.h.b16 %v999
    %v1463 = vunpack.c.l.b16 %v1000
    %v1464 = vunpack.c.h.b16 %v1000
    %v1465 = vunpack.c.l.b16 %v1001
    %v1466 = vunpack.c.h.b16 %v1001
    %v1467 = vunpack.c.l.b16 %v1002
    %v1468 = vunpack.c.h.b16 %v1002
    %v1469 = vunpack.c.l.b16 %v1003
    %v1470 = vunpack.c.h.b16 %v1003
    %v1471 = vunpack.c.l.b16 %v1004
    %v1472 = vunpack.c.h.b16 %v1004
    %v1473 = vpack.c.b16 %v1233, %v1217
    %v1474 = vpack.c.b16 %v1234, %v1218
    %v1475 = vpack.c.b16 %v1235, %v1219
    %v1476 = vpack.c.b16 %v1236, %v1220
    %v1477 = vpack.c.b16 %v1237, %v1221
    %v1478 = vpack.c.b16 %v1238, %v1222
    %v1479 = vpack.c.b16 %v1239, %v1223
    %v1480 = vpack.c.b16 %v1240, %v1224
    %v1481 = vpack.c.b16 %v1241, %v1225
    %v1482 = vpack.c.b16 %v1242, %v1226
    %v1483 = vpack.c.b16 %v1243, %v1227
    %v1484 = vpack.c.b16 %v1244, %v1228
    %v1485 = vpack.c.b16 %v1245, %v1229
    %v1486 = vpack.c.b16 %v1246, %v1230
    %v1487 = vpack.c.b16 %v1247, %v1231
    %v1488 = vpack.c.b16 %v1248, %v1232
    %v1489 = vpack.c.b16 %v1265, %v1249
    %v1490 = vpack.c.b16 %v1266, %v1250
    %v1491 = vpack.c.b16 %v1267, %v1251
    %v1492 = vpack.c.b16 %v1268, %v1252
    %v1493 = vpack.c.b16 %v1269, %v1253
    %v1494 = vpack.c.b16 %v1270, %v1254
    %v1495 = vpack.c.b16 %v1271, %v1255
    %v1496 = vpack.c.b16 %v1272, %v1256
    %v1497 = vpack.c.b16 %v1273, %v1257
    %v1498 = vpack.c.b16 %v1274, %v1258
    %v1499 = vpack.c.b16 %v1275, %v1259
    %v1500 = vpack.c.b16 %v1276, %v1260
    %v1501 = vpack.c.b16 %v1277, %v1261
    %v1502 = vpack.c.b16 %v1278, %v1262
    %v1503 = vpack.c.b16 %v1279, %v1263
    %v1504 = vpack.c.b16 %v1280, %v1264
    %v1505 = vpack.c.b16 %v1297, %v1281
    %v1506 = vpack.c.b16 %v1298, %v1282
    %v1507 = vpack.c.b16 %v1299, %v1283
    %v1508 = vpack.c.b16 %v1300, %v1284
    %v1509 = vpack.c.b16 %v1301, %v1285
    %v1510 = vpack.c.b16 %v1302, %v1286
    %v1511 = vpack.c.b16 %v1303, %v1287
    %v1512 = vpack.c.b16 %v1304, %v1288
    %v1513 = vpack.c.b16 %v1305, %v1289
    %v1514 = vpack.c.b16 %v1306, %v1290
    %v1515 = vpack.c.b16 %v1307, %v1291
    %v1516 = vpack.c.b16 %v1308, %v1292
    %v1517 = vpack.c.b16 %v1309, %v1293
    %v1518 = vpack.c.b16 %v1310, %v1294
    %v1519 = vpack.c.b16 %v1311, %v1295
    %v1520 = vpack.c.b16 %v1312, %v1296
    %v1521 = vpack.c.b16 %v1329, %v1313
    %v1522 = vpack.c.b16 %v1330, %v1314
    %v1523 = vpack.c.b16 %v1331, %v1315
    %v1524 = vpack.c.b16 %v1332, %v1316
    %v1525 = vpack.c.b16 %v1333, %v1317
    %v1526 = vpack.c.b16 %v1334, %v1318
    %v1527 = vpack.c.b16 %v1335, %v1319
    %v1528 = vpack.c.b16 %v1336, %v1320
    %v1529 = vpack.c.b16 %v1337, %v1321
    %v1530 = vpack.c.b16 %v1338, %v1322
    %v1531 = vpack.c.b16 %v1339, %v1323
    %v1532 = vpack.c.b16 %v1340, %v1324
    %v1533 = vpack.c.b16 %v1341, %v1325
    %v1534 = vpack.c.b16 %v1342, %v1326
    %v1535 = vpack.c.b16 %v1343, %v1327
    %v1536 = vpack.c.b16 %v1344, %v1328
    %v1537 = vpack.c.b16 %v1361, %v1345
    %v1538 = vpack.c.b16 %v1362, %v1346
    %v1539 = vpack.c.b16 %v1363, %v1347
    %v1540 = vpack.c.b16 %v1364, %v1348
    %v1541 = vpack.c.b16 %v1365, %v1349
    %v1542 = vpack.c.b16 %v1366, %v1350
    %v1543 = vpack.c.b16 %v1367, %v1351
    %v1544 = vpack.c.b16 %v1368, %v1352
    %v1545 = vpack.c.b16 %v1369, %v1353
    %v1546 = vpack.c.b16 %v1370, %v1354
    %v1547 = vpack.c.b16 %v1371, %v1355
    %v1548 = vpack.c.b16 %v1372, %v1356
    %v1549 = vpack.c.b16 %v1373, %v1357
    %v1550 = vpack.c.b16 %v1374, %v1358
    %v1551 = vpack.c.b16 %v1375, %v1359
    %v1552 = vpack.c.b16 %v1376, %v1360
    %v1553 = vpack.c.b16 %v1393, %v1377
    %v1554 = vpack.c.b16 %v1394, %v1378
    %v1555 = vpack.c.b16 %v1395, %v1379
    %v1556 = vpack.c.b16 %v1396, %v1380
    %v1557 = vpack.c.b16 %v1397, %v1381
    %v1558 = vpack.c.b16 %v1398, %v1382
    %v1559 = vpack.c.b16 %v1399, %v1383
    %v1560 = vpack.c.b16 %v1400, %v1384
    %v1561 = vpack.c.b16 %v1401, %v1385
    %v1562 = vpack.c.b16 %v1402, %v1386
    %v1563 = vpack.c.b16 %v1403, %v1387
    %v1564 = vpack.c.b16 %v1404, %v1388
    %v1565 = vpack.c.b16 %v1405, %v1389
    %v1566 = vpack.c.b16 %v1406, %v1390
    %v1567 = vpack.c.b16 %v1407, %v1391
    %v1568 = vpack.c.b16 %v1408, %v1392
    %v1569 = vpack.c.b16 %v1425, %v1409
    %v1570 = vpack.c.b16 %v1426, %v1410
    %v1571 = vpack.c.b16 %v1427, %v1411
    %v1572 = vpack.c.b16 %v1428, %v1412
    %v1573 = vpack.c.b16 %v1429, %v1413
    %v1574 = vpack.c.b16 %v1430, %v1414
    %v1575 = vpack.c.b16 %v1431, %v1415
    %v1576 = vpack.c.b16 %v1432, %v1416
    %v1577 = vpack.c.b16 %v1433, %v1417
    %v1578 = vpack.c.b16 %v1434, %v1418
    %v1579 = vpack.c.b16 %v1435, %v1419
    %v1580 = vpack.c.b16 %v1436, %v1420
    %v1581 = vpack.c.b16 %v1437, %v1421
    %v1582 = vpack.c.b16 %v1438, %v1422
    %v1583 = vpack.c.b16 %v1439, %v1423
    %v1584 = vpack.c.b16 %v1440, %v1424
    %v1585 = vpack.c.b16 %v1457, %v1441
    %v1586 = vpack.c.b16 %v1458, %v1442
    %v1587 = vpack.c.b16 %v1459, %v1443
    %v1588 = vpack.c.b16 %v1460, %v1444
    %v1589 = vpack.c.b16 %v1461, %v1445
    %v1590 = vpack.c.b16 %v1462, %v1446
    %v1591 = vpack.c.b16 %v1463, %v1447
    %v1592 = vpack.c.b16 %v1464, %v1448
    %v1593 = vpack.c.b16 %v1465, %v1449
    %v1594 = vpack.c.b16 %v1466, %v1450
    %v1595 = vpack.c.b16 %v1467, %v1451
    %v1596 = vpack.c.b16 %v1468, %v1452
    %v1597 = vpack.c.b16 %v1469, %v1453
    %v1598 = vpack.c.b16 %v1470, %v1454
    %v1599 = vpack.c.b16 %v1471, %v1455
    %v1600 = vpack.c.b16 %v1472, %v1456
    %1729 = vmatprep.subr.bf16.mxu0 %v1474
    %1730 = vmatpush1.bf16.msra.mxu0 %v1473
    %1731 = vmatprep.subr.bf16.mxu0 %v1490
    %1732 = vmatpush1.bf16.msra.mxu0 %v1489
    %1733 = vmatprep.subr.bf16.mxu0 %v1506
    %1734 = vmatpush1.bf16.msra.mxu0 %v1505
    %1735 = vmatprep.subr.bf16.mxu0 %v1522
    %1736 = vmatpush1.bf16.msra.mxu0 %v1521
    %1737 = vmatprep.subr.bf16.mxu0 %v1538
    %1738 = vmatpush1.bf16.msra.mxu0 %v1537
    %1739 = vmatprep.subr.bf16.mxu0 %v1554
    %1740 = vmatpush1.bf16.msra.mxu0 %v1553
    %1741 = vmatprep.subr.bf16.mxu0 %v1570
    %1742 = vmatpush1.bf16.msra.mxu0 %v1569
    %1743 = vmatprep.subr.bf16.mxu0 %v1586
    %1744 = vmatpush1.bf16.msra.mxu0 %v1585
    %1745 = vmatprep.subr.bf16.mxu0 0
    %1746 = vmatpush1.bf16.msra.mxu0 0
    %1747 = vmatprep.subr.bf16.mxu0 0
    %1748 = vmatpush1.bf16.msra.mxu0 0
    %1749 = vmatprep.subr.bf16.mxu0 0
    %1750 = vmatpush1.bf16.msra.mxu0 0
    %1751 = vmatprep.subr.bf16.mxu0 0
    %1752 = vmatpush1.bf16.msra.mxu0 0
    %1753 = vmatprep.subr.bf16.mxu0 0
    %1754 = vmatpush1.bf16.msra.mxu0 0
    %1755 = vmatprep.subr.bf16.mxu0 0
    %1756 = vmatpush1.bf16.msra.mxu0 0
    %1757 = vmatprep.subr.bf16.mxu0 0
    %1758 = vmatpush1.bf16.msra.mxu0 0
    %1759 = vmatprep.subr.bf16.mxu0 0
    %1760 = vmatpush1.bf16.msra.mxu0 0
    %1761 = vmatprep.mubr.bf16.mxu0 0
    %1762 = vmatmul.mubr.bf16.gmra.mrb[0].mxu0 %v876
    %v1763 = vpop.f32.mrb[0].mxu0
    %v1764 = vadd.f32 %v1012, %v1763
    %v1765 = vpop.f32.mrb[0].mxu0
    %v1766 = vadd.f32 %v1016, %v1765
    %v1767 = vpop.f32.mrb[0].mxu0
    %v1768 = vpop.f32.mrb[0].mxu0
    %1769 = vdwg.mxu0
    %1770 = vmatprep.subr.bf16.mxu0 %v1476
    %1771 = vmatpush1.bf16.msra.mxu0 %v1475
    %1772 = vmatprep.subr.bf16.mxu0 %v1492
    %1773 = vmatpush1.bf16.msra.mxu0 %v1491
    %1774 = vmatprep.subr.bf16.mxu0 %v1508
    %1775 = vmatpush1.bf16.msra.mxu0 %v1507
    %1776 = vmatprep.subr.bf16.mxu0 %v1524
    %1777 = vmatpush1.bf16.msra.mxu0 %v1523
    %1778 = vmatprep.subr.bf16.mxu0 %v1540
    %1779 = vmatpush1.bf16.msra.mxu0 %v1539
    %1780 = vmatprep.subr.bf16.mxu0 %v1556
    %1781 = vmatpush1.bf16.msra.mxu0 %v1555
    %1782 = vmatprep.subr.bf16.mxu0 %v1572
    %1783 = vmatpush1.bf16.msra.mxu0 %v1571
    %1784 = vmatprep.subr.bf16.mxu0 %v1588
    %1785 = vmatpush1.bf16.msra.mxu0 %v1587
    %1786 = vmatprep.subr.bf16.mxu0 0
    %1787 = vmatpush1.bf16.msra.mxu0 0
    %1788 = vmatprep.subr.bf16.mxu0 0
    %1789 = vmatpush1.bf16.msra.mxu0 0
    %1790 = vmatprep.subr.bf16.mxu0 0
    %1791 = vmatpush1.bf16.msra.mxu0 0
    %1792 = vmatprep.subr.bf16.mxu0 0
    %1793 = vmatpush1.bf16.msra.mxu0 0
    %1794 = vmatprep.subr.bf16.mxu0 0
    %1795 = vmatpush1.bf16.msra.mxu0 0
    %1796 = vmatprep.subr.bf16.mxu0 0
    %1797 = vmatpush1.bf16.msra.mxu0 0
    %1798 = vmatprep.subr.bf16.mxu0 0
    %1799 = vmatpush1.bf16.msra.mxu0 0
    %1800 = vmatprep.subr.bf16.mxu0 0
    %1801 = vmatpush1.bf16.msra.mxu0 0
    %1802 = vmatprep.mubr.bf16.mxu0 0
    %1803 = vmatmul.mubr.bf16.gmra.mrb[0].mxu0 %v876
    %v1804 = vpop.f32.mrb[0].mxu0
    %v1805 = vadd.f32 %v1020, %v1804
    %v1806 = vpop.f32.mrb[0].mxu0
    %v1807 = vadd.f32 %v1024, %v1806
    %v1808 = vpop.f32.mrb[0].mxu0
    %v1809 = vpop.f32.mrb[0].mxu0
    %1810 = vdwg.mxu0
    %1811 = vmatprep.subr.bf16.mxu0 %v1478
    %1812 = vmatpush1.bf16.msra.mxu0 %v1477
    %1813 = vmatprep.subr.bf16.mxu0 %v1494
    %1814 = vmatpush1.bf16.msra.mxu0 %v1493
    %1815 = vmatprep.subr.bf16.mxu0 %v1510
    %1816 = vmatpush1.bf16.msra.mxu0 %v1509
    %1817 = vmatprep.subr.bf16.mxu0 %v1526
    %1818 = vmatpush1.bf16.msra.mxu0 %v1525
    %1819 = vmatprep.subr.bf16.mxu0 %v1542
    %1820 = vmatpush1.bf16.msra.mxu0 %v1541
    %1821 = vmatprep.subr.bf16.mxu0 %v1558
    %1822 = vmatpush1.bf16.msra.mxu0 %v1557
    %1823 = vmatprep.subr.bf16.mxu0 %v1574
    %1824 = vmatpush1.bf16.msra.mxu0 %v1573
    %1825 = vmatprep.subr.bf16.mxu0 %v1590
    %1826 = vmatpush1.bf16.msra.mxu0 %v1589
    %1827 = vmatprep.subr.bf16.mxu0 0
    %1828 = vmatpush1.bf16.msra.mxu0 0
    %1829 = vmatprep.subr.bf16.mxu0 0
    %1830 = vmatpush1.bf16.msra.mxu0 0
    %1831 = vmatprep.subr.bf16.mxu0 0
    %1832 = vmatpush1.bf16.msra.mxu0 0
    %1833 = vmatprep.subr.bf16.mxu0 0
    %1834 = vmatpush1.bf16.msra.mxu0 0
    %1835 = vmatprep.subr.bf16.mxu0 0
    %1836 = vmatpush1.bf16.msra.mxu0 0
    %1837 = vmatprep.subr.bf16.mxu0 0
    %1838 = vmatpush1.bf16.msra.mxu0 0
    %1839 = vmatprep.subr.bf16.mxu0 0
    %1840 = vmatpush1.bf16.msra.mxu0 0
    %1841 = vmatprep.subr.bf16.mxu0 0
    %1842 = vmatpush1.bf16.msra.mxu0 0
    %1843 = vmatprep.mubr.bf16.mxu0 0
    %1844 = vmatmul.mubr.bf16.gmra.mrb[0].mxu0 %v876
    %v1845 = vpop.f32.mrb[0].mxu0
    %v1846 = vadd.f32 %v1028, %v1845
    %v1847 = vpop.f32.mrb[0].mxu0
    %v1848 = vadd.f32 %v1032, %v1847
    %v1849 = vpop.f32.mrb[0].mxu0
    %v1850 = vpop.f32.mrb[0].mxu0
    %1851 = vdwg.mxu0
    %1852 = vmatprep.subr.bf16.mxu0 %v1480
    %1853 = vmatpush1.bf16.msra.mxu0 %v1479
    %1854 = vmatprep.subr.bf16.mxu0 %v1496
    %1855 = vmatpush1.bf16.msra.mxu0 %v1495
    %1856 = vmatprep.subr.bf16.mxu0 %v1512
    %1857 = vmatpush1.bf16.msra.mxu0 %v1511
    %1858 = vmatprep.subr.bf16.mxu0 %v1528
    %1859 = vmatpush1.bf16.msra.mxu0 %v1527
    %1860 = vmatprep.subr.bf16.mxu0 %v1544
    %1861 = vmatpush1.bf16.msra.mxu0 %v1543
    %1862 = vmatprep.subr.bf16.mxu0 %v1560
    %1863 = vmatpush1.bf16.msra.mxu0 %v1559
    %1864 = vmatprep.subr.bf16.mxu0 %v1576
    %1865 = vmatpush1.bf16.msra.mxu0 %v1575
    %1866 = vmatprep.subr.bf16.mxu0 %v1592
    %1867 = vmatpush1.bf16.msra.mxu0 %v1591
    %1868 = vmatprep.subr.bf16.mxu0 0
    %1869 = vmatpush1.bf16.msra.mxu0 0
    %1870 = vmatprep.subr.bf16.mxu0 0
    %1871 = vmatpush1.bf16.msra.mxu0 0
    %1872 = vmatprep.subr.bf16.mxu0 0
    %1873 = vmatpush1.bf16.msra.mxu0 0
    %1874 = vmatprep.subr.bf16.mxu0 0
    %1875 = vmatpush1.bf16.msra.mxu0 0
    %1876 = vmatprep.subr.bf16.mxu0 0
    %1877 = vmatpush1.bf16.msra.mxu0 0
    %1878 = vmatprep.subr.bf16.mxu0 0
    %1879 = vmatpush1.bf16.msra.mxu0 0
    %1880 = vmatprep.subr.bf16.mxu0 0
    %1881 = vmatpush1.bf16.msra.mxu0 0
    %1882 = vmatprep.subr.bf16.mxu0 0
    %1883 = vmatpush1.bf16.msra.mxu0 0
    %1884 = vmatprep.mubr.bf16.mxu0 0
    %1885 = vmatmul.mubr.bf16.gmra.mrb[0].mxu0 %v876
    %v1886 = vpop.f32.mrb[0].mxu0
    %v1887 = vadd.f32 %v1036, %v1886
    %v1888 = vpop.f32.mrb[0].mxu0
    %v1889 = vadd.f32 %v1040, %v1888
    %v1890 = vpop.f32.mrb[0].mxu0
    %v1891 = vpop.f32.mrb[0].mxu0
    %1892 = vdwg.mxu0
    %1893 = vmatprep.subr.bf16.mxu0 %v1482
    %1894 = vmatpush1.bf16.msra.mxu0 %v1481
    %1895 = vmatprep.subr.bf16.mxu0 %v1498
    %1896 = vmatpush1.bf16.msra.mxu0 %v1497
    %1897 = vmatprep.subr.bf16.mxu0 %v1514
    %1898 = vmatpush1.bf16.msra.mxu0 %v1513
    %1899 = vmatprep.subr.bf16.mxu0 %v1530
    %1900 = vmatpush1.bf16.msra.mxu0 %v1529
    %1901 = vmatprep.subr.bf16.mxu0 %v1546
    %1902 = vmatpush1.bf16.msra.mxu0 %v1545
    %1903 = vmatprep.subr.bf16.mxu0 %v1562
    %1904 = vmatpush1.bf16.msra.mxu0 %v1561
    %1905 = vmatprep.subr.bf16.mxu0 %v1578
    %1906 = vmatpush1.bf16.msra.mxu0 %v1577
    %1907 = vmatprep.subr.bf16.mxu0 %v1594
    %1908 = vmatpush1.bf16.msra.mxu0 %v1593
    %1909 = vmatprep.subr.bf16.mxu0 0
    %1910 = vmatpush1.bf16.msra.mxu0 0
    %1911 = vmatprep.subr.bf16.mxu0 0
    %1912 = vmatpush1.bf16.msra.mxu0 0
    %1913 = vmatprep.subr.bf16.mxu0 0
    %1914 = vmatpush1.bf16.msra.mxu0 0
    %1915 = vmatprep.subr.bf16.mxu0 0
    %1916 = vmatpush1.bf16.msra.mxu0 0
    %1917 = vmatprep.subr.bf16.mxu0 0
    %1918 = vmatpush1.bf16.msra.mxu0 0
    %1919 = vmatprep.subr.bf16.mxu0 0
    %1920 = vmatpush1.bf16.msra.mxu0 0
    %1921 = vmatprep.subr.bf16.mxu0 0
    %1922 = vmatpush1.bf16.msra.mxu0 0
    %1923 = vmatprep.subr.bf16.mxu0 0
    %1924 = vmatpush1.bf16.msra.mxu0 0
    %1925 = vmatprep.mubr.bf16.mxu0 0
    %1926 = vmatmul.mubr.bf16.gmra.mrb[0].mxu0 %v876
    %v1927 = vpop.f32.mrb[0].mxu0
    %v1928 = vadd.f32 %v1044, %v1927
    %v1929 = vpop.f32.mrb[0].mxu0
    %v1930 = vadd.f32 %v1048, %v1929
    %v1931 = vpop.f32.mrb[0].mxu0
    %v1932 = vpop.f32.mrb[0].mxu0
    %1933 = vdwg.mxu0
    %1934 = vmatprep.subr.bf16.mxu0 %v1484
    %1935 = vmatpush1.bf16.msra.mxu0 %v1483
    %1936 = vmatprep.subr.bf16.mxu0 %v1500
    %1937 = vmatpush1.bf16.msra.mxu0 %v1499
    %1938 = vmatprep.subr.bf16.mxu0 %v1516
    %1939 = vmatpush1.bf16.msra.mxu0 %v1515
    %1940 = vmatprep.subr.bf16.mxu0 %v1532
    %1941 = vmatpush1.bf16.msra.mxu0 %v1531
    %1942 = vmatprep.subr.bf16.mxu0 %v1548
    %1943 = vmatpush1.bf16.msra.mxu0 %v1547
    %1944 = vmatprep.subr.bf16.mxu0 %v1564
    %1945 = vmatpush1.bf16.msra.mxu0 %v1563
    %1946 = vmatprep.subr.bf16.mxu0 %v1580
    %1947 = vmatpush1.bf16.msra.mxu0 %v1579
    %1948 = vmatprep.subr.bf16.mxu0 %v1596
    %1949 = vmatpush1.bf16.msra.mxu0 %v1595
    %1950 = vmatprep.subr.bf16.mxu0 0
    %1951 = vmatpush1.bf16.msra.mxu0 0
    %1952 = vmatprep.subr.bf16.mxu0 0
    %1953 = vmatpush1.bf16.msra.mxu0 0
    %1954 = vmatprep.subr.bf16.mxu0 0
    %1955 = vmatpush1.bf16.msra.mxu0 0
    %1956 = vmatprep.subr.bf16.mxu0 0
    %1957 = vmatpush1.bf16.msra.mxu0 0
    %1958 = vmatprep.subr.bf16.mxu0 0
    %1959 = vmatpush1.bf16.msra.mxu0 0
    %1960 = vmatprep.subr.bf16.mxu0 0
    %1961 = vmatpush1.bf16.msra.mxu0 0
    %1962 = vmatprep.subr.bf16.mxu0 0
    %1963 = vmatpush1.bf16.msra.mxu0 0
    %1964 = vmatprep.subr.bf16.mxu0 0
    %1965 = vmatpush1.bf16.msra.mxu0 0
    %1966 = vmatprep.mubr.bf16.mxu0 0
    %1967 = vmatmul.mubr.bf16.gmra.mrb[0].mxu0 %v876
    %v1968 = vpop.f32.mrb[0].mxu0
    %v1969 = vadd.f32 %v1052, %v1968
    %v1970 = vpop.f32.mrb[0].mxu0
    %v1971 = vadd.f32 %v1056, %v1970
    %v1972 = vpop.f32.mrb[0].mxu0
    %v1973 = vpop.f32.mrb[0].mxu0
    %1974 = vdwg.mxu0
    %1975 = vmatprep.subr.bf16.mxu0 %v1486
    %1976 = vmatpush1.bf16.msra.mxu0 %v1485
    %1977 = vmatprep.subr.bf16.mxu0 %v1502
    %1978 = vmatpush1.bf16.msra.mxu0 %v1501
    %1979 = vmatprep.subr.bf16.mxu0 %v1518
    %1980 = vmatpush1.bf16.msra.mxu0 %v1517
    %1981 = vmatprep.subr.bf16.mxu0 %v1534
    %1982 = vmatpush1.bf16.msra.mxu0 %v1533
    %1983 = vmatprep.subr.bf16.mxu0 %v1550
    %1984 = vmatpush1.bf16.msra.mxu0 %v1549
    %1985 = vmatprep.subr.bf16.mxu0 %v1566
    %1986 = vmatpush1.bf16.msra.mxu0 %v1565
    %1987 = vmatprep.subr.bf16.mxu0 %v1582
    %1988 = vmatpush1.bf16.msra.mxu0 %v1581
    %1989 = vmatprep.subr.bf16.mxu0 %v1598
    %1990 = vmatpush1.bf16.msra.mxu0 %v1597
    %1991 = vmatprep.subr.bf16.mxu0 0
    %1992 = vmatpush1.bf16.msra.mxu0 0
    %1993 = vmatprep.subr.bf16.mxu0 0
    %1994 = vmatpush1.bf16.msra.mxu0 0
    %1995 = vmatprep.subr.bf16.mxu0 0
    %1996 = vmatpush1.bf16.msra.mxu0 0
    %1997 = vmatprep.subr.bf16.mxu0 0
    %1998 = vmatpush1.bf16.msra.mxu0 0
    %1999 = vmatprep.subr.bf16.mxu0 0
    %2000 = vmatpush1.bf16.msra.mxu0 0
    %2001 = vmatprep.subr.bf16.mxu0 0
    %2002 = vmatpush1.bf16.msra.mxu0 0
    %2003 = vmatprep.subr.bf16.mxu0 0
    %2004 = vmatpush1.bf16.msra.mxu0 0
    %2005 = vmatprep.subr.bf16.mxu0 0
    %2006 = vmatpush1.bf16.msra.mxu0 0
    %2007 = vmatprep.mubr.bf16.mxu0 0
    %2008 = vmatmul.mubr.bf16.gmra.mrb[0].mxu0 %v876
    %v2009 = vpop.f32.mrb[0].mxu0
    %v2010 = vadd.f32 %v1060, %v2009
    %v2011 = vpop.f32.mrb[0].mxu0
    %v2012 = vadd.f32 %v1064, %v2011
    %v2013 = vpop.f32.mrb[0].mxu0
    %v2014 = vpop.f32.mrb[0].mxu0
    %2015 = vdwg.mxu0
    %2016 = vmatprep.subr.bf16.mxu0 %v1488
    %2017 = vmatpush1.bf16.msra.mxu0 %v1487
    %2018 = vmatprep.subr.bf16.mxu0 %v1504
    %2019 = vmatpush1.bf16.msra.mxu0 %v1503
    %2020 = vmatprep.subr.bf16.mxu0 %v1520
    %2021 = vmatpush1.bf16.msra.mxu0 %v1519
    %2022 = vmatprep.subr.bf16.mxu0 %v1536
    %2023 = vmatpush1.bf16.msra.mxu0 %v1535
    %2024 = vmatprep.subr.bf16.mxu0 %v1552
    %2025 = vmatpush1.bf16.msra.mxu0 %v1551
    %2026 = vmatprep.subr.bf16.mxu0 %v1568
    %2027 = vmatpush1.bf16.msra.mxu0 %v1567
    %2028 = vmatprep.subr.bf16.mxu0 %v1584
    %2029 = vmatpush1.bf16.msra.mxu0 %v1583
    %2030 = vmatprep.subr.bf16.mxu0 %v1600
    %2031 = vmatpush1.bf16.msra.mxu0 %v1599
    %2032 = vmatprep.subr.bf16.mxu0 0
    %2033 = vmatpush1.bf16.msra.mxu0 0
    %2034 = vmatprep.subr.bf16.mxu0 0
    %2035 = vmatpush1.bf16.msra.mxu0 0
    %2036 = vmatprep.subr.bf16.mxu0 0
    %2037 = vmatpush1.bf16.msra.mxu0 0
    %2038 = vmatprep.subr.bf16.mxu0 0
    %2039 = vmatpush1.bf16.msra.mxu0 0
    %2040 = vmatprep.subr.bf16.mxu0 0
    %2041 = vmatpush1.bf16.msra.mxu0 0
    %2042 = vmatprep.subr.bf16.mxu0 0
    %2043 = vmatpush1.bf16.msra.mxu0 0
    %2044 = vmatprep.subr.bf16.mxu0 0
    %2045 = vmatpush1.bf16.msra.mxu0 0
    %2046 = vmatprep.subr.bf16.mxu0 0
    %2047 = vmatpush1.bf16.msra.mxu0 0
    %2048 = vmatprep.mubr.bf16.mxu0 0
    %2049 = vmatmul.mubr.bf16.gmra.mrb[0].mxu0 %v876
    %v2050 = vpop.f32.mrb[0].mxu0
    %v2051 = vadd.f32 %v1068, %v2050
    %v2052 = vpop.f32.mrb[0].mxu0
    %v2053 = vadd.f32 %v1072, %v2052
    %v2054 = vpop.f32.mrb[0].mxu0
    %v2055 = vpop.f32.mrb[0].mxu0
    %2056 = vdwg.mxu0
    %v2057 = vmax.f32 %v1764, 0.0
    %v2058 = vmax.f32 %v1766, 0.0
    %v2059 = vmax.f32 %v1805, 0.0
    %v2060 = vmax.f32 %v1807, 0.0
    %v2061 = vmax.f32 %v1846, 0.0
    %v2062 = vmax.f32 %v1848, 0.0
    %v2063 = vmax.f32 %v1887, 0.0
    %v2064 = vmax.f32 %v1889, 0.0
    %v2065 = vmax.f32 %v1928, 0.0
    %v2066 = vmax.f32 %v1930, 0.0
    %v2067 = vmax.f32 %v1969, 0.0
    %v2068 = vmax.f32 %v1971, 0.0
    %v2069 = vmax.f32 %v2010, 0.0
    %v2070 = vmax.f32 %v2012, 0.0
    %v2071 = vmax.f32 %v2051, 0.0
    %v2072 = vmax.f32 %v2053, 0.0
    %v2073 = vmul.f32 %v762, %v2057
    %v2074 = vmul.f32 %v763, %v2058
    %v2075 = vmul.f32 %v762, %v2059
    %v2076 = vmul.f32 %v763, %v2060
    %v2077 = vmul.f32 %v762, %v2061
    %v2078 = vmul.f32 %v763, %v2062
    %v2079 = vmul.f32 %v762, %v2063
    %v2080 = vmul.f32 %v763, %v2064
    %v2081 = vmul.f32 %v762, %v2065
    %v2082 = vmul.f32 %v763, %v2066
    %v2083 = vmul.f32 %v762, %v2067
    %v2084 = vmul.f32 %v763, %v2068
    %v2085 = vmul.f32 %v762, %v2069
    %v2086 = vmul.f32 %v763, %v2070
    %v2087 = vmul.f32 %v762, %v2071
    %v2088 = vmul.f32 %v763, %v2072
    %v2089 = vpack.c.bf16 %v2073, %v2073
    %v2090 = vpack.c.bf16 %v2074, %v2074
    %v2091 = vpack.c.bf16 %v2075, %v2075
    %v2092 = vpack.c.bf16 %v2076, %v2076
    %v2093 = vpack.c.bf16 %v2077, %v2077
    %v2094 = vpack.c.bf16 %v2078, %v2078
    %v2095 = vpack.c.bf16 %v2079, %v2079
    %v2096 = vpack.c.bf16 %v2080, %v2080
    %v2097 = vpack.c.bf16 %v2081, %v2081
    %v2098 = vpack.c.bf16 %v2082, %v2082
    %v2099 = vpack.c.bf16 %v2083, %v2083
    %v2100 = vpack.c.bf16 %v2084, %v2084
    %v2101 = vpack.c.bf16 %v2085, %v2085
    %v2102 = vpack.c.bf16 %v2086, %v2086
    %v2103 = vpack.c.bf16 %v2087, %v2087
    %v2104 = vpack.c.bf16 %v2088, %v2088
    %v2105 = vld [vmem:[#allocation11] sm:$0xf]
    %v2106 = vld [vmem:[#allocation11 + $0x4] sm:$0xf]
    %v2107 = vld [vmem:[#allocation11 + $0x8] sm:$0xf]
    %v2108 = vld [vmem:[#allocation11 + $0xc] sm:$0xf]
    %v2109 = vld [vmem:[#allocation11 + $0x10] sm:$0xf]
    %v2110 = vld [vmem:[#allocation11 + $0x14] sm:$0xf]
    %v2111 = vld [vmem:[#allocation11 + $0x18] sm:$0xf]
    %v2112 = vld [vmem:[#allocation11 + $0x1c] sm:$0xf]
    %v2113 = vld [vmem:[#allocation11 + $0x20] sm:$0xf]
    %v2114 = vld [vmem:[#allocation11 + $0x24] sm:$0xf]
    %v2115 = vld [vmem:[#allocation11 + $0x28] sm:$0xf]
    %v2116 = vld [vmem:[#allocation11 + $0x2c] sm:$0xf]
    %v2117 = vld [vmem:[#allocation11 + $0x30] sm:$0xf]
    %v2118 = vld [vmem:[#allocation11 + $0x34] sm:$0xf]
    %v2119 = vld [vmem:[#allocation11 + $0x38] sm:$0xf]
    %v2120 = vld [vmem:[#allocation11 + $0x3c] sm:$0xf]
    %v2121 = vld [vmem:[#allocation11 + $0x40] sm:$0xf]
    %v2122 = vld [vmem:[#allocation11 + $0x44] sm:$0xf]
    %v2123 = vld [vmem:[#allocation11 + $0x48] sm:$0xf]
    %v2124 = vld [vmem:[#allocation11 + $0x4c] sm:$0xf]
    %v2125 = vld [vmem:[#allocation11 + $0x50] sm:$0xf]
    %v2126 = vld [vmem:[#allocation11 + $0x54] sm:$0xf]
    %v2127 = vld [vmem:[#allocation11 + $0x58] sm:$0xf]
    %v2128 = vld [vmem:[#allocation11 + $0x5c] sm:$0xf]
    %v2129 = vld [vmem:[#allocation11 + $0x60] sm:$0xf]
    %v2130 = vld [vmem:[#allocation11 + $0x64] sm:$0xf]
    %v2131 = vld [vmem:[#allocation11 + $0x68] sm:$0xf]
    %v2132 = vld [vmem:[#allocation11 + $0x6c] sm:$0xf]
    %v2133 = vld [vmem:[#allocation11 + $0x70] sm:$0xf]
    %v2134 = vld [vmem:[#allocation11 + $0x74] sm:$0xf]
    %v2135 = vld [vmem:[#allocation11 + $0x78] sm:$0xf]
    %v2136 = vld [vmem:[#allocation11 + $0x7c] sm:$0xf]
    %v2137 = vld [vmem:[#allocation11 + $0x80] sm:$0xf]
    %v2138 = vld [vmem:[#allocation11 + $0x84] sm:$0xf]
    %v2139 = vld [vmem:[#allocation11 + $0x88] sm:$0xf]
    %v2140 = vld [vmem:[#allocation11 + $0x8c] sm:$0xf]
    %v2141 = vld [vmem:[#allocation11 + $0x90] sm:$0xf]
    %v2142 = vld [vmem:[#allocation11 + $0x94] sm:$0xf]
    %v2143 = vld [vmem:[#allocation11 + $0x98] sm:$0xf]
    %v2144 = vld [vmem:[#allocation11 + $0x9c] sm:$0xf]
    %v2145 = vld [vmem:[#allocation11 + $0xa0] sm:$0xf]
    %v2146 = vld [vmem:[#allocation11 + $0xa4] sm:$0xf]
    %v2147 = vld [vmem:[#allocation11 + $0xa8] sm:$0xf]
    %v2148 = vld [vmem:[#allocation11 + $0xac] sm:$0xf]
    %v2149 = vld [vmem:[#allocation11 + $0xb0] sm:$0xf]
    %v2150 = vld [vmem:[#allocation11 + $0xb4] sm:$0xf]
    %v2151 = vld [vmem:[#allocation11 + $0xb8] sm:$0xf]
    %v2152 = vld [vmem:[#allocation11 + $0xbc] sm:$0xf]
    %v2153 = vld [vmem:[#allocation11 + $0xc0] sm:$0xf]
    %v2154 = vld [vmem:[#allocation11 + $0xc4] sm:$0xf]
    %v2155 = vld [vmem:[#allocation11 + $0xc8] sm:$0xf]
    %v2156 = vld [vmem:[#allocation11 + $0xcc] sm:$0xf]
    %v2157 = vld [vmem:[#allocation11 + $0xd0] sm:$0xf]
    %v2158 = vld [vmem:[#allocation11 + $0xd4] sm:$0xf]
    %v2159 = vld [vmem:[#allocation11 + $0xd8] sm:$0xf]
    %v2160 = vld [vmem:[#allocation11 + $0xdc] sm:$0xf]
    %v2161 = vld [vmem:[#allocation11 + $0xe0] sm:$0xf]
    %v2162 = vld [vmem:[#allocation11 + $0xe4] sm:$0xf]
    %v2163 = vld [vmem:[#allocation11 + $0xe8] sm:$0xf]
    %v2164 = vld [vmem:[#allocation11 + $0xec] sm:$0xf]
    %v2165 = vld [vmem:[#allocation11 + $0xf0] sm:$0xf]
    %v2166 = vld [vmem:[#allocation11 + $0xf4] sm:$0xf]
    %v2167 = vld [vmem:[#allocation11 + $0xf8] sm:$0xf]
    %v2168 = vld [vmem:[#allocation11 + $0xfc] sm:$0xf]
    %v2169 = vld [vmem:[#allocation11 + $0x100] sm:$0xf]
    %v2170 = vld [vmem:[#allocation11 + $0x104] sm:$0xf]
    %v2171 = vld [vmem:[#allocation11 + $0x108] sm:$0xf]
    %v2172 = vld [vmem:[#allocation11 + $0x10c] sm:$0xf]
    %v2173 = vld [vmem:[#allocation11 + $0x110] sm:$0xf]
    %v2174 = vld [vmem:[#allocation11 + $0x114] sm:$0xf]
    %v2175 = vld [vmem:[#allocation11 + $0x118] sm:$0xf]
    %v2176 = vld [vmem:[#allocation11 + $0x11c] sm:$0xf]
    %v2177 = vld [vmem:[#allocation11 + $0x120] sm:$0xf]
    %v2178 = vld [vmem:[#allocation11 + $0x124] sm:$0xf]
    %v2179 = vld [vmem:[#allocation11 + $0x128] sm:$0xf]
    %v2180 = vld [vmem:[#allocation11 + $0x12c] sm:$0xf]
    %v2181 = vld [vmem:[#allocation11 + $0x130] sm:$0xf]
    %v2182 = vld [vmem:[#allocation11 + $0x134] sm:$0xf]
    %v2183 = vld [vmem:[#allocation11 + $0x138] sm:$0xf]
    %v2184 = vld [vmem:[#allocation11 + $0x13c] sm:$0xf]
    %v2185 = vld [vmem:[#allocation11 + $0x140] sm:$0xf]
    %v2186 = vld [vmem:[#allocation11 + $0x144] sm:$0xf]
    %v2187 = vld [vmem:[#allocation11 + $0x148] sm:$0xf]
    %v2188 = vld [vmem:[#allocation11 + $0x14c] sm:$0xf]
    %v2189 = vld [vmem:[#allocation11 + $0x150] sm:$0xf]
    %v2190 = vld [vmem:[#allocation11 + $0x154] sm:$0xf]
    %v2191 = vld [vmem:[#allocation11 + $0x158] sm:$0xf]
    %v2192 = vld [vmem:[#allocation11 + $0x15c] sm:$0xf]
    %v2193 = vld [vmem:[#allocation11 + $0x160] sm:$0xf]
    %v2194 = vld [vmem:[#allocation11 + $0x164] sm:$0xf]
    %v2195 = vld [vmem:[#allocation11 + $0x168] sm:$0xf]
    %v2196 = vld [vmem:[#allocation11 + $0x16c] sm:$0xf]
    %v2197 = vld [vmem:[#allocation11 + $0x170] sm:$0xf]
    %v2198 = vld [vmem:[#allocation11 + $0x174] sm:$0xf]
    %v2199 = vld [vmem:[#allocation11 + $0x178] sm:$0xf]
    %v2200 = vld [vmem:[#allocation11 + $0x17c] sm:$0xf]
    %v2201 = vld [vmem:[#allocation11 + $0x180] sm:$0xf]
    %v2202 = vld [vmem:[#allocation11 + $0x184] sm:$0xf]
    %v2203 = vld [vmem:[#allocation11 + $0x188] sm:$0xf]
    %v2204 = vld [vmem:[#allocation11 + $0x18c] sm:$0xf]
    %v2205 = vld [vmem:[#allocation11 + $0x190] sm:$0xf]
    %v2206 = vld [vmem:[#allocation11 + $0x194] sm:$0xf]
    %v2207 = vld [vmem:[#allocation11 + $0x198] sm:$0xf]
    %v2208 = vld [vmem:[#allocation11 + $0x19c] sm:$0xf]
    %v2209 = vld [vmem:[#allocation11 + $0x1a0] sm:$0xf]
    %v2210 = vld [vmem:[#allocation11 + $0x1a4] sm:$0xf]
    %v2211 = vld [vmem:[#allocation11 + $0x1a8] sm:$0xf]
    %v2212 = vld [vmem:[#allocation11 + $0x1ac] sm:$0xf]
    %v2213 = vld [vmem:[#allocation11 + $0x1b0] sm:$0xf]
    %v2214 = vld [vmem:[#allocation11 + $0x1b4] sm:$0xf]
    %v2215 = vld [vmem:[#allocation11 + $0x1b8] sm:$0xf]
    %v2216 = vld [vmem:[#allocation11 + $0x1bc] sm:$0xf]
    %v2217 = vld [vmem:[#allocation11 + $0x1c0] sm:$0xf]
    %v2218 = vld [vmem:[#allocation11 + $0x1c4] sm:$0xf]
    %v2219 = vld [vmem:[#allocation11 + $0x1c8] sm:$0xf]
    %v2220 = vld [vmem:[#allocation11 + $0x1cc] sm:$0xf]
    %v2221 = vld [vmem:[#allocation11 + $0x1d0] sm:$0xf]
    %v2222 = vld [vmem:[#allocation11 + $0x1d4] sm:$0xf]
    %v2223 = vld [vmem:[#allocation11 + $0x1d8] sm:$0xf]
    %v2224 = vld [vmem:[#allocation11 + $0x1dc] sm:$0xf]
    %v2225 = vld [vmem:[#allocation11 + $0x1e0] sm:$0xf]
    %v2226 = vld [vmem:[#allocation11 + $0x1e4] sm:$0xf]
    %v2227 = vld [vmem:[#allocation11 + $0x1e8] sm:$0xf]
    %v2228 = vld [vmem:[#allocation11 + $0x1ec] sm:$0xf]
    %v2229 = vld [vmem:[#allocation11 + $0x1f0] sm:$0xf]
    %v2230 = vld [vmem:[#allocation11 + $0x1f4] sm:$0xf]
    %v2231 = vld [vmem:[#allocation11 + $0x1f8] sm:$0xf]
    %v2232 = vld [vmem:[#allocation11 + $0x1fc] sm:$0xf]
    %v2233 = vld [vmem:[#allocation11 + $0x200] sm:$0xf]
    %v2234 = vld [vmem:[#allocation11 + $0x204] sm:$0xf]
    %v2235 = vld [vmem:[#allocation11 + $0x208] sm:$0xf]
    %v2236 = vld [vmem:[#allocation11 + $0x20c] sm:$0xf]
    %v2237 = vld [vmem:[#allocation11 + $0x210] sm:$0xf]
    %v2238 = vld [vmem:[#allocation11 + $0x214] sm:$0xf]
    %v2239 = vld [vmem:[#allocation11 + $0x218] sm:$0xf]
    %v2240 = vld [vmem:[#allocation11 + $0x21c] sm:$0xf]
    %v2241 = vld [vmem:[#allocation11 + $0x220] sm:$0xf]
    %v2242 = vld [vmem:[#allocation11 + $0x224] sm:$0xf]
    %v2243 = vld [vmem:[#allocation11 + $0x228] sm:$0xf]
    %v2244 = vld [vmem:[#allocation11 + $0x22c] sm:$0xf]
    %v2245 = vld [vmem:[#allocation11 + $0x230] sm:$0xf]
    %v2246 = vld [vmem:[#allocation11 + $0x234] sm:$0xf]
    %v2247 = vld [vmem:[#allocation11 + $0x238] sm:$0xf]
    %v2248 = vld [vmem:[#allocation11 + $0x23c] sm:$0xf]
    %v2249 = vld [vmem:[#allocation11 + $0x240] sm:$0xf]
    %v2250 = vld [vmem:[#allocation11 + $0x244] sm:$0xf]
    %v2251 = vld [vmem:[#allocation11 + $0x248] sm:$0xf]
    %v2252 = vld [vmem:[#allocation11 + $0x24c] sm:$0xf]
    %v2253 = vld [vmem:[#allocation11 + $0x250] sm:$0xf]
    %v2254 = vld [vmem:[#allocation11 + $0x254] sm:$0xf]
    %v2255 = vld [vmem:[#allocation11 + $0x258] sm:$0xf]
    %v2256 = vld [vmem:[#allocation11 + $0x25c] sm:$0xf]
    %v2257 = vld [vmem:[#allocation11 + $0x260] sm:$0xf]
    %v2258 = vld [vmem:[#allocation11 + $0x264] sm:$0xf]
    %v2259 = vld [vmem:[#allocation11 + $0x268] sm:$0xf]
    %v2260 = vld [vmem:[#allocation11 + $0x26c] sm:$0xf]
    %v2261 = vld [vmem:[#allocation11 + $0x270] sm:$0xf]
    %v2262 = vld [vmem:[#allocation11 + $0x274] sm:$0xf]
    %v2263 = vld [vmem:[#allocation11 + $0x278] sm:$0xf]
    %v2264 = vld [vmem:[#allocation11 + $0x27c] sm:$0xf]
    %v2265 = vld [vmem:[#allocation11 + $0x280] sm:$0xf]
    %v2266 = vld [vmem:[#allocation11 + $0x284] sm:$0xf]
    %v2267 = vld [vmem:[#allocation11 + $0x288] sm:$0xf]
    %v2268 = vld [vmem:[#allocation11 + $0x28c] sm:$0xf]
    %v2269 = vld [vmem:[#allocation11 + $0x290] sm:$0xf]
    %v2270 = vld [vmem:[#allocation11 + $0x294] sm:$0xf]
    %v2271 = vld [vmem:[#allocation11 + $0x298] sm:$0xf]
    %v2272 = vld [vmem:[#allocation11 + $0x29c] sm:$0xf]
    %v2273 = vld [vmem:[#allocation11 + $0x2a0] sm:$0xf]
    %v2274 = vld [vmem:[#allocation11 + $0x2a4] sm:$0xf]
    %v2275 = vld [vmem:[#allocation11 + $0x2a8] sm:$0xf]
    %v2276 = vld [vmem:[#allocation11 + $0x2ac] sm:$0xf]
    %v2277 = vld [vmem:[#allocation11 + $0x2b0] sm:$0xf]
    %v2278 = vld [vmem:[#allocation11 + $0x2b4] sm:$0xf]
    %v2279 = vld [vmem:[#allocation11 + $0x2b8] sm:$0xf]
    %v2280 = vld [vmem:[#allocation11 + $0x2bc] sm:$0xf]
    %v2281 = vld [vmem:[#allocation11 + $0x2c0] sm:$0xf]
    %v2282 = vld [vmem:[#allocation11 + $0x2c4] sm:$0xf]
    %v2283 = vld [vmem:[#allocation11 + $0x2c8] sm:$0xf]
    %v2284 = vld [vmem:[#allocation11 + $0x2cc] sm:$0xf]
    %v2285 = vld [vmem:[#allocation11 + $0x2d0] sm:$0xf]
    %v2286 = vld [vmem:[#allocation11 + $0x2d4] sm:$0xf]
    %v2287 = vld [vmem:[#allocation11 + $0x2d8] sm:$0xf]
    %v2288 = vld [vmem:[#allocation11 + $0x2dc] sm:$0xf]
    %v2289 = vld [vmem:[#allocation11 + $0x2e0] sm:$0xf]
    %v2290 = vld [vmem:[#allocation11 + $0x2e4] sm:$0xf]
    %v2291 = vld [vmem:[#allocation11 + $0x2e8] sm:$0xf]
    %v2292 = vld [vmem:[#allocation11 + $0x2ec] sm:$0xf]
    %v2293 = vld [vmem:[#allocation11 + $0x2f0] sm:$0xf]
    %v2294 = vld [vmem:[#allocation11 + $0x2f4] sm:$0xf]
    %v2295 = vld [vmem:[#allocation11 + $0x2f8] sm:$0xf]
    %v2296 = vld [vmem:[#allocation11 + $0x2fc] sm:$0xf]
    %v2297 = vld [vmem:[#allocation11 + $0x300] sm:$0xf]
    %v2298 = vld [vmem:[#allocation11 + $0x304] sm:$0xf]
    %v2299 = vld [vmem:[#allocation11 + $0x308] sm:$0xf]
    %v2300 = vld [vmem:[#allocation11 + $0x30c] sm:$0xf]
    %v2301 = vld [vmem:[#allocation11 + $0x310] sm:$0xf]
    %v2302 = vld [vmem:[#allocation11 + $0x314] sm:$0xf]
    %v2303 = vld [vmem:[#allocation11 + $0x318] sm:$0xf]
    %v2304 = vld [vmem:[#allocation11 + $0x31c] sm:$0xf]
    %v2305 = vld [vmem:[#allocation11 + $0x320] sm:$0xf]
    %v2306 = vld [vmem:[#allocation11 + $0x324] sm:$0xf]
    %v2307 = vld [vmem:[#allocation11 + $0x328] sm:$0xf]
    %v2308 = vld [vmem:[#allocation11 + $0x32c] sm:$0xf]
    %v2309 = vld [vmem:[#allocation11 + $0x330] sm:$0xf]
    %v2310 = vld [vmem:[#allocation11 + $0x334] sm:$0xf]
    %v2311 = vld [vmem:[#allocation11 + $0x338] sm:$0xf]
    %v2312 = vld [vmem:[#allocation11 + $0x33c] sm:$0xf]
    %v2313 = vld [vmem:[#allocation11 + $0x340] sm:$0xf]
    %v2314 = vld [vmem:[#allocation11 + $0x344] sm:$0xf]
    %v2315 = vld [vmem:[#allocation11 + $0x348] sm:$0xf]
    %v2316 = vld [vmem:[#allocation11 + $0x34c] sm:$0xf]
    %v2317 = vld [vmem:[#allocation11 + $0x350] sm:$0xf]
    %v2318 = vld [vmem:[#allocation11 + $0x354] sm:$0xf]
    %v2319 = vld [vmem:[#allocation11 + $0x358] sm:$0xf]
    %v2320 = vld [vmem:[#allocation11 + $0x35c] sm:$0xf]
    %v2321 = vld [vmem:[#allocation11 + $0x360] sm:$0xf]
    %v2322 = vld [vmem:[#allocation11 + $0x364] sm:$0xf]
    %v2323 = vld [vmem:[#allocation11 + $0x368] sm:$0xf]
    %v2324 = vld [vmem:[#allocation11 + $0x36c] sm:$0xf]
    %v2325 = vld [vmem:[#allocation11 + $0x370] sm:$0xf]
    %v2326 = vld [vmem:[#allocation11 + $0x374] sm:$0xf]
    %v2327 = vld [vmem:[#allocation11 + $0x378] sm:$0xf]
    %v2328 = vld [vmem:[#allocation11 + $0x37c] sm:$0xf]
    %v2329 = vld [vmem:[#allocation11 + $0x380] sm:$0xf]
    %v2330 = vld [vmem:[#allocation11 + $0x384] sm:$0xf]
    %v2331 = vld [vmem:[#allocation11 + $0x388] sm:$0xf]
    %v2332 = vld [vmem:[#allocation11 + $0x38c] sm:$0xf]
    %v2333 = vld [vmem:[#allocation11 + $0x390] sm:$0xf]
    %v2334 = vld [vmem:[#allocation11 + $0x394] sm:$0xf]
    %v2335 = vld [vmem:[#allocation11 + $0x398] sm:$0xf]
    %v2336 = vld [vmem:[#allocation11 + $0x39c] sm:$0xf]
    %v2337 = vld [vmem:[#allocation11 + $0x3a0] sm:$0xf]
    %v2338 = vld [vmem:[#allocation11 + $0x3a4] sm:$0xf]
    %v2339 = vld [vmem:[#allocation11 + $0x3a8] sm:$0xf]
    %v2340 = vld [vmem:[#allocation11 + $0x3ac] sm:$0xf]
    %v2341 = vld [vmem:[#allocation11 + $0x3b0] sm:$0xf]
    %v2342 = vld [vmem:[#allocation11 + $0x3b4] sm:$0xf]
    %v2343 = vld [vmem:[#allocation11 + $0x3b8] sm:$0xf]
    %v2344 = vld [vmem:[#allocation11 + $0x3bc] sm:$0xf]
    %v2345 = vld [vmem:[#allocation11 + $0x3c0] sm:$0xf]
    %v2346 = vld [vmem:[#allocation11 + $0x3c4] sm:$0xf]
    %v2347 = vld [vmem:[#allocation11 + $0x3c8] sm:$0xf]
    %v2348 = vld [vmem:[#allocation11 + $0x3cc] sm:$0xf]
    %v2349 = vld [vmem:[#allocation11 + $0x3d0] sm:$0xf]
    %v2350 = vld [vmem:[#allocation11 + $0x3d4] sm:$0xf]
    %v2351 = vld [vmem:[#allocation11 + $0x3d8] sm:$0xf]
    %v2352 = vld [vmem:[#allocation11 + $0x3dc] sm:$0xf]
    %v2353 = vld [vmem:[#allocation11 + $0x3e0] sm:$0xf]
    %v2354 = vld [vmem:[#allocation11 + $0x3e4] sm:$0xf]
    %v2355 = vld [vmem:[#allocation11 + $0x3e8] sm:$0xf]
    %v2356 = vld [vmem:[#allocation11 + $0x3ec] sm:$0xf]
    %v2357 = vld [vmem:[#allocation11 + $0x3f0] sm:$0xf]
    %v2358 = vld [vmem:[#allocation11 + $0x3f4] sm:$0xf]
    %v2359 = vld [vmem:[#allocation11 + $0x3f8] sm:$0xf]
    %v2360 = vld [vmem:[#allocation11 + $0x3fc] sm:$0xf]
    %v2361 = vld [vmem:[%s10] sm:$0x1]
    %v2363 = vlaneseq
    %v2364 = vshrl.u32 %v2363, 7
    %v2365 = vsub.s32 0, %v2364
    %v2366 = vrot.slane %v2361, %v2365
    %v2624 = vunpack.c.l.b16 %v2105
    %v2625 = vunpack.c.l.b16 %v2106
    %v2626 = vunpack.c.l.b16 %v2107
    %v2627 = vunpack.c.l.b16 %v2108
    %v2628 = vunpack.c.l.b16 %v2109
    %v2629 = vunpack.c.l.b16 %v2110
    %v2630 = vunpack.c.l.b16 %v2111
    %v2631 = vunpack.c.l.b16 %v2112
    %v2632 = vunpack.c.l.b16 %v2113
    %v2633 = vunpack.c.l.b16 %v2114
    %v2634 = vunpack.c.l.b16 %v2115
    %v2635 = vunpack.c.l.b16 %v2116
    %v2636 = vunpack.c.l.b16 %v2117
    %v2637 = vunpack.c.l.b16 %v2118
    %v2638 = vunpack.c.l.b16 %v2119
    %v2639 = vunpack.c.l.b16 %v2120
    %v2640 = vunpack.c.l.b16 %v2121
    %v2641 = vunpack.c.l.b16 %v2122
    %v2642 = vunpack.c.l.b16 %v2123
    %v2643 = vunpack.c.l.b16 %v2124
    %v2644 = vunpack.c.l.b16 %v2125
    %v2645 = vunpack.c.l.b16 %v2126
    %v2646 = vunpack.c.l.b16 %v2127
    %v2647 = vunpack.c.l.b16 %v2128
    %v2648 = vunpack.c.l.b16 %v2129
    %v2649 = vunpack.c.l.b16 %v2130
    %v2650 = vunpack.c.l.b16 %v2131
    %v2651 = vunpack.c.l.b16 %v2132
    %v2652 = vunpack.c.l.b16 %v2133
    %v2653 = vunpack.c.l.b16 %v2134
    %v2654 = vunpack.c.l.b16 %v2135
    %v2655 = vunpack.c.l.b16 %v2136
    %v2656 = vunpack.c.l.b16 %v2137
    %v2657 = vunpack.c.l.b16 %v2138
    %v2658 = vunpack.c.l.b16 %v2139
    %v2659 = vunpack.c.l.b16 %v2140
    %v2660 = vunpack.c.l.b16 %v2141
    %v2661 = vunpack.c.l.b16 %v2142
    %v2662 = vunpack.c.l.b16 %v2143
    %v2663 = vunpack.c.l.b16 %v2144
    %v2664 = vunpack.c.l.b16 %v2145
    %v2665 = vunpack.c.l.b16 %v2146
    %v2666 = vunpack.c.l.b16 %v2147
    %v2667 = vunpack.c.l.b16 %v2148
    %v2668 = vunpack.c.l.b16 %v2149
    %v2669 = vunpack.c.l.b16 %v2150
    %v2670 = vunpack.c.l.b16 %v2151
    %v2671 = vunpack.c.l.b16 %v2152
    %v2672 = vunpack.c.l.b16 %v2153
    %v2673 = vunpack.c.l.b16 %v2154
    %v2674 = vunpack.c.l.b16 %v2155
    %v2675 = vunpack.c.l.b16 %v2156
    %v2676 = vunpack.c.l.b16 %v2157
    %v2677 = vunpack.c.l.b16 %v2158
    %v2678 = vunpack.c.l.b16 %v2159
    %v2679 = vunpack.c.l.b16 %v2160
    %v2680 = vunpack.c.l.b16 %v2161
    %v2681 = vunpack.c.l.b16 %v2162
    %v2682 = vunpack.c.l.b16 %v2163
    %v2683 = vunpack.c.l.b16 %v2164
    %v2684 = vunpack.c.l.b16 %v2165
    %v2685 = vunpack.c.l.b16 %v2166
    %v2686 = vunpack.c.l.b16 %v2167
    %v2687 = vunpack.c.l.b16 %v2168
    %v2688 = vunpack.c.l.b16 %v2169
    %v2689 = vunpack.c.l.b16 %v2170
    %v2690 = vunpack.c.l.b16 %v2171
    %v2691 = vunpack.c.l.b16 %v2172
    %v2692 = vunpack.c.l.b16 %v2173
    %v2693 = vunpack.c.l.b16 %v2174
    %v2694 = vunpack.c.l.b16 %v2175
    %v2695 = vunpack.c.l.b16 %v2176
    %v2696 = vunpack.c.l.b16 %v2177
    %v2697 = vunpack.c.l.b16 %v2178
    %v2698 = vunpack.c.l.b16 %v2179
    %v2699 = vunpack.c.l.b16 %v2180
    %v2700 = vunpack.c.l.b16 %v2181
    %v2701 = vunpack.c.l.b16 %v2182
    %v2702 = vunpack.c.l.b16 %v2183
    %v2703 = vunpack.c.l.b16 %v2184
    %v2704 = vunpack.c.l.b16 %v2185
    %v2705 = vunpack.c.l.b16 %v2186
    %v2706 = vunpack.c.l.b16 %v2187
    %v2707 = vunpack.c.l.b16 %v2188
    %v2708 = vunpack.c.l.b16 %v2189
    %v2709 = vunpack.c.l.b16 %v2190
    %v2710 = vunpack.c.l.b16 %v2191
    %v2711 = vunpack.c.l.b16 %v2192
    %v2712 = vunpack.c.l.b16 %v2193
    %v2713 = vunpack.c.l.b16 %v2194
    %v2714 = vunpack.c.l.b16 %v2195
    %v2715 = vunpack.c.l.b16 %v2196
    %v2716 = vunpack.c.l.b16 %v2197
    %v2717 = vunpack.c.l.b16 %v2198
    %v2718 = vunpack.c.l.b16 %v2199
    %v2719 = vunpack.c.l.b16 %v2200
    %v2720 = vunpack.c.l.b16 %v2201
    %v2721 = vunpack.c.l.b16 %v2202
    %v2722 = vunpack.c.l.b16 %v2203
    %v2723 = vunpack.c.l.b16 %v2204
    %v2724 = vunpack.c.l.b16 %v2205
    %v2725 = vunpack.c.l.b16 %v2206
    %v2726 = vunpack.c.l.b16 %v2207
    %v2727 = vunpack.c.l.b16 %v2208
    %v2728 = vunpack.c.l.b16 %v2209
    %v2729 = vunpack.c.l.b16 %v2210
    %v2730 = vunpack.c.l.b16 %v2211
    %v2731 = vunpack.c.l.b16 %v2212
    %v2732 = vunpack.c.l.b16 %v2213
    %v2733 = vunpack.c.l.b16 %v2214
    %v2734 = vunpack.c.l.b16 %v2215
    %v2735 = vunpack.c.l.b16 %v2216
    %v2736 = vunpack.c.l.b16 %v2217
    %v2737 = vunpack.c.l.b16 %v2218
    %v2738 = vunpack.c.l.b16 %v2219
    %v2739 = vunpack.c.l.b16 %v2220
    %v2740 = vunpack.c.l.b16 %v2221
    %v2741 = vunpack.c.l.b16 %v2222
    %v2742 = vunpack.c.l.b16 %v2223
    %v2743 = vunpack.c.l.b16 %v2224
    %v2744 = vunpack.c.l.b16 %v2225
    %v2745 = vunpack.c.l.b16 %v2226
    %v2746 = vunpack.c.l.b16 %v2227
    %v2747 = vunpack.c.l.b16 %v2228
    %v2748 = vunpack.c.l.b16 %v2229
    %v2749 = vunpack.c.l.b16 %v2230
    %v2750 = vunpack.c.l.b16 %v2231
    %v2751 = vunpack.c.l.b16 %v2232
    %v2752 = vunpack.c.l.b16 %v2233
    %v2753 = vunpack.c.l.b16 %v2234
    %v2754 = vunpack.c.l.b16 %v2235
    %v2755 = vunpack.c.l.b16 %v2236
    %v2756 = vunpack.c.l.b16 %v2237
    %v2757 = vunpack.c.l.b16 %v2238
    %v2758 = vunpack.c.l.b16 %v2239
    %v2759 = vunpack.c.l.b16 %v2240
    %v2760 = vunpack.c.l.b16 %v2241
    %v2761 = vunpack.c.l.b16 %v2242
    %v2762 = vunpack.c.l.b16 %v2243
    %v2763 = vunpack.c.l.b16 %v2244
    %v2764 = vunpack.c.l.b16 %v2245
    %v2765 = vunpack.c.l.b16 %v2246
    %v2766 = vunpack.c.l.b16 %v2247
    %v2767 = vunpack.c.l.b16 %v2248
    %v2768 = vunpack.c.l.b16 %v2249
    %v2769 = vunpack.c.l.b16 %v2250
    %v2770 = vunpack.c.l.b16 %v2251
    %v2771 = vunpack.c.l.b16 %v2252
    %v2772 = vunpack.c.l.b16 %v2253
    %v2773 = vunpack.c.l.b16 %v2254
    %v2774 = vunpack.c.l.b16 %v2255
    %v2775 = vunpack.c.l.b16 %v2256
    %v2776 = vunpack.c.l.b16 %v2257
    %v2777 = vunpack.c.l.b16 %v2258
    %v2778 = vunpack.c.l.b16 %v2259
    %v2779 = vunpack.c.l.b16 %v2260
    %v2780 = vunpack.c.l.b16 %v2261
    %v2781 = vunpack.c.l.b16 %v2262
    %v2782 = vunpack.c.l.b16 %v2263
    %v2783 = vunpack.c.l.b16 %v2264
    %v2784 = vunpack.c.l.b16 %v2265
    %v2785 = vunpack.c.l.b16 %v2266
    %v2786 = vunpack.c.l.b16 %v2267
    %v2787 = vunpack.c.l.b16 %v2268
    %v2788 = vunpack.c.l.b16 %v2269
    %v2789 = vunpack.c.l.b16 %v2270
    %v2790 = vunpack.c.l.b16 %v2271
    %v2791 = vunpack.c.l.b16 %v2272
    %v2792 = vunpack.c.l.b16 %v2273
    %v2793 = vunpack.c.l.b16 %v2274
    %v2794 = vunpack.c.l.b16 %v2275
    %v2795 = vunpack.c.l.b16 %v2276
    %v2796 = vunpack.c.l.b16 %v2277
    %v2797 = vunpack.c.l.b16 %v2278
    %v2798 = vunpack.c.l.b16 %v2279
    %v2799 = vunpack.c.l.b16 %v2280
    %v2800 = vunpack.c.l.b16 %v2281
    %v2801 = vunpack.c.l.b16 %v2282
    %v2802 = vunpack.c.l.b16 %v2283
    %v2803 = vunpack.c.l.b16 %v2284
    %v2804 = vunpack.c.l.b16 %v2285
    %v2805 = vunpack.c.l.b16 %v2286
    %v2806 = vunpack.c.l.b16 %v2287
    %v2807 = vunpack.c.l.b16 %v2288
    %v2808 = vunpack.c.l.b16 %v2289
    %v2809 = vunpack.c.l.b16 %v2290
    %v2810 = vunpack.c.l.b16 %v2291
    %v2811 = vunpack.c.l.b16 %v2292
    %v2812 = vunpack.c.l.b16 %v2293
    %v2813 = vunpack.c.l.b16 %v2294
    %v2814 = vunpack.c.l.b16 %v2295
    %v2815 = vunpack.c.l.b16 %v2296
    %v2816 = vunpack.c.l.b16 %v2297
    %v2817 = vunpack.c.l.b16 %v2298
    %v2818 = vunpack.c.l.b16 %v2299
    %v2819 = vunpack.c.l.b16 %v2300
    %v2820 = vunpack.c.l.b16 %v2301
    %v2821 = vunpack.c.l.b16 %v2302
    %v2822 = vunpack.c.l.b16 %v2303
    %v2823 = vunpack.c.l.b16 %v2304
    %v2824 = vunpack.c.l.b16 %v2305
    %v2825 = vunpack.c.l.b16 %v2306
    %v2826 = vunpack.c.l.b16 %v2307
    %v2827 = vunpack.c.l.b16 %v2308
    %v2828 = vunpack.c.l.b16 %v2309
    %v2829 = vunpack.c.l.b16 %v2310
    %v2830 = vunpack.c.l.b16 %v2311
    %v2831 = vunpack.c.l.b16 %v2312
    %v2832 = vunpack.c.l.b16 %v2313
    %v2833 = vunpack.c.l.b16 %v2314
    %v2834 = vunpack.c.l.b16 %v2315
    %v2835 = vunpack.c.l.b16 %v2316
    %v2836 = vunpack.c.l.b16 %v2317
    %v2837 = vunpack.c.l.b16 %v2318
    %v2838 = vunpack.c.l.b16 %v2319
    %v2839 = vunpack.c.l.b16 %v2320
    %v2840 = vunpack.c.l.b16 %v2321
    %v2841 = vunpack.c.l.b16 %v2322
    %v2842 = vunpack.c.l.b16 %v2323
    %v2843 = vunpack.c.l.b16 %v2324
    %v2844 = vunpack.c.l.b16 %v2325
    %v2845 = vunpack.c.l.b16 %v2326
    %v2846 = vunpack.c.l.b16 %v2327
    %v2847 = vunpack.c.l.b16 %v2328
    %v2848 = vunpack.c.l.b16 %v2329
    %v2849 = vunpack.c.l.b16 %v2330
    %v2850 = vunpack.c.l.b16 %v2331
    %v2851 = vunpack.c.l.b16 %v2332
    %v2852 = vunpack.c.l.b16 %v2333
    %v2853 = vunpack.c.l.b16 %v2334
    %v2854 = vunpack.c.l.b16 %v2335
    %v2855 = vunpack.c.l.b16 %v2336
    %v2856 = vunpack.c.l.b16 %v2337
    %v2857 = vunpack.c.l.b16 %v2338
    %v2858 = vunpack.c.l.b16 %v2339
    %v2859 = vunpack.c.l.b16 %v2340
    %v2860 = vunpack.c.l.b16 %v2341
    %v2861 = vunpack.c.l.b16 %v2342
    %v2862 = vunpack.c.l.b16 %v2343
    %v2863 = vunpack.c.l.b16 %v2344
    %v2864 = vunpack.c.l.b16 %v2345
    %v2865 = vunpack.c.l.b16 %v2346
    %v2866 = vunpack.c.l.b16 %v2347
    %v2867 = vunpack.c.l.b16 %v2348
    %v2868 = vunpack.c.l.b16 %v2349
    %v2869 = vunpack.c.l.b16 %v2350
    %v2870 = vunpack.c.l.b16 %v2351
    %v2871 = vunpack.c.l.b16 %v2352
    %v2872 = vunpack.c.l.b16 %v2353
    %v2873 = vunpack.c.l.b16 %v2354
    %v2874 = vunpack.c.l.b16 %v2355
    %v2875 = vunpack.c.l.b16 %v2356
    %v2876 = vunpack.c.l.b16 %v2357
    %v2877 = vunpack.c.l.b16 %v2358
    %v2878 = vunpack.c.l.b16 %v2359
    %v2879 = vunpack.c.l.b16 %v2360
    %v2880 = vpack.c.b16 %v2625, %v2624
    %v2881 = vpack.c.b16 %v2627, %v2626
    %v2882 = vpack.c.b16 %v2629, %v2628
    %v2883 = vpack.c.b16 %v2631, %v2630
    %v2884 = vpack.c.b16 %v2633, %v2632
    %v2885 = vpack.c.b16 %v2635, %v2634
    %v2886 = vpack.c.b16 %v2637, %v2636
    %v2887 = vpack.c.b16 %v2639, %v2638
    %v2888 = vpack.c.b16 %v2641, %v2640
    %v2889 = vpack.c.b16 %v2643, %v2642
    %v2890 = vpack.c.b16 %v2645, %v2644
    %v2891 = vpack.c.b16 %v2647, %v2646
    %v2892 = vpack.c.b16 %v2649, %v2648
    %v2893 = vpack.c.b16 %v2651, %v2650
    %v2894 = vpack.c.b16 %v2653, %v2652
    %v2895 = vpack.c.b16 %v2655, %v2654
    %v2896 = vpack.c.b16 %v2657, %v2656
    %v2897 = vpack.c.b16 %v2659, %v2658
    %v2898 = vpack.c.b16 %v2661, %v2660
    %v2899 = vpack.c.b16 %v2663, %v2662
    %v2900 = vpack.c.b16 %v2665, %v2664
    %v2901 = vpack.c.b16 %v2667, %v2666
    %v2902 = vpack.c.b16 %v2669, %v2668
    %v2903 = vpack.c.b16 %v2671, %v2670
    %v2904 = vpack.c.b16 %v2673, %v2672
    %v2905 = vpack.c.b16 %v2675, %v2674
    %v2906 = vpack.c.b16 %v2677, %v2676
    %v2907 = vpack.c.b16 %v2679, %v2678
    %v2908 = vpack.c.b16 %v2681, %v2680
    %v2909 = vpack.c.b16 %v2683, %v2682
    %v2910 = vpack.c.b16 %v2685, %v2684
    %v2911 = vpack.c.b16 %v2687, %v2686
    %v2912 = vpack.c.b16 %v2689, %v2688
    %v2913 = vpack.c.b16 %v2691, %v2690
    %v2914 = vpack.c.b16 %v2693, %v2692
    %v2915 = vpack.c.b16 %v2695, %v2694
    %v2916 = vpack.c.b16 %v2697, %v2696
    %v2917 = vpack.c.b16 %v2699, %v2698
    %v2918 = vpack.c.b16 %v2701, %v2700
    %v2919 = vpack.c.b16 %v2703, %v2702
    %v2920 = vpack.c.b16 %v2705, %v2704
    %v2921 = vpack.c.b16 %v2707, %v2706
    %v2922 = vpack.c.b16 %v2709, %v2708
    %v2923 = vpack.c.b16 %v2711, %v2710
    %v2924 = vpack.c.b16 %v2713, %v2712
    %v2925 = vpack.c.b16 %v2715, %v2714
    %v2926 = vpack.c.b16 %v2717, %v2716
    %v2927 = vpack.c.b16 %v2719, %v2718
    %v2928 = vpack.c.b16 %v2721, %v2720
    %v2929 = vpack.c.b16 %v2723, %v2722
    %v2930 = vpack.c.b16 %v2725, %v2724
    %v2931 = vpack.c.b16 %v2727, %v2726
    %v2932 = vpack.c.b16 %v2729, %v2728
    %v2933 = vpack.c.b16 %v2731, %v2730
    %v2934 = vpack.c.b16 %v2733, %v2732
    %v2935 = vpack.c.b16 %v2735, %v2734
    %v2936 = vpack.c.b16 %v2737, %v2736
    %v2937 = vpack.c.b16 %v2739, %v2738
    %v2938 = vpack.c.b16 %v2741, %v2740
    %v2939 = vpack.c.b16 %v2743, %v2742
    %v2940 = vpack.c.b16 %v2745, %v2744
    %v2941 = vpack.c.b16 %v2747, %v2746
    %v2942 = vpack.c.b16 %v2749, %v2748
    %v2943 = vpack.c.b16 %v2751, %v2750
    %v2944 = vpack.c.b16 %v2753, %v2752
    %v2945 = vpack.c.b16 %v2755, %v2754
    %v2946 = vpack.c.b16 %v2757, %v2756
    %v2947 = vpack.c.b16 %v2759, %v2758
    %v2948 = vpack.c.b16 %v2761, %v2760
    %v2949 = vpack.c.b16 %v2763, %v2762
    %v2950 = vpack.c.b16 %v2765, %v2764
    %v2951 = vpack.c.b16 %v2767, %v2766
    %v2952 = vpack.c.b16 %v2769, %v2768
    %v2953 = vpack.c.b16 %v2771, %v2770
    %v2954 = vpack.c.b16 %v2773, %v2772
    %v2955 = vpack.c.b16 %v2775, %v2774
    %v2956 = vpack.c.b16 %v2777, %v2776
    %v2957 = vpack.c.b16 %v2779, %v2778
    %v2958 = vpack.c.b16 %v2781, %v2780
    %v2959 = vpack.c.b16 %v2783, %v2782
    %v2960 = vpack.c.b16 %v2785, %v2784
    %v2961 = vpack.c.b16 %v2787, %v2786
    %v2962 = vpack.c.b16 %v2789, %v2788
    %v2963 = vpack.c.b16 %v2791, %v2790
    %v2964 = vpack.c.b16 %v2793, %v2792
    %v2965 = vpack.c.b16 %v2795, %v2794
    %v2966 = vpack.c.b16 %v2797, %v2796
    %v2967 = vpack.c.b16 %v2799, %v2798
    %v2968 = vpack.c.b16 %v2801, %v2800
    %v2969 = vpack.c.b16 %v2803, %v2802
    %v2970 = vpack.c.b16 %v2805, %v2804
    %v2971 = vpack.c.b16 %v2807, %v2806
    %v2972 = vpack.c.b16 %v2809, %v2808
    %v2973 = vpack.c.b16 %v2811, %v2810
    %v2974 = vpack.c.b16 %v2813, %v2812
    %v2975 = vpack.c.b16 %v2815, %v2814
    %v2976 = vpack.c.b16 %v2817, %v2816
    %v2977 = vpack.c.b16 %v2819, %v2818
    %v2978 = vpack.c.b16 %v2821, %v2820
    %v2979 = vpack.c.b16 %v2823, %v2822
    %v2980 = vpack.c.b16 %v2825, %v2824
    %v2981 = vpack.c.b16 %v2827, %v2826
    %v2982 = vpack.c.b16 %v2829, %v2828
    %v2983 = vpack.c.b16 %v2831, %v2830
    %v2984 = vpack.c.b16 %v2833, %v2832
    %v2985 = vpack.c.b16 %v2835, %v2834
    %v2986 = vpack.c.b16 %v2837, %v2836
    %v2987 = vpack.c.b16 %v2839, %v2838
    %v2988 = vpack.c.b16 %v2841, %v2840
    %v2989 = vpack.c.b16 %v2843, %v2842
    %v2990 = vpack.c.b16 %v2845, %v2844
    %v2991 = vpack.c.b16 %v2847, %v2846
    %v2992 = vpack.c.b16 %v2849, %v2848
    %v2993 = vpack.c.b16 %v2851, %v2850
    %v2994 = vpack.c.b16 %v2853, %v2852
    %v2995 = vpack.c.b16 %v2855, %v2854
    %v2996 = vpack.c.b16 %v2857, %v2856
    %v2997 = vpack.c.b16 %v2859, %v2858
    %v2998 = vpack.c.b16 %v2861, %v2860
    %v2999 = vpack.c.b16 %v2863, %v2862
    %v3000 = vpack.c.b16 %v2865, %v2864
    %v3001 = vpack.c.b16 %v2867, %v2866
    %v3002 = vpack.c.b16 %v2869, %v2868
    %v3003 = vpack.c.b16 %v2871, %v2870
    %v3004 = vpack.c.b16 %v2873, %v2872
    %v3005 = vpack.c.b16 %v2875, %v2874
    %v3006 = vpack.c.b16 %v2877, %v2876
    %v3007 = vpack.c.b16 %v2879, %v2878
    %3136 = vmatprep.subr.bf16.mxu0 0
    %3137 = vmatpush1.bf16.msra.mxu0 %v2880
    %3138 = vmatprep.subr.bf16.mxu0 0
    %3139 = vmatpush1.bf16.msra.mxu0 %v2881
    %3140 = vmatprep.subr.bf16.mxu0 0
    %3141 = vmatpush1.bf16.msra.mxu0 %v2882
    %3142 = vmatprep.subr.bf16.mxu0 0
    %3143 = vmatpush1.bf16.msra.mxu0 %v2883
    %3144 = vmatprep.subr.bf16.mxu0 0
    %3145 = vmatpush1.bf16.msra.mxu0 %v2884
    %3146 = vmatprep.subr.bf16.mxu0 0
    %3147 = vmatpush1.bf16.msra.mxu0 %v2885
    %3148 = vmatprep.subr.bf16.mxu0 0
    %3149 = vmatpush1.bf16.msra.mxu0 %v2886
    %3150 = vmatprep.subr.bf16.mxu0 0
    %3151 = vmatpush1.bf16.msra.mxu0 %v2887
    %3152 = vmatprep.subr.bf16.mxu0 0
    %3153 = vmatpush1.bf16.msra.mxu0 %v2888
    %3154 = vmatprep.subr.bf16.mxu0 0
    %3155 = vmatpush1.bf16.msra.mxu0 %v2889
    %3156 = vmatprep.subr.bf16.mxu0 0
    %3157 = vmatpush1.bf16.msra.mxu0 %v2890
    %3158 = vmatprep.subr.bf16.mxu0 0
    %3159 = vmatpush1.bf16.msra.mxu0 %v2891
    %3160 = vmatprep.subr.bf16.mxu0 0
    %3161 = vmatpush1.bf16.msra.mxu0 %v2892
    %3162 = vmatprep.subr.bf16.mxu0 0
    %3163 = vmatpush1.bf16.msra.mxu0 %v2893
    %3164 = vmatprep.subr.bf16.mxu0 0
    %3165 = vmatpush1.bf16.msra.mxu0 %v2894
    %3166 = vmatprep.subr.bf16.mxu0 0
    %3167 = vmatpush1.bf16.msra.mxu0 %v2895
    %3168 = vmatprep.mubr.bf16.mxu0 %v2090
    %3169 = vmatmul.mubr.bf16.gmra.mrb[0].mxu0 %v2089
    %v3170 = vpop.f32.mrb[0].mxu0
    %v3171 = vadd.f32 %v2366, %v3170
    %v3172 = vpop.f32.mrb[0].mxu0
    %v3173 = vpop.f32.mrb[0].mxu0
    %v3174 = vpop.f32.mrb[0].mxu0
    %3175 = vdwg.mxu0
    %3176 = vmatprep.subr.bf16.mxu0 0
    %3177 = vmatpush1.bf16.msra.mxu0 %v2896
    %3178 = vmatprep.subr.bf16.mxu0 0
    %3179 = vmatpush1.bf16.msra.mxu0 %v2897
    %3180 = vmatprep.subr.bf16.mxu0 0
    %3181 = vmatpush1.bf16.msra.mxu0 %v2898
    %3182 = vmatprep.subr.bf16.mxu0 0
    %3183 = vmatpush1.bf16.msra.mxu0 %v2899
    %3184 = vmatprep.subr.bf16.mxu0 0
    %3185 = vmatpush1.bf16.msra.mxu0 %v2900
    %3186 = vmatprep.subr.bf16.mxu0 0
    %3187 = vmatpush1.bf16.msra.mxu0 %v2901
    %3188 = vmatprep.subr.bf16.mxu0 0
    %3189 = vmatpush1.bf16.msra.mxu0 %v2902
    %3190 = vmatprep.subr.bf16.mxu0 0
    %3191 = vmatpush1.bf16.msra.mxu0 %v2903
    %3192 = vmatprep.subr.bf16.mxu0 0
    %3193 = vmatpush1.bf16.msra.mxu0 %v2904
    %3194 = vmatprep.subr.bf16.mxu0 0
    %3195 = vmatpush1.bf16.msra.mxu0 %v2905
    %3196 = vmatprep.subr.bf16.mxu0 0
    %3197 = vmatpush1.bf16.msra.mxu0 %v2906
    %3198 = vmatprep.subr.bf16.mxu0 0
    %3199 = vmatpush1.bf16.msra.mxu0 %v2907
    %3200 = vmatprep.subr.bf16.mxu0 0
    %3201 = vmatpush1.bf16.msra.mxu0 %v2908
    %3202 = vmatprep.subr.bf16.mxu0 0
    %3203 = vmatpush1.bf16.msra.mxu0 %v2909
    %3204 = vmatprep.subr.bf16.mxu0 0
    %3205 = vmatpush1.bf16.msra.mxu0 %v2910
    %3206 = vmatprep.subr.bf16.mxu0 0
    %3207 = vmatpush1.bf16.msra.mxu0 %v2911
    %3208 = vmatprep.mubr.bf16.mxu0 %v2092
    %3209 = vmatmul.mubr.bf16.gmra.mrb[0].mxu0 %v2091
    %v3210 = vpop.f32.mrb[0].mxu0
    %v3211 = vadd.f32 %v3171, %v3210
    %v3212 = vpop.f32.mrb[0].mxu0
    %v3213 = vpop.f32.mrb[0].mxu0
    %v3214 = vpop.f32.mrb[0].mxu0
    %3215 = vdwg.mxu0
    %3216 = vmatprep.subr.bf16.mxu0 0
    %3217 = vmatpush1.bf16.msra.mxu0 %v2912
    %3218 = vmatprep.subr.bf16.mxu0 0
    %3219 = vmatpush1.bf16.msra.mxu0 %v2913
    %3220 = vmatprep.subr.bf16.mxu0 0
    %3221 = vmatpush1.bf16.msra.mxu0 %v2914
    %3222 = vmatprep.subr.bf16.mxu0 0
    %3223 = vmatpush1.bf16.msra.mxu0 %v2915
    %3224 = vmatprep.subr.bf16.mxu0 0
    %3225 = vmatpush1.bf16.msra.mxu0 %v2916
    %3226 = vmatprep.subr.bf16.mxu0 0
    %3227 = vmatpush1.bf16.msra.mxu0 %v2917
    %3228 = vmatprep.subr.bf16.mxu0 0
    %3229 = vmatpush1.bf16.msra.mxu0 %v2918
    %3230 = vmatprep.subr.bf16.mxu0 0
    %3231 = vmatpush1.bf16.msra.mxu0 %v2919
    %3232 = vmatprep.subr.bf16.mxu0 0
    %3233 = vmatpush1.bf16.msra.mxu0 %v2920
    %3234 = vmatprep.subr.bf16.mxu0 0
    %3235 = vmatpush1.bf16.msra.mxu0 %v2921
    %3236 = vmatprep.subr.bf16.mxu0 0
    %3237 = vmatpush1.bf16.msra.mxu0 %v2922
    %3238 = vmatprep.subr.bf16.mxu0 0
    %3239 = vmatpush1.bf16.msra.mxu0 %v2923
    %3240 = vmatprep.subr.bf16.mxu0 0
    %3241 = vmatpush1.bf16.msra.mxu0 %v2924
    %3242 = vmatprep.subr.bf16.mxu0 0
    %3243 = vmatpush1.bf16.msra.mxu0 %v2925
    %3244 = vmatprep.subr.bf16.mxu0 0
    %3245 = vmatpush1.bf16.msra.mxu0 %v2926
    %3246 = vmatprep.subr.bf16.mxu0 0
    %3247 = vmatpush1.bf16.msra.mxu0 %v2927
    %3248 = vmatprep.mubr.bf16.mxu0 %v2094
    %3249 = vmatmul.mubr.bf16.gmra.mrb[0].mxu0 %v2093
    %v3250 = vpop.f32.mrb[0].mxu0
    %v3251 = vadd.f32 %v3211, %v3250
    %v3252 = vpop.f32.mrb[0].mxu0
    %v3253 = vpop.f32.mrb[0].mxu0
    %v3254 = vpop.f32.mrb[0].mxu0
    %3255 = vdwg.mxu0
    %3256 = vmatprep.subr.bf16.mxu0 0
    %3257 = vmatpush1.bf16.msra.mxu0 %v2928
    %3258 = vmatprep.subr.bf16.mxu0 0
    %3259 = vmatpush1.bf16.msra.mxu0 %v2929
    %3260 = vmatprep.subr.bf16.mxu0 0
    %3261 = vmatpush1.bf16.msra.mxu0 %v2930
    %3262 = vmatprep.subr.bf16.mxu0 0
    %3263 = vmatpush1.bf16.msra.mxu0 %v2931
    %3264 = vmatprep.subr.bf16.mxu0 0
    %3265 = vmatpush1.bf16.msra.mxu0 %v2932
    %3266 = vmatprep.subr.bf16.mxu0 0
    %3267 = vmatpush1.bf16.msra.mxu0 %v2933
    %3268 = vmatprep.subr.bf16.mxu0 0
    %3269 = vmatpush1.bf16.msra.mxu0 %v2934
    %3270 = vmatprep.subr.bf16.mxu0 0
    %3271 = vmatpush1.bf16.msra.mxu0 %v2935
    %3272 = vmatprep.subr.bf16.mxu0 0
    %3273 = vmatpush1.bf16.msra.mxu0 %v2936
    %3274 = vmatprep.subr.bf16.mxu0 0
    %3275 = vmatpush1.bf16.msra.mxu0 %v2937
    %3276 = vmatprep.subr.bf16.mxu0 0
    %3277 = vmatpush1.bf16.msra.mxu0 %v2938
    %3278 = vmatprep.subr.bf16.mxu0 0
    %3279 = vmatpush1.bf16.msra.mxu0 %v2939
    %3280 = vmatprep.subr.bf16.mxu0 0
    %3281 = vmatpush1.bf16.msra.mxu0 %v2940
    %3282 = vmatprep.subr.bf16.mxu0 0
    %3283 = vmatpush1.bf16.msra.mxu0 %v2941
    %3284 = vmatprep.subr.bf16.mxu0 0
    %3285 = vmatpush1.bf16.msra.mxu0 %v2942
    %3286 = vmatprep.subr.bf16.mxu0 0
    %3287 = vmatpush1.bf16.msra.mxu0 %v2943
    %3288 = vmatprep.mubr.bf16.mxu0 %v2096
    %3289 = vmatmul.mubr.bf16.gmra.mrb[0].mxu0 %v2095
    %v3290 = vpop.f32.mrb[0].mxu0
    %v3291 = vadd.f32 %v3251, %v3290
    %v3292 = vpop.f32.mrb[0].mxu0
    %v3293 = vpop.f32.mrb[0].mxu0
    %v3294 = vpop.f32.mrb[0].mxu0
    %3295 = vdwg.mxu0
    %3296 = vmatprep.subr.bf16.mxu0 0
    %3297 = vmatpush1.bf16.msra.mxu0 %v2944
    %3298 = vmatprep.subr.bf16.mxu0 0
    %3299 = vmatpush1.bf16.msra.mxu0 %v2945
    %3300 = vmatprep.subr.bf16.mxu0 0
    %3301 = vmatpush1.bf16.msra.mxu0 %v2946
    %3302 = vmatprep.subr.bf16.mxu0 0
    %3303 = vmatpush1.bf16.msra.mxu0 %v2947
    %3304 = vmatprep.subr.bf16.mxu0 0
    %3305 = vmatpush1.bf16.msra.mxu0 %v2948
    %3306 = vmatprep.subr.bf16.mxu0 0
    %3307 = vmatpush1.bf16.msra.mxu0 %v2949
    %3308 = vmatprep.subr.bf16.mxu0 0
    %3309 = vmatpush1.bf16.msra.mxu0 %v2950
    %3310 = vmatprep.subr.bf16.mxu0 0
    %3311 = vmatpush1.bf16.msra.mxu0 %v2951
    %3312 = vmatprep.subr.bf16.mxu0 0
    %3313 = vmatpush1.bf16.msra.mxu0 %v2952
    %3314 = vmatprep.subr.bf16.mxu0 0
    %3315 = vmatpush1.bf16.msra.mxu0 %v2953
    %3316 = vmatprep.subr.bf16.mxu0 0
    %3317 = vmatpush1.bf16.msra.mxu0 %v2954
    %3318 = vmatprep.subr.bf16.mxu0 0
    %3319 = vmatpush1.bf16.msra.mxu0 %v2955
    %3320 = vmatprep.subr.bf16.mxu0 0
    %3321 = vmatpush1.bf16.msra.mxu0 %v2956
    %3322 = vmatprep.subr.bf16.mxu0 0
    %3323 = vmatpush1.bf16.msra.mxu0 %v2957
    %3324 = vmatprep.subr.bf16.mxu0 0
    %3325 = vmatpush1.bf16.msra.mxu0 %v2958
    %3326 = vmatprep.subr.bf16.mxu0 0
    %3327 = vmatpush1.bf16.msra.mxu0 %v2959
    %3328 = vmatprep.mubr.bf16.mxu0 %v2098
    %3329 = vmatmul.mubr.bf16.gmra.mrb[0].mxu0 %v2097
    %v3330 = vpop.f32.mrb[0].mxu0
    %v3331 = vadd.f32 %v3291, %v3330
    %v3332 = vpop.f32.mrb[0].mxu0
    %v3333 = vpop.f32.mrb[0].mxu0
    %v3334 = vpop.f32.mrb[0].mxu0
    %3335 = vdwg.mxu0
    %3336 = vmatprep.subr.bf16.mxu0 0
    %3337 = vmatpush1.bf16.msra.mxu0 %v2960
    %3338 = vmatprep.subr.bf16.mxu0 0
    %3339 = vmatpush1.bf16.msra.mxu0 %v2961
    %3340 = vmatprep.subr.bf16.mxu0 0
    %3341 = vmatpush1.bf16.msra.mxu0 %v2962
    %3342 = vmatprep.subr.bf16.mxu0 0
    %3343 = vmatpush1.bf16.msra.mxu0 %v2963
    %3344 = vmatprep.subr.bf16.mxu0 0
    %3345 = vmatpush1.bf16.msra.mxu0 %v2964
    %3346 = vmatprep.subr.bf16.mxu0 0
    %3347 = vmatpush1.bf16.msra.mxu0 %v2965
    %3348 = vmatprep.subr.bf16.mxu0 0
    %3349 = vmatpush1.bf16.msra.mxu0 %v2966
    %3350 = vmatprep.subr.bf16.mxu0 0
    %3351 = vmatpush1.bf16.msra.mxu0 %v2967
    %3352 = vmatprep.subr.bf16.mxu0 0
    %3353 = vmatpush1.bf16.msra.mxu0 %v2968
    %3354 = vmatprep.subr.bf16.mxu0 0
    %3355 = vmatpush1.bf16.msra.mxu0 %v2969
    %3356 = vmatprep.subr.bf16.mxu0 0
    %3357 = vmatpush1.bf16.msra.mxu0 %v2970
    %3358 = vmatprep.subr.bf16.mxu0 0
    %3359 = vmatpush1.bf16.msra.mxu0 %v2971
    %3360 = vmatprep.subr.bf16.mxu0 0
    %3361 = vmatpush1.bf16.msra.mxu0 %v2972
    %3362 = vmatprep.subr.bf16.mxu0 0
    %3363 = vmatpush1.bf16.msra.mxu0 %v2973
    %3364 = vmatprep.subr.bf16.mxu0 0
    %3365 = vmatpush1.bf16.msra.mxu0 %v2974
    %3366 = vmatprep.subr.bf16.mxu0 0
    %3367 = vmatpush1.bf16.msra.mxu0 %v2975
    %3368 = vmatprep.mubr.bf16.mxu0 %v2100
    %3369 = vmatmul.mubr.bf16.gmra.mrb[0].mxu0 %v2099
    %v3370 = vpop.f32.mrb[0].mxu0
    %v3371 = vadd.f32 %v3331, %v3370
    %v3372 = vpop.f32.mrb[0].mxu0
    %v3373 = vpop.f32.mrb[0].mxu0
    %v3374 = vpop.f32.mrb[0].mxu0
    %3375 = vdwg.mxu0
    %3376 = vmatprep.subr.bf16.mxu0 0
    %3377 = vmatpush1.bf16.msra.mxu0 %v2976
    %3378 = vmatprep.subr.bf16.mxu0 0
    %3379 = vmatpush1.bf16.msra.mxu0 %v2977
    %3380 = vmatprep.subr.bf16.mxu0 0
    %3381 = vmatpush1.bf16.msra.mxu0 %v2978
    %3382 = vmatprep.subr.bf16.mxu0 0
    %3383 = vmatpush1.bf16.msra.mxu0 %v2979
    %3384 = vmatprep.subr.bf16.mxu0 0
    %3385 = vmatpush1.bf16.msra.mxu0 %v2980
    %3386 = vmatprep.subr.bf16.mxu0 0
    %3387 = vmatpush1.bf16.msra.mxu0 %v2981
    %3388 = vmatprep.subr.bf16.mxu0 0
    %3389 = vmatpush1.bf16.msra.mxu0 %v2982
    %3390 = vmatprep.subr.bf16.mxu0 0
    %3391 = vmatpush1.bf16.msra.mxu0 %v2983
    %3392 = vmatprep.subr.bf16.mxu0 0
    %3393 = vmatpush1.bf16.msra.mxu0 %v2984
    %3394 = vmatprep.subr.bf16.mxu0 0
    %3395 = vmatpush1.bf16.msra.mxu0 %v2985
    %3396 = vmatprep.subr.bf16.mxu0 0
    %3397 = vmatpush1.bf16.msra.mxu0 %v2986
    %3398 = vmatprep.subr.bf16.mxu0 0
    %3399 = vmatpush1.bf16.msra.mxu0 %v2987
    %3400 = vmatprep.subr.bf16.mxu0 0
    %3401 = vmatpush1.bf16.msra.mxu0 %v2988
    %3402 = vmatprep.subr.bf16.mxu0 0
    %3403 = vmatpush1.bf16.msra.mxu0 %v2989
    %3404 = vmatprep.subr.bf16.mxu0 0
    %3405 = vmatpush1.bf16.msra.mxu0 %v2990
    %3406 = vmatprep.subr.bf16.mxu0 0
    %3407 = vmatpush1.bf16.msra.mxu0 %v2991
    %3408 = vmatprep.mubr.bf16.mxu0 %v2102
    %3409 = vmatmul.mubr.bf16.gmra.mrb[0].mxu0 %v2101
    %v3410 = vpop.f32.mrb[0].mxu0
    %v3411 = vadd.f32 %v3371, %v3410
    %v3412 = vpop.f32.mrb[0].mxu0
    %v3413 = vpop.f32.mrb[0].mxu0
    %v3414 = vpop.f32.mrb[0].mxu0
    %3415 = vdwg.mxu0
    %3416 = vmatprep.subr.bf16.mxu0 0
    %3417 = vmatpush1.bf16.msra.mxu0 %v2992
    %3418 = vmatprep.subr.bf16.mxu0 0
    %3419 = vmatpush1.bf16.msra.mxu0 %v2993
    %3420 = vmatprep.subr.bf16.mxu0 0
    %3421 = vmatpush1.bf16.msra.mxu0 %v2994
    %3422 = vmatprep.subr.bf16.mxu0 0
    %3423 = vmatpush1.bf16.msra.mxu0 %v2995
    %3424 = vmatprep.subr.bf16.mxu0 0
    %3425 = vmatpush1.bf16.msra.mxu0 %v2996
    %3426 = vmatprep.subr.bf16.mxu0 0
    %3427 = vmatpush1.bf16.msra.mxu0 %v2997
    %3428 = vmatprep.subr.bf16.mxu0 0
    %3429 = vmatpush1.bf16.msra.mxu0 %v2998
    %3430 = vmatprep.subr.bf16.mxu0 0
    %3431 = vmatpush1.bf16.msra.mxu0 %v2999
    %3432 = vmatprep.subr.bf16.mxu0 0
    %3433 = vmatpush1.bf16.msra.mxu0 %v3000
    %3434 = vmatprep.subr.bf16.mxu0 0
    %3435 = vmatpush1.bf16.msra.mxu0 %v3001
    %3436 = vmatprep.subr.bf16.mxu0 0
    %3437 = vmatpush1.bf16.msra.mxu0 %v3002
    %3438 = vmatprep.subr.bf16.mxu0 0
    %3439 = vmatpush1.bf16.msra.mxu0 %v3003
    %3440 = vmatprep.subr.bf16.mxu0 0
    %3441 = vmatpush1.bf16.msra.mxu0 %v3004
    %3442 = vmatprep.subr.bf16.mxu0 0
    %3443 = vmatpush1.bf16.msra.mxu0 %v3005
    %3444 = vmatprep.subr.bf16.mxu0 0
    %3445 = vmatpush1.bf16.msra.mxu0 %v3006
    %3446 = vmatprep.subr.bf16.mxu0 0
    %3447 = vmatpush1.bf16.msra.mxu0 %v3007
    %3448 = vmatprep.mubr.bf16.mxu0 %v2104
    %3449 = vmatmul.mubr.bf16.gmra.mrb[0].mxu0 %v2103
    %v3450 = vpop.f32.mrb[0].mxu0
    %v3451 = vadd.f32 %v3411, %v3450
    %v3452 = vpop.f32.mrb[0].mxu0
    %v3453 = vpop.f32.mrb[0].mxu0
    %v3454 = vpop.f32.mrb[0].mxu0
    %3455 = vdwg.mxu0
    %3456 = vst [vmem:[#allocation13] sm:$0xff] %v3451
    // Predicated region
    $region70: #{tpu_custom_call.1} parent=1 // pred_check
      _
    $region71: #{tpu_custom_call.1} parent=1 // pred_check_branch
      %3458 = sbr.rel (0) target = $region73
    $region72: #{tpu_custom_call.1} parent=1 // pred_region
      %s3460 = ssub.s32 128, 128
      %3461 = vsyncadd [#allocation4], %s3460
      %s3463 = sshll.u32 [#allocation13], 4
      %s3464 = int_to_ptr.vmem [resolvable:$true] %s3463
      %3466 = dma.vmem_to_hbm [thread:$0]  %s3464, 128, %s11, [#allocation4]
    $region73: #{tpu_custom_call.1} parent=1 // pred_fallthru
      _
    // Predicated region
    $region74: #{tpu_custom_call.1} parent=1 // pred_check
      _
    $region75: #{tpu_custom_call.1} parent=1 // pred_check_branch
      %3468 = sbr.rel (0) target = $region77
    $region76: #{tpu_custom_call.1} parent=1 // pred_region
      %3469 = dma.done [#allocation4], 128
    $region77: #{tpu_custom_call.1} parent=1 // pred_fallthru
      _
    %3470 = vsyncpa [#allocation3], 1
    %3471 = vsyncpa [#allocation6], 1
    %3472 = vsyncpa [#allocation9], 1
    %3473 = vsyncpa [#allocation12], 1
    %3474 = vsyncpa [#allocation4], 1

</llo_original>
